<compile_context>
chip_gen: v5e
topology: v5e:2x2
jax: 0.10.0
libtpu: 0.0.40
codegen_flags: <defaults>
</compile_context>

<pallas_src>
import functools

import jax
import jax.numpy as jnp
from jax.experimental import pallas as pl
from jax.experimental.pallas import tpu as pltpu

IN_DIM = 28 * 28          # 784
H1, H2, H3, OUT = 512, 128, 64, 10

# MXU / lane-friendly padded dims (multiples of 128 on contraction & output axes).
IN_PAD = 896              # 784 -> 7 * 128  (padded in-kernel, in VMEM)
H3_PAD = 128              # 64  -> 128
OUT_PAD = 128             # 10  -> 128


def _round_up(n, m):
    return ((n + m - 1) // m) * m


def _mlp_kernel(x_ref, w1_ref, b1_ref, w3_ref, b3_ref, w4_ref, b4_ref,
                w5_ref, b5_ref, o_ref, xpad_ref):
    """Full MLP forward for one batch tile, entirely in VMEM.

    x_ref:    (TB, 784) input dtype (f32 or bf16)  -- raw input tile from HBM
    xpad_ref: (TB, 896) bf16 scratch               -- in-VMEM cast + zero-pad
    w*:       (in, out) bf16,  b*: (1, out) f32
    o_ref:    (TB, 128) f32  (columns 10..127 are zero padding, sliced outside)

    Dropout (p=0.2) is identity at inference, so it is omitted.
    """
    # In-VMEM cast (-> bf16) and 784 -> 896 zero-pad of the input tile, so the
    # fc1 contraction is 128-aligned without any wrapper-side HBM pass over x.
    xpad_ref[...] = jnp.zeros_like(xpad_ref)
    xpad_ref[:, :IN_DIM] = x_ref[...].astype(jnp.bfloat16)

    # fc1 + ReLU  (bf16 operands, f32 MXU accumulation)
    h = jnp.dot(xpad_ref[...], w1_ref[...], preferred_element_type=jnp.float32)
    h = jnp.maximum(h + b1_ref[...], 0.0).astype(jnp.bfloat16)

    # fc3 + ReLU
    h = jnp.dot(h, w3_ref[...], preferred_element_type=jnp.float32)
    h = jnp.maximum(h + b3_ref[...], 0.0).astype(jnp.bfloat16)

    # fc4 + ReLU
    h = jnp.dot(h, w4_ref[...], preferred_element_type=jnp.float32)
    h = jnp.maximum(h + b4_ref[...], 0.0).astype(jnp.bfloat16)

    # fc5 (logits, no activation) -- lane-dense 128-wide store (no vst.msk).
    o_ref[...] = (jnp.dot(h, w5_ref[...], preferred_element_type=jnp.float32)
                  + b5_ref[...]).astype(o_ref.dtype)


def _grid_plan(B):
    """Return (batch_tile, n_tiles).

    B <= 1024: one tile (single-TC chips want max tile / fewest grid steps).
    B  > 1024: tiles of <= 1024 rows with an EVEN tile count so the "parallel"
               batch axis splits evenly across v7x's two TensorCores.
    """
    if B <= 1024:
        return _round_up(B, 128), 1
    n = pl.cdiv(B, 1024)
    if n % 2:
        n += 1
    tile = _round_up(pl.cdiv(B, n), 128)
    return tile, pl.cdiv(B, tile)


def prepare_params(params):
    """One-time (model-load) weight prep: zero-pad to lane-aligned shapes and cast
    weights to bf16 (biases stay f32). Pass the result to deep_nn_forward."""
    bf = jnp.bfloat16
    w1 = jnp.pad(params["w1"], ((0, IN_PAD - IN_DIM), (0, 0))).astype(bf)
    w3 = params["w3"].astype(bf)
    w4 = jnp.pad(params["w4"], ((0, 0), (0, H3_PAD - H3))).astype(bf)
    w5 = jnp.pad(params["w5"], ((0, H3_PAD - H3), (0, OUT_PAD - OUT))).astype(bf)
    b1 = params["b1"].astype(jnp.float32)
    b3 = params["b3"].astype(jnp.float32)
    b4 = jnp.pad(params["b4"], ((0, 0), (0, H3_PAD - H3))).astype(jnp.float32)
    b5 = jnp.pad(params["b5"], ((0, 0), (0, OUT_PAD - OUT))).astype(jnp.float32)
    return (w1, b1, w3, b3, w4, b4, w5, b5)


@functools.partial(jax.jit, static_argnames=("batch_tile",))
def deep_nn_forward(x, prepared_params, batch_tile=None):
    """DeepNN forward via a fused Pallas TPU kernel.

    x: any shape whose trailing dims flatten to 784 (e.g. (B, 1, 28, 28)),
       f32 or bf16 — the bf16 cast happens inside the kernel.
    prepared_params: output of prepare_params() (padded bf16 weights, f32 biases).
    batch_tile: optional override (multiple of 128).
    """
    w1, b1, w3, b3, w4, b4, w5, b5 = prepared_params
    x2d = x.reshape(-1, IN_DIM)
    B = x2d.shape[0]

    if batch_tile is None:
        tile, n_tiles = _grid_plan(B)
    else:
        tile, n_tiles = batch_tile, pl.cdiv(B, batch_tile)
    Bp = tile * n_tiles   # output allocation only; x itself is NOT padded/copied

    def weight_spec(shape):
        # Constant index_map: fetched once, VMEM-resident across all grid steps.
        return pl.BlockSpec(shape, lambda i: (0, 0))

    out = pl.pallas_call(
        _mlp_kernel,
        out_shape=jax.ShapeDtypeStruct((Bp, OUT_PAD), jnp.float32),
        grid_spec=pltpu.PrefetchScalarGridSpec(
            num_scalar_prefetch=0,
            grid=(n_tiles,),
            in_specs=[
                # x tile: full 784-wide last dim (legal full-extent block);
                # partial last batch tile handled by Pallas bounds clamping.
                pl.BlockSpec((tile, IN_DIM), lambda i: (i, 0)),
                weight_spec((IN_PAD, H1)),      weight_spec((1, H1)),      # fc1
                weight_spec((H1, H2)),          weight_spec((1, H2)),      # fc3
                weight_spec((H2, H3_PAD)),      weight_spec((1, H3_PAD)),  # fc4
                weight_spec((H3_PAD, OUT_PAD)), weight_spec((1, OUT_PAD)), # fc5
            ],
            out_specs=pl.BlockSpec((tile, OUT_PAD), lambda i: (i, 0)),
            scratch_shapes=[pltpu.VMEM((tile, IN_PAD), jnp.bfloat16)],
        ),
        compiler_params=pltpu.CompilerParams(
            # Batch tiles are independent -> shardable across v7x's 2 TensorCores.
            dimension_semantics=("parallel",),
            # 1024-row tiles (~15 MiB incl. double-buffered f32 x) must also fit
            # v5e's 16 MiB default scoped VMEM; 32 MiB is within every gen's
            # physical VMEM.
            vmem_limit_bytes=32 * 1024 * 1024,
        ),
    )(x2d, w1, b1, w3, b3, w4, b4, w5, b5)

    # Strip batch padding (allocation-only) and the 10 -> 128 logits padding.
    return out[:B, :OUT]


def init_params(key):
    """Deterministic init mimicking PyTorch Linear's U(-1/sqrt(in), 1/sqrt(in))."""
    def linear(key, fan_in, fan_out):
        kw, kb = jax.random.split(key)
        bound = 1.0 / jnp.sqrt(fan_in)
        w = jax.random.uniform(kw, (fan_in, fan_out), jnp.float32, -bound, bound)
        b = jax.random.uniform(kb, (1, fan_out), jnp.float32, -bound, bound)
        return w, b

    k1, k3, k4, k5 = jax.random.split(key, 4)
    w1, b1 = linear(k1, IN_DIM, H1)
    w3, b3 = linear(k3, H1, H2)
    w4, b4 = linear(k4, H2, H3)
    w5, b5 = linear(k5, H3, OUT)
    return dict(w1=w1, b1=b1, w3=w3, b3=b3, w4=w4, b4=b4, w5=w5, b5=b5)


def reference_forward(x, params):
    """Pure-JAX reference with matching numerics (bf16 operands, f32 accumulation)."""
    def dense(h, w, b):
        return jnp.dot(h.astype(jnp.bfloat16), w.astype(jnp.bfloat16),
                       preferred_element_type=jnp.float32) + b

    h = x.reshape(-1, IN_DIM).astype(jnp.float32)
    h = jnp.maximum(dense(h, params["w1"], params["b1"]), 0.0)
    h = jnp.maximum(dense(h, params["w3"], params["b3"]), 0.0)
    h = jnp.maximum(dense(h, params["w4"], params["b4"]), 0.0)
    return dense(h, params["w5"], params["b5"])


if __name__ == "__main__":
    key = jax.random.PRNGKey(0)
    kx, kp = jax.random.split(key)

    # Small MNIST-like batch: (B, 1, 28, 28) -> flattened to (B, 784) inside.
    x = jax.random.normal(kx, (2, 1, 28, 28), jnp.float32)
    params = init_params(kp)
    prepared = prepare_params(params)   # one-time weight pad/cast (hoisted)

    out = jax.block_until_ready(deep_nn_forward(x, prepared))
    ref = reference_forward(x, params)

    assert out.shape == (2, OUT), out.shape
    assert jnp.allclose(out, ref, atol=5e-3, rtol=5e-3), "mismatch vs JAX reference"

    # TODO(synk): nn.Dropout(p=0.2) is identity in eval mode; training-mode RNG
    # masking (pltpu.prng_*) is intentionally not implemented.
    print("KERNEL_OK")
</pallas_src>

<mosaic_0001>
module attributes {stable_mosaic.version = 11 : i64} {
  func.func @_mlp_kernel(%arg0: i32, %arg1: memref<128x784xf32, #tpu.memory_space<vmem>>, %arg2: memref<896x512xbf16, #tpu.memory_space<vmem>>, %arg3: memref<1x512xf32, #tpu.memory_space<vmem>>, %arg4: memref<512x128xbf16, #tpu.memory_space<vmem>>, %arg5: memref<1x128xf32, #tpu.memory_space<vmem>>, %arg6: memref<128x128xbf16, #tpu.memory_space<vmem>>, %arg7: memref<1x128xf32, #tpu.memory_space<vmem>>, %arg8: memref<128x128xbf16, #tpu.memory_space<vmem>>, %arg9: memref<1x128xf32, #tpu.memory_space<vmem>>, %arg10: memref<128x128xf32, #tpu.memory_space<vmem>>, %arg11: memref<128x896xbf16, #tpu.memory_space<vmem>>) attributes {dimension_semantics = [#tpu.dimension_semantics<parallel>], iteration_bounds = array<i64: 1>, scalar_prefetch = 0 : i64, scratch_operands = 1 : i64, tpu.core_type = #tpu.core_type<tc>, window_params = [{transform_indices = @transform_0, window_bounds = array<i64: 128, 784>}, {pipeline_mode = #tpu.pipeline_mode<synchronous>, transform_indices = @transform_1, window_bounds = array<i64: 896, 512>}, {pipeline_mode = #tpu.pipeline_mode<synchronous>, transform_indices = @transform_2, window_bounds = array<i64: 1, 512>}, {pipeline_mode = #tpu.pipeline_mode<synchronous>, transform_indices = @transform_3, window_bounds = array<i64: 512, 128>}, {pipeline_mode = #tpu.pipeline_mode<synchronous>, transform_indices = @transform_4, window_bounds = array<i64: 1, 128>}, {pipeline_mode = #tpu.pipeline_mode<synchronous>, transform_indices = @transform_5, window_bounds = array<i64: 128, 128>}, {pipeline_mode = #tpu.pipeline_mode<synchronous>, transform_indices = @transform_6, window_bounds = array<i64: 1, 128>}, {pipeline_mode = #tpu.pipeline_mode<synchronous>, transform_indices = @transform_7, window_bounds = array<i64: 128, 128>}, {pipeline_mode = #tpu.pipeline_mode<synchronous>, transform_indices = @transform_8, window_bounds = array<i64: 1, 128>}, {transform_indices = @transform_9, window_bounds = array<i64: 128, 128>}]} {
    %cst = arith.constant 0.000000e+00 : bf16
    %0 = vector.broadcast %cst : bf16 to vector<128x896xbf16>
    %c0 = arith.constant 0 : index
    %c0_0 = arith.constant 0 : index
    %1 = vector.load %arg11[%c0, %c0_0] : memref<128x896xbf16, #tpu.memory_space<vmem>>, vector<128x896xbf16>
    tpu.vector_store %arg11[%c0, %c0_0], %0 {strides = array<i32>} : memref<128x896xbf16, #tpu.memory_space<vmem>>, vector<128x896xbf16>,
    %c0_1 = arith.constant 0 : index
    %c0_2 = arith.constant 0 : index
    %2 = vector.load %arg1[%c0_1, %c0_2] : memref<128x784xf32, #tpu.memory_space<vmem>>, vector<128x784xf32>
    %3 = arith.truncf %2 : vector<128x784xf32> to vector<128x784xbf16>
    %c0_3 = arith.constant 0 : index
    %c0_4 = arith.constant 0 : index
    %4 = vector.load %arg11[%c0_3, %c0_4] : memref<128x896xbf16, #tpu.memory_space<vmem>>, vector<128x784xbf16>
    tpu.vector_store %arg11[%c0_3, %c0_4], %3 {strides = array<i32>} : memref<128x896xbf16, #tpu.memory_space<vmem>>, vector<128x784xbf16>,
    %c0_5 = arith.constant 0 : index
    %c0_6 = arith.constant 0 : index
    %5 = vector.load %arg11[%c0_5, %c0_6] : memref<128x896xbf16, #tpu.memory_space<vmem>>, vector<128x896xbf16>
    %c0_7 = arith.constant 0 : index
    %c0_8 = arith.constant 0 : index
    %6 = vector.load %arg2[%c0_7, %c0_8] : memref<896x512xbf16, #tpu.memory_space<vmem>>, vector<896x512xbf16>
    %cst_9 = arith.constant dense<0.000000e+00> : vector<128x512xf32>
    %7 = tpu.matmul %5, %6, %cst_9 {dimension_numbers = #tpu.dot_dimension_numbers<[1], [0], [0], [1], [0, 0, 1, 1], [], []>} : vector<128x896xbf16>, vector<896x512xbf16>, vector<128x512xf32> -> vector<128x512xf32>
    %c0_10 = arith.constant 0 : index
    %c0_11 = arith.constant 0 : index
    %8 = vector.load %arg3[%c0_10, %c0_11] : memref<1x512xf32, #tpu.memory_space<vmem>>, vector<1x512xf32>
    %9 = vector.broadcast %8 : vector<1x512xf32> to vector<128x512xf32>
    %10 = arith.addf %7, %9 : vector<128x512xf32>
    %cst_12 = arith.constant 0.000000e+00 : f32
    %11 = vector.broadcast %cst_12 : f32 to vector<128x512xf32>
    %12 = arith.maximumf %10, %11 : vector<128x512xf32>
    %13 = arith.truncf %12 : vector<128x512xf32> to vector<128x512xbf16>
    %c0_13 = arith.constant 0 : index
    %c0_14 = arith.constant 0 : index
    %14 = vector.load %arg4[%c0_13, %c0_14] : memref<512x128xbf16, #tpu.memory_space<vmem>>, vector<512x128xbf16>
    %cst_15 = arith.constant dense<0.000000e+00> : vector<128x128xf32>
    %15 = tpu.matmul %13, %14, %cst_15 {dimension_numbers = #tpu.dot_dimension_numbers<[1], [0], [0], [1], [0, 0, 1, 1], [], []>} : vector<128x512xbf16>, vector<512x128xbf16>, vector<128x128xf32> -> vector<128x128xf32>
    %c0_16 = arith.constant 0 : index
    %c0_17 = arith.constant 0 : index
    %16 = vector.load %arg5[%c0_16, %c0_17] : memref<1x128xf32, #tpu.memory_space<vmem>>, vector<1x128xf32>
    %17 = vector.broadcast %16 : vector<1x128xf32> to vector<128x128xf32>
    %18 = arith.addf %15, %17 : vector<128x128xf32>
    %cst_18 = arith.constant 0.000000e+00 : f32
    %19 = vector.broadcast %cst_18 : f32 to vector<128x128xf32>
    %20 = arith.maximumf %18, %19 : vector<128x128xf32>
    %21 = arith.truncf %20 : vector<128x128xf32> to vector<128x128xbf16>
    %c0_19 = arith.constant 0 : index
    %c0_20 = arith.constant 0 : index
    %22 = vector.load %arg6[%c0_19, %c0_20] : memref<128x128xbf16, #tpu.memory_space<vmem>>, vector<128x128xbf16>
    %cst_21 = arith.constant dense<0.000000e+00> : vector<128x128xf32>
    %23 = tpu.matmul %21, %22, %cst_21 {dimension_numbers = #tpu.dot_dimension_numbers<[1], [0], [0], [1], [0, 0, 1, 1], [], []>} : vector<128x128xbf16>, vector<128x128xbf16>, vector<128x128xf32> -> vector<128x128xf32>
    %c0_22 = arith.constant 0 : index
    %c0_23 = arith.constant 0 : index
    %24 = vector.load %arg7[%c0_22, %c0_23] : memref<1x128xf32, #tpu.memory_space<vmem>>, vector<1x128xf32>
    %25 = vector.broadcast %24 : vector<1x128xf32> to vector<128x128xf32>
    %26 = arith.addf %23, %25 : vector<128x128xf32>
    %cst_24 = arith.constant 0.000000e+00 : f32
    %27 = vector.broadcast %cst_24 : f32 to vector<128x128xf32>
    %28 = arith.maximumf %26, %27 : vector<128x128xf32>
    %29 = arith.truncf %28 : vector<128x128xf32> to vector<128x128xbf16>
    %c0_25 = arith.constant 0 : index
    %c0_26 = arith.constant 0 : index
    %30 = vector.load %arg8[%c0_25, %c0_26] : memref<128x128xbf16, #tpu.memory_space<vmem>>, vector<128x128xbf16>
    %cst_27 = arith.constant dense<0.000000e+00> : vector<128x128xf32>
    %31 = tpu.matmul %29, %30, %cst_27 {dimension_numbers = #tpu.dot_dimension_numbers<[1], [0], [0], [1], [0, 0, 1, 1], [], []>} : vector<128x128xbf16>, vector<128x128xbf16>, vector<128x128xf32> -> vector<128x128xf32>
    %c0_28 = arith.constant 0 : index
    %c0_29 = arith.constant 0 : index
    %32 = vector.load %arg9[%c0_28, %c0_29] : memref<1x128xf32, #tpu.memory_space<vmem>>, vector<1x128xf32>
    %33 = vector.broadcast %32 : vector<1x128xf32> to vector<128x128xf32>
    %34 = arith.addf %31, %33 : vector<128x128xf32>
    %c0_30 = arith.constant 0 : index
    %c0_31 = arith.constant 0 : index
    %35 = vector.load %arg10[%c0_30, %c0_31] : memref<128x128xf32, #tpu.memory_space<vmem>>, vector<128x128xf32>
    tpu.vector_store %arg10[%c0_30, %c0_31], %34 {strides = array<i32>} : memref<128x128xf32, #tpu.memory_space<vmem>>, vector<128x128xf32>,
    return
  }
  func.func @transform_0(%arg0: i32) -> (i32, i32) {
    %c0_i32 = arith.constant 0 : i32
    %c0_i32_0 = arith.constant 0 : i32
    return %arg0, %c0_i32 : i32, i32
  }
  func.func @transform_1(%arg0: i32) -> (i32, i32) {
    %c0_i32 = arith.constant 0 : i32
    %c0_i32_0 = arith.constant 0 : i32
    %c0_i32_1 = arith.constant 0 : i32
    return %c0_i32, %c0_i32_0 : i32, i32
  }
  func.func @transform_2(%arg0: i32) -> (i32, i32) {
    %c0_i32 = arith.constant 0 : i32
    %c0_i32_0 = arith.constant 0 : i32
    %c0_i32_1 = arith.constant 0 : i32
    return %c0_i32, %c0_i32_0 : i32, i32
  }
  func.func @transform_3(%arg0: i32) -> (i32, i32) {
    %c0_i32 = arith.constant 0 : i32
    %c0_i32_0 = arith.constant 0 : i32
    %c0_i32_1 = arith.constant 0 : i32
    return %c0_i32, %c0_i32_0 : i32, i32
  }
  func.func @transform_4(%arg0: i32) -> (i32, i32) {
    %c0_i32 = arith.constant 0 : i32
    %c0_i32_0 = arith.constant 0 : i32
    %c0_i32_1 = arith.constant 0 : i32
    return %c0_i32, %c0_i32_0 : i32, i32
  }
  func.func @transform_5(%arg0: i32) -> (i32, i32) {
    %c0_i32 = arith.constant 0 : i32
    %c0_i32_0 = arith.constant 0 : i32
    %c0_i32_1 = arith.constant 0 : i32
    return %c0_i32, %c0_i32_0 : i32, i32
  }
  func.func @transform_6(%arg0: i32) -> (i32, i32) {
    %c0_i32 = arith.constant 0 : i32
    %c0_i32_0 = arith.constant 0 : i32
    %c0_i32_1 = arith.constant 0 : i32
    return %c0_i32, %c0_i32_0 : i32, i32
  }
  func.func @transform_7(%arg0: i32) -> (i32, i32) {
    %c0_i32 = arith.constant 0 : i32
    %c0_i32_0 = arith.constant 0 : i32
    %c0_i32_1 = arith.constant 0 : i32
    return %c0_i32, %c0_i32_0 : i32, i32
  }
  func.func @transform_8(%arg0: i32) -> (i32, i32) {
    %c0_i32 = arith.constant 0 : i32
    %c0_i32_0 = arith.constant 0 : i32
    %c0_i32_1 = arith.constant 0 : i32
    return %c0_i32, %c0_i32_0 : i32, i32
  }
  func.func @transform_9(%arg0: i32) -> (i32, i32) {
    %c0_i32 = arith.constant 0 : i32
    %c0_i32_0 = arith.constant 0 : i32
    return %arg0, %c0_i32 : i32, i32
  }
}

</mosaic_0001>

<llo_original>
// kernel: deep_nn_forward.1
$region0: #{deep_nn_forward.1}
  #allocation0 [shape = 'u32[]', space=smem, size = 0x4, offset = 0x4, fixed_abs, tag = 'smem constant byte address 0x4 - core index']
  #allocation1 [shape = 'u32[72,128]{1,0:T(1,128)}', space=vmem, size = 0x9000, scoped, tag = 'internal scratch']
  #allocation2 [shape = 'bf16[128,896]{1,0:T(8,128)(2,1)}', space=vmem, size = 0x38000, scoped, tag = 'scratch operand']
  %s0 = inlined_call_operand.vmem [shape: f32[2,784], index: 0, kind: input, shape index: {}]
  %s1 = inlined_call_operand.hbm [shape: bf16[896,512], index: 1, kind: input, shape index: {}]
  %s2 = inlined_call_operand.vmem [shape: f32[1,512], index: 2, kind: input, shape index: {}]
  %s3 = inlined_call_operand.hbm [shape: bf16[512,128], index: 3, kind: input, shape index: {}]
  %s4 = inlined_call_operand.vmem [shape: f32[1,128], index: 4, kind: input, shape index: {}]
  %s5 = inlined_call_operand.vmem [shape: bf16[128,128], index: 5, kind: input, shape index: {}]
  %s6 = inlined_call_operand.vmem [shape: f32[1,128], index: 6, kind: input, shape index: {}]
  %s7 = inlined_call_operand.vmem [shape: bf16[128,128], index: 7, kind: input, shape index: {}]
  %s8 = inlined_call_operand.vmem [shape: f32[1,128], index: 8, kind: input, shape index: {}]
  %s9 = inlined_call_operand.vmem [shape: f32[128,128], index: 9, kind: output, shape index: {}]
  %s10 = sld [smem:[#allocation0]]
  $region54: #{deep_nn_forward.1} parent=0
    _
  %s12 = ssub.s32 1, %s10
  %s13 = scalar_select 0, %s12, %s10
  $region1: #{deep_nn_forward.1} parent=0
    #allocation3 [shape = 'u8[917504]{0}', space=vmem, size = 0xe0000, scoped, tag = 'input window, operand 1, single buffered']
    #allocation4 [shape = 's32[1]{0}', space=sflag, size = 0x4, scoped, tag = 'scoped memory for deep_nn_forward.1']
    #allocation5 [shape = 'u8[131072]{0}', space=vmem, size = 0x20000, scoped, tag = 'input window, operand 3, single buffered']
    #allocation6 [shape = 's32[1]{0}', space=sflag, size = 0x4, scoped, tag = 'scoped memory for deep_nn_forward.1']
    %14 = vsyncpa [#allocation4], 0
    %15 = vsyncpa [#allocation6], 0
    // Predicated region
    $region2: #{deep_nn_forward.1} parent=1 // pred_check
      _
    $region3: #{deep_nn_forward.1} parent=1 // pred_check_branch
      %17 = sbr.rel (0) target = $region5
    $region4: #{deep_nn_forward.1} parent=1 // pred_region
      _
    $region5: #{deep_nn_forward.1} parent=1 // pred_fallthru
      _
    // Predicated region
    $region6: #{deep_nn_forward.1} parent=1 // pred_check
      _
    $region7: #{deep_nn_forward.1} parent=1 // pred_check_branch
      %19 = sbr.rel (0) target = $region9
    $region8: #{deep_nn_forward.1} parent=1 // pred_region
      %21 = vsyncadd [#allocation4], 0
      %s22 = sshll.u32 %s1, 4
      %s23 = int_to_ptr.hbm [resolvable:$true] %s22
      %s24 = sshll.u32 [#allocation3], 4
      %s25 = int_to_ptr.vmem [resolvable:$true] %s24
      %30 = dma.hbm_to_vmem [thread:$0]  %s23, 28672, %s25, [#allocation4], 256, 256, 16
    $region9: #{deep_nn_forward.1} parent=1 // pred_fallthru
      _
    // Predicated region
    $region10: #{deep_nn_forward.1} parent=1 // pred_check
      _
    $region11: #{deep_nn_forward.1} parent=1 // pred_check_branch
      %32 = sbr.rel (0) target = $region13
    $region12: #{deep_nn_forward.1} parent=1 // pred_region
      _
    $region13: #{deep_nn_forward.1} parent=1 // pred_fallthru
      _
    // Predicated region
    $region14: #{deep_nn_forward.1} parent=1 // pred_check
      _
    $region15: #{deep_nn_forward.1} parent=1 // pred_check_branch
      %34 = sbr.rel (0) target = $region17
    $region16: #{deep_nn_forward.1} parent=1 // pred_region
      %36 = vsyncadd [#allocation6], 0
      %s37 = sshll.u32 %s3, 4
      %s38 = int_to_ptr.hbm [resolvable:$true] %s37
      %s39 = sshll.u32 [#allocation5], 4
      %s40 = int_to_ptr.vmem [resolvable:$true] %s39
      %45 = dma.hbm_to_vmem [thread:$0]  %s38, 4096, %s40, [#allocation6], 64, 64, 4
    $region17: #{deep_nn_forward.1} parent=1 // pred_fallthru
      _
    // Predicated region
    $region18: #{deep_nn_forward.1} parent=1 // pred_check
      _
    $region19: #{deep_nn_forward.1} parent=1 // pred_check_branch
      %47 = sbr.rel (0) target = $region21
    $region20: #{deep_nn_forward.1} parent=1 // pred_region
      _
    $region21: #{deep_nn_forward.1} parent=1 // pred_fallthru
      _
    // Predicated region
    $region22: #{deep_nn_forward.1} parent=1 // pred_check
      _
    $region23: #{deep_nn_forward.1} parent=1 // pred_check_branch
      %49 = sbr.rel (0) target = $region25
    $region24: #{deep_nn_forward.1} parent=1 // pred_region
      _
    $region25: #{deep_nn_forward.1} parent=1 // pred_fallthru
      _
    // Predicated region
    $region26: #{deep_nn_forward.1} parent=1 // pred_check
      _
    $region27: #{deep_nn_forward.1} parent=1 // pred_check_branch
      %51 = sbr.rel (0) target = $region29
    $region28: #{deep_nn_forward.1} parent=1 // pred_region
      _
    $region29: #{deep_nn_forward.1} parent=1 // pred_fallthru
      _
    // Predicated region
    $region30: #{deep_nn_forward.1} parent=1 // pred_check
      _
    $region31: #{deep_nn_forward.1} parent=1 // pred_check_branch
      %53 = sbr.rel (0) target = $region33
    $region32: #{deep_nn_forward.1} parent=1 // pred_region
      _
    $region33: #{deep_nn_forward.1} parent=1 // pred_fallthru
      _
    // Predicated region
    $region34: #{deep_nn_forward.1} parent=1 // pred_check
      _
    $region35: #{deep_nn_forward.1} parent=1 // pred_check_branch
      %55 = sbr.rel (0) target = $region37
    $region36: #{deep_nn_forward.1} parent=1 // pred_region
      _
    $region37: #{deep_nn_forward.1} parent=1 // pred_fallthru
      _
    // Predicated region
    $region38: #{deep_nn_forward.1} parent=1 // pred_check
      _
    $region39: #{deep_nn_forward.1} parent=1 // pred_check_branch
      %57 = sbr.rel (0) target = $region41
    $region40: #{deep_nn_forward.1} parent=1 // pred_region
      %59 = dma.done [#allocation4], 28672
    $region41: #{deep_nn_forward.1} parent=1 // pred_fallthru
      _
    // Predicated region
    $region42: #{deep_nn_forward.1} parent=1 // pred_check
      _
    $region43: #{deep_nn_forward.1} parent=1 // pred_check_branch
      %61 = sbr.rel (0) target = $region45
    $region44: #{deep_nn_forward.1} parent=1 // pred_region
      %63 = dma.done [#allocation6], 4096
    $region45: #{deep_nn_forward.1} parent=1 // pred_fallthru
      _
    %65 = vst [vmem:[#allocation2] sm:$0xff] 0
    %66 = vst [vmem:[#allocation2 + $0x8] sm:$0xff] 0
    %67 = vst [vmem:[#allocation2 + $0x10] sm:$0xff] 0
    %68 = vst [vmem:[#allocation2 + $0x18] sm:$0xf] 0
    %69 = vst [vmem:[#allocation2 + $0x1c] sm:$0xff] 0
    %70 = vst [vmem:[#allocation2 + $0x24] sm:$0xff] 0
    %71 = vst [vmem:[#allocation2 + $0x2c] sm:$0xff] 0
    %72 = vst [vmem:[#allocation2 + $0x34] sm:$0xf] 0
    %73 = vst [vmem:[#allocation2 + $0x38] sm:$0xff] 0
    %74 = vst [vmem:[#allocation2 + $0x40] sm:$0xff] 0
    %75 = vst [vmem:[#allocation2 + $0x48] sm:$0xff] 0
    %76 = vst [vmem:[#allocation2 + $0x50] sm:$0xf] 0
    %77 = vst [vmem:[#allocation2 + $0x54] sm:$0xff] 0
    %78 = vst [vmem:[#allocation2 + $0x5c] sm:$0xff] 0
    %79 = vst [vmem:[#allocation2 + $0x64] sm:$0xff] 0
    %80 = vst [vmem:[#allocation2 + $0x6c] sm:$0xf] 0
    %81 = vst [vmem:[#allocation2 + $0x70] sm:$0xff] 0
    %82 = vst [vmem:[#allocation2 + $0x78] sm:$0xff] 0
    %83 = vst [vmem:[#allocation2 + $0x80] sm:$0xff] 0
    %84 = vst [vmem:[#allocation2 + $0x88] sm:$0xf] 0
    %85 = vst [vmem:[#allocation2 + $0x8c] sm:$0xff] 0
    %86 = vst [vmem:[#allocation2 + $0x94] sm:$0xff] 0
    %87 = vst [vmem:[#allocation2 + $0x9c] sm:$0xff] 0
    %88 = vst [vmem:[#allocation2 + $0xa4] sm:$0xf] 0
    %89 = vst [vmem:[#allocation2 + $0xa8] sm:$0xff] 0
    %90 = vst [vmem:[#allocation2 + $0xb0] sm:$0xff] 0
    %91 = vst [vmem:[#allocation2 + $0xb8] sm:$0xff] 0
    %92 = vst [vmem:[#allocation2 + $0xc0] sm:$0xf] 0
    %93 = vst [vmem:[#allocation2 + $0xc4] sm:$0xff] 0
    %94 = vst [vmem:[#allocation2 + $0xcc] sm:$0xff] 0
    %95 = vst [vmem:[#allocation2 + $0xd4] sm:$0xff] 0
    %96 = vst [vmem:[#allocation2 + $0xdc] sm:$0xf] 0
    %97 = vst [vmem:[#allocation2 + $0xe0] sm:$0xff] 0
    %98 = vst [vmem:[#allocation2 + $0xe8] sm:$0xff] 0
    %99 = vst [vmem:[#allocation2 + $0xf0] sm:$0xff] 0
    %100 = vst [vmem:[#allocation2 + $0xf8] sm:$0xf] 0
    %101 = vst [vmem:[#allocation2 + $0xfc] sm:$0xff] 0
    %102 = vst [vmem:[#allocation2 + $0x104] sm:$0xff] 0
    %103 = vst [vmem:[#allocation2 + $0x10c] sm:$0xff] 0
    %104 = vst [vmem:[#allocation2 + $0x114] sm:$0xf] 0
    %105 = vst [vmem:[#allocation2 + $0x118] sm:$0xff] 0
    %106 = vst [vmem:[#allocation2 + $0x120] sm:$0xff] 0
    %107 = vst [vmem:[#allocation2 + $0x128] sm:$0xff] 0
    %108 = vst [vmem:[#allocation2 + $0x130] sm:$0xf] 0
    %109 = vst [vmem:[#allocation2 + $0x134] sm:$0xff] 0
    %110 = vst [vmem:[#allocation2 + $0x13c] sm:$0xff] 0
    %111 = vst [vmem:[#allocation2 + $0x144] sm:$0xff] 0
    %112 = vst [vmem:[#allocation2 + $0x14c] sm:$0xf] 0
    %113 = vst [vmem:[#allocation2 + $0x150] sm:$0xff] 0
    %114 = vst [vmem:[#allocation2 + $0x158] sm:$0xff] 0
    %115 = vst [vmem:[#allocation2 + $0x160] sm:$0xff] 0
    %116 = vst [vmem:[#allocation2 + $0x168] sm:$0xf] 0
    %117 = vst [vmem:[#allocation2 + $0x16c] sm:$0xff] 0
    %118 = vst [vmem:[#allocation2 + $0x174] sm:$0xff] 0
    %119 = vst [vmem:[#allocation2 + $0x17c] sm:$0xff] 0
    %120 = vst [vmem:[#allocation2 + $0x184] sm:$0xf] 0
    %121 = vst [vmem:[#allocation2 + $0x188] sm:$0xff] 0
    %122 = vst [vmem:[#allocation2 + $0x190] sm:$0xff] 0
    %123 = vst [vmem:[#allocation2 + $0x198] sm:$0xff] 0
    %124 = vst [vmem:[#allocation2 + $0x1a0] sm:$0xf] 0
    %125 = vst [vmem:[#allocation2 + $0x1a4] sm:$0xff] 0
    %126 = vst [vmem:[#allocation2 + $0x1ac] sm:$0xff] 0
    %127 = vst [vmem:[#allocation2 + $0x1b4] sm:$0xff] 0
    %128 = vst [vmem:[#allocation2 + $0x1bc] sm:$0xf] 0
    %v129 = vld [vmem:[%s0] sm:$0xff]
    %v130 = vld [vmem:[%s0 + $0x8] sm:$0x3f]
    %v131 = vld [vmem:[%s0 + $0xe] sm:$0xff]
    %v132 = vld [vmem:[%s0 + $0x16] sm:$0x3f]
    %v133 = vld [vmem:[%s0 + $0x1c] sm:$0xff]
    %v134 = vld [vmem:[%s0 + $0x24] sm:$0x3f]
    %v135 = vld [vmem:[%s0 + $0x2a] sm:$0xff]
    %v136 = vld [vmem:[%s0 + $0x32] sm:$0x3f]
    %v137 = vld [vmem:[%s0 + $0x38] sm:$0xff]
    %v138 = vld [vmem:[%s0 + $0x40] sm:$0x3f]
    %v139 = vld [vmem:[%s0 + $0x46] sm:$0xff]
    %v140 = vld [vmem:[%s0 + $0x4e] sm:$0x3f]
    %v141 = vld [vmem:[%s0 + $0x54] sm:$0xff]
    %v142 = vld [vmem:[%s0 + $0x5c] sm:$0x3f]
    %v143 = vld [vmem:[%s0 + $0x62] sm:$0xff]
    %v144 = vld [vmem:[%s0 + $0x6a] sm:$0x3f]
    %v145 = vld [vmem:[%s0 + $0x70] sm:$0xff]
    %v146 = vld [vmem:[%s0 + $0x78] sm:$0x3f]
    %v147 = vld [vmem:[%s0 + $0x7e] sm:$0xff]
    %v148 = vld [vmem:[%s0 + $0x86] sm:$0x3f]
    %v149 = vld [vmem:[%s0 + $0x8c] sm:$0xff]
    %v150 = vld [vmem:[%s0 + $0x94] sm:$0x3f]
    %v151 = vld [vmem:[%s0 + $0x9a] sm:$0xff]
    %v152 = vld [vmem:[%s0 + $0xa2] sm:$0x3f]
    %v153 = vld [vmem:[%s0 + $0xa8] sm:$0xff]
    %v154 = vld [vmem:[%s0 + $0xb0] sm:$0x3f]
    %v155 = vld [vmem:[%s0 + $0xb6] sm:$0xff]
    %v156 = vld [vmem:[%s0 + $0xbe] sm:$0x3f]
    %v157 = vld [vmem:[%s0 + $0xc4] sm:$0xff]
    %v158 = vld [vmem:[%s0 + $0xcc] sm:$0x3f]
    %v159 = vld [vmem:[%s0 + $0xd2] sm:$0xff]
    %v160 = vld [vmem:[%s0 + $0xda] sm:$0x3f]
    %v161 = vld [vmem:[%s0 + $0xe0] sm:$0xff]
    %v162 = vld [vmem:[%s0 + $0xe8] sm:$0x3f]
    %v163 = vld [vmem:[%s0 + $0xee] sm:$0xff]
    %v164 = vld [vmem:[%s0 + $0xf6] sm:$0x3f]
    %v165 = vld [vmem:[%s0 + $0xfc] sm:$0xff]
    %v166 = vld [vmem:[%s0 + $0x104] sm:$0x3f]
    %v167 = vld [vmem:[%s0 + $0x10a] sm:$0xff]
    %v168 = vld [vmem:[%s0 + $0x112] sm:$0x3f]
    %v169 = vld [vmem:[%s0 + $0x118] sm:$0xff]
    %v170 = vld [vmem:[%s0 + $0x120] sm:$0x3f]
    %v171 = vld [vmem:[%s0 + $0x126] sm:$0xff]
    %v172 = vld [vmem:[%s0 + $0x12e] sm:$0x3f]
    %v173 = vld [vmem:[%s0 + $0x134] sm:$0xff]
    %v174 = vld [vmem:[%s0 + $0x13c] sm:$0x3f]
    %v175 = vld [vmem:[%s0 + $0x142] sm:$0xff]
    %v176 = vld [vmem:[%s0 + $0x14a] sm:$0x3f]
    %v177 = vld [vmem:[%s0 + $0x150] sm:$0xff]
    %v178 = vld [vmem:[%s0 + $0x158] sm:$0x3f]
    %v179 = vld [vmem:[%s0 + $0x15e] sm:$0xff]
    %v180 = vld [vmem:[%s0 + $0x166] sm:$0x3f]
    %v181 = vld [vmem:[%s0 + $0x16c] sm:$0xff]
    %v182 = vld [vmem:[%s0 + $0x174] sm:$0x3f]
    %v183 = vld [vmem:[%s0 + $0x17a] sm:$0xff]
    %v184 = vld [vmem:[%s0 + $0x182] sm:$0x3f]
    %v185 = vld [vmem:[%s0 + $0x188] sm:$0xff]
    %v186 = vld [vmem:[%s0 + $0x190] sm:$0x3f]
    %v187 = vld [vmem:[%s0 + $0x196] sm:$0xff]
    %v188 = vld [vmem:[%s0 + $0x19e] sm:$0x3f]
    %v189 = vld [vmem:[%s0 + $0x1a4] sm:$0xff]
    %v190 = vld [vmem:[%s0 + $0x1ac] sm:$0x3f]
    %v191 = vld [vmem:[%s0 + $0x1b2] sm:$0xff]
    %v192 = vld [vmem:[%s0 + $0x1ba] sm:$0x3f]
    %v193 = vld [vmem:[%s0 + $0x1c0] sm:$0xff]
    %v194 = vld [vmem:[%s0 + $0x1c8] sm:$0x3f]
    %v195 = vld [vmem:[%s0 + $0x1ce] sm:$0xff]
    %v196 = vld [vmem:[%s0 + $0x1d6] sm:$0x3f]
    %v197 = vld [vmem:[%s0 + $0x1dc] sm:$0xff]
    %v198 = vld [vmem:[%s0 + $0x1e4] sm:$0x3f]
    %v199 = vld [vmem:[%s0 + $0x1ea] sm:$0xff]
    %v200 = vld [vmem:[%s0 + $0x1f2] sm:$0x3f]
    %v201 = vld [vmem:[%s0 + $0x1f8] sm:$0xff]
    %v202 = vld [vmem:[%s0 + $0x200] sm:$0x3f]
    %v203 = vld [vmem:[%s0 + $0x206] sm:$0xff]
    %v204 = vld [vmem:[%s0 + $0x20e] sm:$0x3f]
    %v205 = vld [vmem:[%s0 + $0x214] sm:$0xff]
    %v206 = vld [vmem:[%s0 + $0x21c] sm:$0x3f]
    %v207 = vld [vmem:[%s0 + $0x222] sm:$0xff]
    %v208 = vld [vmem:[%s0 + $0x22a] sm:$0x3f]
    %v209 = vld [vmem:[%s0 + $0x230] sm:$0xff]
    %v210 = vld [vmem:[%s0 + $0x238] sm:$0x3f]
    %v211 = vld [vmem:[%s0 + $0x23e] sm:$0xff]
    %v212 = vld [vmem:[%s0 + $0x246] sm:$0x3f]
    %v213 = vld [vmem:[%s0 + $0x24c] sm:$0xff]
    %v214 = vld [vmem:[%s0 + $0x254] sm:$0x3f]
    %v215 = vld [vmem:[%s0 + $0x25a] sm:$0xff]
    %v216 = vld [vmem:[%s0 + $0x262] sm:$0x3f]
    %v217 = vld [vmem:[%s0 + $0x268] sm:$0xff]
    %v218 = vld [vmem:[%s0 + $0x270] sm:$0x3f]
    %v219 = vld [vmem:[%s0 + $0x276] sm:$0xff]
    %v220 = vld [vmem:[%s0 + $0x27e] sm:$0x3f]
    %v221 = vld [vmem:[%s0 + $0x284] sm:$0xff]
    %v222 = vld [vmem:[%s0 + $0x28c] sm:$0x3f]
    %v223 = vld [vmem:[%s0 + $0x292] sm:$0xff]
    %v224 = vld [vmem:[%s0 + $0x29a] sm:$0x3f]
    %v225 = vld [vmem:[%s0 + $0x2a0] sm:$0xff]
    %v226 = vld [vmem:[%s0 + $0x2a8] sm:$0x3f]
    %v227 = vld [vmem:[%s0 + $0x2ae] sm:$0xff]
    %v228 = vld [vmem:[%s0 + $0x2b6] sm:$0x3f]
    %v229 = vld [vmem:[%s0 + $0x2bc] sm:$0xff]
    %v230 = vld [vmem:[%s0 + $0x2c4] sm:$0x3f]
    %v231 = vld [vmem:[%s0 + $0x2ca] sm:$0xff]
    %v232 = vld [vmem:[%s0 + $0x2d2] sm:$0x3f]
    %v233 = vld [vmem:[%s0 + $0x2d8] sm:$0xff]
    %v234 = vld [vmem:[%s0 + $0x2e0] sm:$0x3f]
    %v235 = vld [vmem:[%s0 + $0x2e6] sm:$0xff]
    %v236 = vld [vmem:[%s0 + $0x2ee] sm:$0x3f]
    %v237 = vld [vmem:[%s0 + $0x2f4] sm:$0xff]
    %v238 = vld [vmem:[%s0 + $0x2fc] sm:$0x3f]
    %v239 = vld [vmem:[%s0 + $0x302] sm:$0xff]
    %v240 = vld [vmem:[%s0 + $0x30a] sm:$0x3f]
    %v241 = vld [vmem:[%s0 + $0x310] sm:$0xff]
    %v242 = vld [vmem:[%s0 + $0x318] sm:$0x3f]
    %v243 = vld [vmem:[%s0 + $0x31e] sm:$0xff]
    %v244 = vld [vmem:[%s0 + $0x326] sm:$0x3f]
    %v245 = vld [vmem:[%s0 + $0x32c] sm:$0xff]
    %v246 = vld [vmem:[%s0 + $0x334] sm:$0x3f]
    %v247 = vld [vmem:[%s0 + $0x33a] sm:$0xff]
    %v248 = vld [vmem:[%s0 + $0x342] sm:$0x3f]
    %v249 = vld [vmem:[%s0 + $0x348] sm:$0xff]
    %v250 = vld [vmem:[%s0 + $0x350] sm:$0x3f]
    %v251 = vld [vmem:[%s0 + $0x356] sm:$0xff]
    %v252 = vld [vmem:[%s0 + $0x35e] sm:$0x3f]
    %v253 = vld [vmem:[%s0 + $0x364] sm:$0xff]
    %v254 = vld [vmem:[%s0 + $0x36c] sm:$0x3f]
    %v255 = vld [vmem:[%s0 + $0x372] sm:$0xff]
    %v256 = vld [vmem:[%s0 + $0x37a] sm:$0x3f]
    %385 = vst [vmem:[#allocation1] ss:$4 sm:$0xff] %v129
    %s386 = scalar_lea.vmem [#allocation1], 1
    %387 = vst [vmem:[%s386] ss:$4 sm:$0xff] %v131
    %s388 = scalar_lea.vmem [#allocation1], 2
    %389 = vst [vmem:[%s388] ss:$4 sm:$0xff] %v133
    %s390 = scalar_lea.vmem [#allocation1], 3
    %391 = vst [vmem:[%s390] ss:$4 sm:$0xff] %v135
    %s392 = scalar_lea.vmem [#allocation1], 32
    %393 = vst [vmem:[%s392] ss:$4 sm:$0xff] %v130
    %s394 = scalar_lea.vmem [#allocation1], 33
    %395 = vst [vmem:[%s394] ss:$4 sm:$0xff] %v132
    %s396 = scalar_lea.vmem [#allocation1], 34
    %397 = vst [vmem:[%s396] ss:$4 sm:$0xff] %v134
    %s398 = scalar_lea.vmem [#allocation1], 35
    %399 = vst [vmem:[%s398] ss:$4 sm:$0xff] %v136
    %v400 = vld.sshfl [vmem:[#allocation1] sm:$0xff pattern:$0x73625140]
    %v401 = vld.sshfl [vmem:[#allocation1 + $0x8] sm:$0xff pattern:$0x73625140]
    %v402 = vld.sshfl [vmem:[#allocation1 + $0x10] sm:$0xff pattern:$0x73625140]
    %v403 = vld.sshfl [vmem:[#allocation1 + $0x18] sm:$0xff pattern:$0x73625140]
    %v404 = vld.sshfl [vmem:[#allocation1 + $0x20] sm:$0xff pattern:$0x73625140]
    %v405 = vld.sshfl [vmem:[#allocation1 + $0x28] sm:$0xff pattern:$0x73625140]
    %v406 = vld.sshfl [vmem:[#allocation1 + $0x30] sm:$0xff pattern:$0x73625140]
    %407 = vst [vmem:[#allocation1] ss:$4 sm:$0xff] %v137
    %408 = vst [vmem:[%s386] ss:$4 sm:$0xff] %v139
    %409 = vst [vmem:[%s388] ss:$4 sm:$0xff] %v141
    %410 = vst [vmem:[%s390] ss:$4 sm:$0xff] %v143
    %411 = vst [vmem:[%s392] ss:$4 sm:$0xff] %v138
    %412 = vst [vmem:[%s394] ss:$4 sm:$0xff] %v140
    %413 = vst [vmem:[%s396] ss:$4 sm:$0xff] %v142
    %414 = vst [vmem:[%s398] ss:$4 sm:$0xff] %v144
    %v415 = vld.sshfl [vmem:[#allocation1] sm:$0xff pattern:$0x73625140]
    %v416 = vld.sshfl [vmem:[#allocation1 + $0x8] sm:$0xff pattern:$0x73625140]
    %v417 = vld.sshfl [vmem:[#allocation1 + $0x10] sm:$0xff pattern:$0x73625140]
    %v418 = vld.sshfl [vmem:[#allocation1 + $0x18] sm:$0xff pattern:$0x73625140]
    %v419 = vld.sshfl [vmem:[#allocation1 + $0x20] sm:$0xff pattern:$0x73625140]
    %v420 = vld.sshfl [vmem:[#allocation1 + $0x28] sm:$0xff pattern:$0x73625140]
    %v421 = vld.sshfl [vmem:[#allocation1 + $0x30] sm:$0xff pattern:$0x73625140]
    %422 = vst [vmem:[#allocation1] ss:$4 sm:$0xff] %v145
    %423 = vst [vmem:[%s386] ss:$4 sm:$0xff] %v147
    %424 = vst [vmem:[%s388] ss:$4 sm:$0xff] %v149
    %425 = vst [vmem:[%s390] ss:$4 sm:$0xff] %v151
    %426 = vst [vmem:[%s392] ss:$4 sm:$0xff] %v146
    %427 = vst [vmem:[%s394] ss:$4 sm:$0xff] %v148
    %428 = vst [vmem:[%s396] ss:$4 sm:$0xff] %v150
    %429 = vst [vmem:[%s398] ss:$4 sm:$0xff] %v152
    %v430 = vld.sshfl [vmem:[#allocation1] sm:$0xff pattern:$0x73625140]
    %v431 = vld.sshfl [vmem:[#allocation1 + $0x8] sm:$0xff pattern:$0x73625140]
    %v432 = vld.sshfl [vmem:[#allocation1 + $0x10] sm:$0xff pattern:$0x73625140]
    %v433 = vld.sshfl [vmem:[#allocation1 + $0x18] sm:$0xff pattern:$0x73625140]
    %v434 = vld.sshfl [vmem:[#allocation1 + $0x20] sm:$0xff pattern:$0x73625140]
    %v435 = vld.sshfl [vmem:[#allocation1 + $0x28] sm:$0xff pattern:$0x73625140]
    %v436 = vld.sshfl [vmem:[#allocation1 + $0x30] sm:$0xff pattern:$0x73625140]
    %437 = vst [vmem:[#allocation1] ss:$4 sm:$0xff] %v153
    %438 = vst [vmem:[%s386] ss:$4 sm:$0xff] %v155
    %439 = vst [vmem:[%s388] ss:$4 sm:$0xff] %v157
    %440 = vst [vmem:[%s390] ss:$4 sm:$0xff] %v159
    %441 = vst [vmem:[%s392] ss:$4 sm:$0xff] %v154
    %442 = vst [vmem:[%s394] ss:$4 sm:$0xff] %v156
    %443 = vst [vmem:[%s396] ss:$4 sm:$0xff] %v158
    %444 = vst [vmem:[%s398] ss:$4 sm:$0xff] %v160
    %v445 = vld.sshfl [vmem:[#allocation1] sm:$0xff pattern:$0x73625140]
    %v446 = vld.sshfl [vmem:[#allocation1 + $0x8] sm:$0xff pattern:$0x73625140]
    %v447 = vld.sshfl [vmem:[#allocation1 + $0x10] sm:$0xff pattern:$0x73625140]
    %v448 = vld.sshfl [vmem:[#allocation1 + $0x18] sm:$0xff pattern:$0x73625140]
    %v449 = vld.sshfl [vmem:[#allocation1 + $0x20] sm:$0xff pattern:$0x73625140]
    %v450 = vld.sshfl [vmem:[#allocation1 + $0x28] sm:$0xff pattern:$0x73625140]
    %v451 = vld.sshfl [vmem:[#allocation1 + $0x30] sm:$0xff pattern:$0x73625140]
    %452 = vst [vmem:[#allocation1] ss:$4 sm:$0xff] %v161
    %453 = vst [vmem:[%s386] ss:$4 sm:$0xff] %v163
    %454 = vst [vmem:[%s388] ss:$4 sm:$0xff] %v165
    %455 = vst [vmem:[%s390] ss:$4 sm:$0xff] %v167
    %456 = vst [vmem:[%s392] ss:$4 sm:$0xff] %v162
    %457 = vst [vmem:[%s394] ss:$4 sm:$0xff] %v164
    %458 = vst [vmem:[%s396] ss:$4 sm:$0xff] %v166
    %459 = vst [vmem:[%s398] ss:$4 sm:$0xff] %v168
    %v460 = vld.sshfl [vmem:[#allocation1] sm:$0xff pattern:$0x73625140]
    %v461 = vld.sshfl [vmem:[#allocation1 + $0x8] sm:$0xff pattern:$0x73625140]
    %v462 = vld.sshfl [vmem:[#allocation1 + $0x10] sm:$0xff pattern:$0x73625140]
    %v463 = vld.sshfl [vmem:[#allocation1 + $0x18] sm:$0xff pattern:$0x73625140]
    %v464 = vld.sshfl [vmem:[#allocation1 + $0x20] sm:$0xff pattern:$0x73625140]
    %v465 = vld.sshfl [vmem:[#allocation1 + $0x28] sm:$0xff pattern:$0x73625140]
    %v466 = vld.sshfl [vmem:[#allocation1 + $0x30] sm:$0xff pattern:$0x73625140]
    %467 = vst [vmem:[#allocation1] ss:$4 sm:$0xff] %v169
    %468 = vst [vmem:[%s386] ss:$4 sm:$0xff] %v171
    %469 = vst [vmem:[%s388] ss:$4 sm:$0xff] %v173
    %470 = vst [vmem:[%s390] ss:$4 sm:$0xff] %v175
    %471 = vst [vmem:[%s392] ss:$4 sm:$0xff] %v170
    %472 = vst [vmem:[%s394] ss:$4 sm:$0xff] %v172
    %473 = vst [vmem:[%s396] ss:$4 sm:$0xff] %v174
    %474 = vst [vmem:[%s398] ss:$4 sm:$0xff] %v176
    %v475 = vld.sshfl [vmem:[#allocation1] sm:$0xff pattern:$0x73625140]
    %v476 = vld.sshfl [vmem:[#allocation1 + $0x8] sm:$0xff pattern:$0x73625140]
    %v477 = vld.sshfl [vmem:[#allocation1 + $0x10] sm:$0xff pattern:$0x73625140]
    %v478 = vld.sshfl [vmem:[#allocation1 + $0x18] sm:$0xff pattern:$0x73625140]
    %v479 = vld.sshfl [vmem:[#allocation1 + $0x20] sm:$0xff pattern:$0x73625140]
    %v480 = vld.sshfl [vmem:[#allocation1 + $0x28] sm:$0xff pattern:$0x73625140]
    %v481 = vld.sshfl [vmem:[#allocation1 + $0x30] sm:$0xff pattern:$0x73625140]
    %482 = vst [vmem:[#allocation1] ss:$4 sm:$0xff] %v177
    %483 = vst [vmem:[%s386] ss:$4 sm:$0xff] %v179
    %484 = vst [vmem:[%s388] ss:$4 sm:$0xff] %v181
    %485 = vst [vmem:[%s390] ss:$4 sm:$0xff] %v183
    %486 = vst [vmem:[%s392] ss:$4 sm:$0xff] %v178
    %487 = vst [vmem:[%s394] ss:$4 sm:$0xff] %v180
    %488 = vst [vmem:[%s396] ss:$4 sm:$0xff] %v182
    %489 = vst [vmem:[%s398] ss:$4 sm:$0xff] %v184
    %v490 = vld.sshfl [vmem:[#allocation1] sm:$0xff pattern:$0x73625140]
    %v491 = vld.sshfl [vmem:[#allocation1 + $0x8] sm:$0xff pattern:$0x73625140]
    %v492 = vld.sshfl [vmem:[#allocation1 + $0x10] sm:$0xff pattern:$0x73625140]
    %v493 = vld.sshfl [vmem:[#allocation1 + $0x18] sm:$0xff pattern:$0x73625140]
    %v494 = vld.sshfl [vmem:[#allocation1 + $0x20] sm:$0xff pattern:$0x73625140]
    %v495 = vld.sshfl [vmem:[#allocation1 + $0x28] sm:$0xff pattern:$0x73625140]
    %v496 = vld.sshfl [vmem:[#allocation1 + $0x30] sm:$0xff pattern:$0x73625140]
    %497 = vst [vmem:[#allocation1] ss:$4 sm:$0xff] %v185
    %498 = vst [vmem:[%s386] ss:$4 sm:$0xff] %v187
    %499 = vst [vmem:[%s388] ss:$4 sm:$0xff] %v189
    %500 = vst [vmem:[%s390] ss:$4 sm:$0xff] %v191
    %501 = vst [vmem:[%s392] ss:$4 sm:$0xff] %v186
    %502 = vst [vmem:[%s394] ss:$4 sm:$0xff] %v188
    %503 = vst [vmem:[%s396] ss:$4 sm:$0xff] %v190
    %504 = vst [vmem:[%s398] ss:$4 sm:$0xff] %v192
    %v505 = vld.sshfl [vmem:[#allocation1] sm:$0xff pattern:$0x73625140]
    %v506 = vld.sshfl [vmem:[#allocation1 + $0x8] sm:$0xff pattern:$0x73625140]
    %v507 = vld.sshfl [vmem:[#allocation1 + $0x10] sm:$0xff pattern:$0x73625140]
    %v508 = vld.sshfl [vmem:[#allocation1 + $0x18] sm:$0xff pattern:$0x73625140]
    %v509 = vld.sshfl [vmem:[#allocation1 + $0x20] sm:$0xff pattern:$0x73625140]
    %v510 = vld.sshfl [vmem:[#allocation1 + $0x28] sm:$0xff pattern:$0x73625140]
    %v511 = vld.sshfl [vmem:[#allocation1 + $0x30] sm:$0xff pattern:$0x73625140]
    %512 = vst [vmem:[#allocation1] ss:$4 sm:$0xff] %v193
    %513 = vst [vmem:[%s386] ss:$4 sm:$0xff] %v195
    %514 = vst [vmem:[%s388] ss:$4 sm:$0xff] %v197
    %515 = vst [vmem:[%s390] ss:$4 sm:$0xff] %v199
    %516 = vst [vmem:[%s392] ss:$4 sm:$0xff] %v194
    %517 = vst [vmem:[%s394] ss:$4 sm:$0xff] %v196
    %518 = vst [vmem:[%s396] ss:$4 sm:$0xff] %v198
    %519 = vst [vmem:[%s398] ss:$4 sm:$0xff] %v200
    %v520 = vld.sshfl [vmem:[#allocation1] sm:$0xff pattern:$0x73625140]
    %v521 = vld.sshfl [vmem:[#allocation1 + $0x8] sm:$0xff pattern:$0x73625140]
    %v522 = vld.sshfl [vmem:[#allocation1 + $0x10] sm:$0xff pattern:$0x73625140]
    %v523 = vld.sshfl [vmem:[#allocation1 + $0x18] sm:$0xff pattern:$0x73625140]
    %v524 = vld.sshfl [vmem:[#allocation1 + $0x20] sm:$0xff pattern:$0x73625140]
    %v525 = vld.sshfl [vmem:[#allocation1 + $0x28] sm:$0xff pattern:$0x73625140]
    %v526 = vld.sshfl [vmem:[#allocation1 + $0x30] sm:$0xff pattern:$0x73625140]
    %527 = vst [vmem:[#allocation1] ss:$4 sm:$0xff] %v201
    %528 = vst [vmem:[%s386] ss:$4 sm:$0xff] %v203
    %529 = vst [vmem:[%s388] ss:$4 sm:$0xff] %v205
    %530 = vst [vmem:[%s390] ss:$4 sm:$0xff] %v207
    %531 = vst [vmem:[%s392] ss:$4 sm:$0xff] %v202
    %532 = vst [vmem:[%s394] ss:$4 sm:$0xff] %v204
    %533 = vst [vmem:[%s396] ss:$4 sm:$0xff] %v206
    %534 = vst [vmem:[%s398] ss:$4 sm:$0xff] %v208
    %v535 = vld.sshfl [vmem:[#allocation1] sm:$0xff pattern:$0x73625140]
    %v536 = vld.sshfl [vmem:[#allocation1 + $0x8] sm:$0xff pattern:$0x73625140]
    %v537 = vld.sshfl [vmem:[#allocation1 + $0x10] sm:$0xff pattern:$0x73625140]
    %v538 = vld.sshfl [vmem:[#allocation1 + $0x18] sm:$0xff pattern:$0x73625140]
    %v539 = vld.sshfl [vmem:[#allocation1 + $0x20] sm:$0xff pattern:$0x73625140]
    %v540 = vld.sshfl [vmem:[#allocation1 + $0x28] sm:$0xff pattern:$0x73625140]
    %v541 = vld.sshfl [vmem:[#allocation1 + $0x30] sm:$0xff pattern:$0x73625140]
    %542 = vst [vmem:[#allocation1] ss:$4 sm:$0xff] %v209
    %543 = vst [vmem:[%s386] ss:$4 sm:$0xff] %v211
    %544 = vst [vmem:[%s388] ss:$4 sm:$0xff] %v213
    %545 = vst [vmem:[%s390] ss:$4 sm:$0xff] %v215
    %546 = vst [vmem:[%s392] ss:$4 sm:$0xff] %v210
    %547 = vst [vmem:[%s394] ss:$4 sm:$0xff] %v212
    %548 = vst [vmem:[%s396] ss:$4 sm:$0xff] %v214
    %549 = vst [vmem:[%s398] ss:$4 sm:$0xff] %v216
    %v550 = vld.sshfl [vmem:[#allocation1] sm:$0xff pattern:$0x73625140]
    %v551 = vld.sshfl [vmem:[#allocation1 + $0x8] sm:$0xff pattern:$0x73625140]
    %v552 = vld.sshfl [vmem:[#allocation1 + $0x10] sm:$0xff pattern:$0x73625140]
    %v553 = vld.sshfl [vmem:[#allocation1 + $0x18] sm:$0xff pattern:$0x73625140]
    %v554 = vld.sshfl [vmem:[#allocation1 + $0x20] sm:$0xff pattern:$0x73625140]
    %v555 = vld.sshfl [vmem:[#allocation1 + $0x28] sm:$0xff pattern:$0x73625140]
    %v556 = vld.sshfl [vmem:[#allocation1 + $0x30] sm:$0xff pattern:$0x73625140]
    %557 = vst [vmem:[#allocation1] ss:$4 sm:$0xff] %v217
    %558 = vst [vmem:[%s386] ss:$4 sm:$0xff] %v219
    %559 = vst [vmem:[%s388] ss:$4 sm:$0xff] %v221
    %560 = vst [vmem:[%s390] ss:$4 sm:$0xff] %v223
    %561 = vst [vmem:[%s392] ss:$4 sm:$0xff] %v218
    %562 = vst [vmem:[%s394] ss:$4 sm:$0xff] %v220
    %563 = vst [vmem:[%s396] ss:$4 sm:$0xff] %v222
    %564 = vst [vmem:[%s398] ss:$4 sm:$0xff] %v224
    %v565 = vld.sshfl [vmem:[#allocation1] sm:$0xff pattern:$0x73625140]
    %v566 = vld.sshfl [vmem:[#allocation1 + $0x8] sm:$0xff pattern:$0x73625140]
    %v567 = vld.sshfl [vmem:[#allocation1 + $0x10] sm:$0xff pattern:$0x73625140]
    %v568 = vld.sshfl [vmem:[#allocation1 + $0x18] sm:$0xff pattern:$0x73625140]
    %v569 = vld.sshfl [vmem:[#allocation1 + $0x20] sm:$0xff pattern:$0x73625140]
    %v570 = vld.sshfl [vmem:[#allocation1 + $0x28] sm:$0xff pattern:$0x73625140]
    %v571 = vld.sshfl [vmem:[#allocation1 + $0x30] sm:$0xff pattern:$0x73625140]
    %572 = vst [vmem:[#allocation1] ss:$4 sm:$0xff] %v225
    %573 = vst [vmem:[%s386] ss:$4 sm:$0xff] %v227
    %574 = vst [vmem:[%s388] ss:$4 sm:$0xff] %v229
    %575 = vst [vmem:[%s390] ss:$4 sm:$0xff] %v231
    %576 = vst [vmem:[%s392] ss:$4 sm:$0xff] %v226
    %577 = vst [vmem:[%s394] ss:$4 sm:$0xff] %v228
    %578 = vst [vmem:[%s396] ss:$4 sm:$0xff] %v230
    %579 = vst [vmem:[%s398] ss:$4 sm:$0xff] %v232
    %v580 = vld.sshfl [vmem:[#allocation1] sm:$0xff pattern:$0x73625140]
    %v581 = vld.sshfl [vmem:[#allocation1 + $0x8] sm:$0xff pattern:$0x73625140]
    %v582 = vld.sshfl [vmem:[#allocation1 + $0x10] sm:$0xff pattern:$0x73625140]
    %v583 = vld.sshfl [vmem:[#allocation1 + $0x18] sm:$0xff pattern:$0x73625140]
    %v584 = vld.sshfl [vmem:[#allocation1 + $0x20] sm:$0xff pattern:$0x73625140]
    %v585 = vld.sshfl [vmem:[#allocation1 + $0x28] sm:$0xff pattern:$0x73625140]
    %v586 = vld.sshfl [vmem:[#allocation1 + $0x30] sm:$0xff pattern:$0x73625140]
    %587 = vst [vmem:[#allocation1] ss:$4 sm:$0xff] %v233
    %588 = vst [vmem:[%s386] ss:$4 sm:$0xff] %v235
    %589 = vst [vmem:[%s388] ss:$4 sm:$0xff] %v237
    %590 = vst [vmem:[%s390] ss:$4 sm:$0xff] %v239
    %591 = vst [vmem:[%s392] ss:$4 sm:$0xff] %v234
    %592 = vst [vmem:[%s394] ss:$4 sm:$0xff] %v236
    %593 = vst [vmem:[%s396] ss:$4 sm:$0xff] %v238
    %594 = vst [vmem:[%s398] ss:$4 sm:$0xff] %v240
    %v595 = vld.sshfl [vmem:[#allocation1] sm:$0xff pattern:$0x73625140]
    %v596 = vld.sshfl [vmem:[#allocation1 + $0x8] sm:$0xff pattern:$0x73625140]
    %v597 = vld.sshfl [vmem:[#allocation1 + $0x10] sm:$0xff pattern:$0x73625140]
    %v598 = vld.sshfl [vmem:[#allocation1 + $0x18] sm:$0xff pattern:$0x73625140]
    %v599 = vld.sshfl [vmem:[#allocation1 + $0x20] sm:$0xff pattern:$0x73625140]
    %v600 = vld.sshfl [vmem:[#allocation1 + $0x28] sm:$0xff pattern:$0x73625140]
    %v601 = vld.sshfl [vmem:[#allocation1 + $0x30] sm:$0xff pattern:$0x73625140]
    %602 = vst [vmem:[#allocation1] ss:$4 sm:$0xff] %v241
    %603 = vst [vmem:[%s386] ss:$4 sm:$0xff] %v243
    %604 = vst [vmem:[%s388] ss:$4 sm:$0xff] %v245
    %605 = vst [vmem:[%s390] ss:$4 sm:$0xff] %v247
    %606 = vst [vmem:[%s392] ss:$4 sm:$0xff] %v242
    %607 = vst [vmem:[%s394] ss:$4 sm:$0xff] %v244
    %608 = vst [vmem:[%s396] ss:$4 sm:$0xff] %v246
    %609 = vst [vmem:[%s398] ss:$4 sm:$0xff] %v248
    %v610 = vld.sshfl [vmem:[#allocation1] sm:$0xff pattern:$0x73625140]
    %v611 = vld.sshfl [vmem:[#allocation1 + $0x8] sm:$0xff pattern:$0x73625140]
    %v612 = vld.sshfl [vmem:[#allocation1 + $0x10] sm:$0xff pattern:$0x73625140]
    %v613 = vld.sshfl [vmem:[#allocation1 + $0x18] sm:$0xff pattern:$0x73625140]
    %v614 = vld.sshfl [vmem:[#allocation1 + $0x20] sm:$0xff pattern:$0x73625140]
    %v615 = vld.sshfl [vmem:[#allocation1 + $0x28] sm:$0xff pattern:$0x73625140]
    %v616 = vld.sshfl [vmem:[#allocation1 + $0x30] sm:$0xff pattern:$0x73625140]
    %617 = vst [vmem:[#allocation1] ss:$4 sm:$0xff] %v249
    %618 = vst [vmem:[%s386] ss:$4 sm:$0xff] %v251
    %619 = vst [vmem:[%s388] ss:$4 sm:$0xff] %v253
    %620 = vst [vmem:[%s390] ss:$4 sm:$0xff] %v255
    %621 = vst [vmem:[%s392] ss:$4 sm:$0xff] %v250
    %622 = vst [vmem:[%s394] ss:$4 sm:$0xff] %v252
    %623 = vst [vmem:[%s396] ss:$4 sm:$0xff] %v254
    %624 = vst [vmem:[%s398] ss:$4 sm:$0xff] %v256
    %v625 = vld.sshfl [vmem:[#allocation1] sm:$0xff pattern:$0x73625140]
    %v626 = vld.sshfl [vmem:[#allocation1 + $0x8] sm:$0xff pattern:$0x73625140]
    %v627 = vld.sshfl [vmem:[#allocation1 + $0x10] sm:$0xff pattern:$0x73625140]
    %v628 = vld.sshfl [vmem:[#allocation1 + $0x18] sm:$0xff pattern:$0x73625140]
    %v629 = vld.sshfl [vmem:[#allocation1 + $0x20] sm:$0xff pattern:$0x73625140]
    %v630 = vld.sshfl [vmem:[#allocation1 + $0x28] sm:$0xff pattern:$0x73625140]
    %v631 = vld.sshfl [vmem:[#allocation1 + $0x30] sm:$0xff pattern:$0x73625140]
    %v744 = vpack.c.bf16 %v401, %v400
    %v745 = vpack.c.bf16 %v403, %v402
    %v746 = vpack.c.bf16 %v405, %v404
    %v747 = vpack.c.bf16 %v406, %v406
    %v748 = vpack.c.bf16 %v416, %v415
    %v749 = vpack.c.bf16 %v418, %v417
    %v750 = vpack.c.bf16 %v420, %v419
    %v751 = vpack.c.bf16 %v421, %v421
    %v752 = vpack.c.bf16 %v431, %v430
    %v753 = vpack.c.bf16 %v433, %v432
    %v754 = vpack.c.bf16 %v435, %v434
    %v755 = vpack.c.bf16 %v436, %v436
    %v756 = vpack.c.bf16 %v446, %v445
    %v757 = vpack.c.bf16 %v448, %v447
    %v758 = vpack.c.bf16 %v450, %v449
    %v759 = vpack.c.bf16 %v451, %v451
    %v760 = vpack.c.bf16 %v461, %v460
    %v761 = vpack.c.bf16 %v463, %v462
    %v762 = vpack.c.bf16 %v465, %v464
    %v763 = vpack.c.bf16 %v466, %v466
    %v764 = vpack.c.bf16 %v476, %v475
    %v765 = vpack.c.bf16 %v478, %v477
    %v766 = vpack.c.bf16 %v480, %v479
    %v767 = vpack.c.bf16 %v481, %v481
    %v768 = vpack.c.bf16 %v491, %v490
    %v769 = vpack.c.bf16 %v493, %v492
    %v770 = vpack.c.bf16 %v495, %v494
    %v771 = vpack.c.bf16 %v496, %v496
    %v772 = vpack.c.bf16 %v506, %v505
    %v773 = vpack.c.bf16 %v508, %v507
    %v774 = vpack.c.bf16 %v510, %v509
    %v775 = vpack.c.bf16 %v511, %v511
    %v776 = vpack.c.bf16 %v521, %v520
    %v777 = vpack.c.bf16 %v523, %v522
    %v778 = vpack.c.bf16 %v525, %v524
    %v779 = vpack.c.bf16 %v526, %v526
    %v780 = vpack.c.bf16 %v536, %v535
    %v781 = vpack.c.bf16 %v538, %v537
    %v782 = vpack.c.bf16 %v540, %v539
    %v783 = vpack.c.bf16 %v541, %v541
    %v784 = vpack.c.bf16 %v551, %v550
    %v785 = vpack.c.bf16 %v553, %v552
    %v786 = vpack.c.bf16 %v555, %v554
    %v787 = vpack.c.bf16 %v556, %v556
    %v788 = vpack.c.bf16 %v566, %v565
    %v789 = vpack.c.bf16 %v568, %v567
    %v790 = vpack.c.bf16 %v570, %v569
    %v791 = vpack.c.bf16 %v571, %v571
    %v792 = vpack.c.bf16 %v581, %v580
    %v793 = vpack.c.bf16 %v583, %v582
    %v794 = vpack.c.bf16 %v585, %v584
    %v795 = vpack.c.bf16 %v586, %v586
    %v796 = vpack.c.bf16 %v596, %v595
    %v797 = vpack.c.bf16 %v598, %v597
    %v798 = vpack.c.bf16 %v600, %v599
    %v799 = vpack.c.bf16 %v601, %v601
    %v800 = vpack.c.bf16 %v611, %v610
    %v801 = vpack.c.bf16 %v613, %v612
    %v802 = vpack.c.bf16 %v615, %v614
    %v803 = vpack.c.bf16 %v616, %v616
    %v804 = vpack.c.bf16 %v626, %v625
    %v805 = vpack.c.bf16 %v628, %v627
    %v806 = vpack.c.bf16 %v630, %v629
    %v807 = vpack.c.bf16 %v631, %v631
    %808 = vst [vmem:[#allocation2] sm:$0xff] %v744
    %809 = vst [vmem:[#allocation2 + $0x8] sm:$0xff] %v745
    %810 = vst [vmem:[#allocation2 + $0x10] sm:$0xff] %v746
    %vm811 = vcmask 125952
    %812 = vst.msk [vmem:[#allocation2 + $0x18] sm:$0xf] %vm811, %v747
    %813 = vst [vmem:[#allocation2 + $0x1c] sm:$0xff] %v748
    %814 = vst [vmem:[#allocation2 + $0x24] sm:$0xff] %v749
    %815 = vst [vmem:[#allocation2 + $0x2c] sm:$0xff] %v750
    %816 = vst.msk [vmem:[#allocation2 + $0x34] sm:$0xf] %vm811, %v751
    %817 = vst [vmem:[#allocation2 + $0x38] sm:$0xff] %v752
    %818 = vst [vmem:[#allocation2 + $0x40] sm:$0xff] %v753
    %819 = vst [vmem:[#allocation2 + $0x48] sm:$0xff] %v754
    %820 = vst.msk [vmem:[#allocation2 + $0x50] sm:$0xf] %vm811, %v755
    %821 = vst [vmem:[#allocation2 + $0x54] sm:$0xff] %v756
    %822 = vst [vmem:[#allocation2 + $0x5c] sm:$0xff] %v757
    %823 = vst [vmem:[#allocation2 + $0x64] sm:$0xff] %v758
    %824 = vst.msk [vmem:[#allocation2 + $0x6c] sm:$0xf] %vm811, %v759
    %825 = vst [vmem:[#allocation2 + $0x70] sm:$0xff] %v760
    %826 = vst [vmem:[#allocation2 + $0x78] sm:$0xff] %v761
    %827 = vst [vmem:[#allocation2 + $0x80] sm:$0xff] %v762
    %828 = vst.msk [vmem:[#allocation2 + $0x88] sm:$0xf] %vm811, %v763
    %829 = vst [vmem:[#allocation2 + $0x8c] sm:$0xff] %v764
    %830 = vst [vmem:[#allocation2 + $0x94] sm:$0xff] %v765
    %831 = vst [vmem:[#allocation2 + $0x9c] sm:$0xff] %v766
    %832 = vst.msk [vmem:[#allocation2 + $0xa4] sm:$0xf] %vm811, %v767
    %833 = vst [vmem:[#allocation2 + $0xa8] sm:$0xff] %v768
    %834 = vst [vmem:[#allocation2 + $0xb0] sm:$0xff] %v769
    %835 = vst [vmem:[#allocation2 + $0xb8] sm:$0xff] %v770
    %836 = vst.msk [vmem:[#allocation2 + $0xc0] sm:$0xf] %vm811, %v771
    %837 = vst [vmem:[#allocation2 + $0xc4] sm:$0xff] %v772
    %838 = vst [vmem:[#allocation2 + $0xcc] sm:$0xff] %v773
    %839 = vst [vmem:[#allocation2 + $0xd4] sm:$0xff] %v774
    %840 = vst.msk [vmem:[#allocation2 + $0xdc] sm:$0xf] %vm811, %v775
    %841 = vst [vmem:[#allocation2 + $0xe0] sm:$0xff] %v776
    %842 = vst [vmem:[#allocation2 + $0xe8] sm:$0xff] %v777
    %843 = vst [vmem:[#allocation2 + $0xf0] sm:$0xff] %v778
    %844 = vst.msk [vmem:[#allocation2 + $0xf8] sm:$0xf] %vm811, %v779
    %845 = vst [vmem:[#allocation2 + $0xfc] sm:$0xff] %v780
    %846 = vst [vmem:[#allocation2 + $0x104] sm:$0xff] %v781
    %847 = vst [vmem:[#allocation2 + $0x10c] sm:$0xff] %v782
    %848 = vst.msk [vmem:[#allocation2 + $0x114] sm:$0xf] %vm811, %v783
    %849 = vst [vmem:[#allocation2 + $0x118] sm:$0xff] %v784
    %850 = vst [vmem:[#allocation2 + $0x120] sm:$0xff] %v785
    %851 = vst [vmem:[#allocation2 + $0x128] sm:$0xff] %v786
    %852 = vst.msk [vmem:[#allocation2 + $0x130] sm:$0xf] %vm811, %v787
    %853 = vst [vmem:[#allocation2 + $0x134] sm:$0xff] %v788
    %854 = vst [vmem:[#allocation2 + $0x13c] sm:$0xff] %v789
    %855 = vst [vmem:[#allocation2 + $0x144] sm:$0xff] %v790
    %856 = vst.msk [vmem:[#allocation2 + $0x14c] sm:$0xf] %vm811, %v791
    %857 = vst [vmem:[#allocation2 + $0x150] sm:$0xff] %v792
    %858 = vst [vmem:[#allocation2 + $0x158] sm:$0xff] %v793
    %859 = vst [vmem:[#allocation2 + $0x160] sm:$0xff] %v794
    %860 = vst.msk [vmem:[#allocation2 + $0x168] sm:$0xf] %vm811, %v795
    %861 = vst [vmem:[#allocation2 + $0x16c] sm:$0xff] %v796
    %862 = vst [vmem:[#allocation2 + $0x174] sm:$0xff] %v797
    %863 = vst [vmem:[#allocation2 + $0x17c] sm:$0xff] %v798
    %864 = vst.msk [vmem:[#allocation2 + $0x184] sm:$0xf] %vm811, %v799
    %865 = vst [vmem:[#allocation2 + $0x188] sm:$0xff] %v800
    %866 = vst [vmem:[#allocation2 + $0x190] sm:$0xff] %v801
    %867 = vst [vmem:[#allocation2 + $0x198] sm:$0xff] %v802
    %868 = vst.msk [vmem:[#allocation2 + $0x1a0] sm:$0xf] %vm811, %v803
    %869 = vst [vmem:[#allocation2 + $0x1a4] sm:$0xff] %v804
    %870 = vst [vmem:[#allocation2 + $0x1ac] sm:$0xff] %v805
    %871 = vst [vmem:[#allocation2 + $0x1b4] sm:$0xff] %v806
    %872 = vst.msk [vmem:[#allocation2 + $0x1bc] sm:$0xf] %vm811, %v807
    %v873 = vld [vmem:[#allocation2] sm:$0xff]
    %v874 = vld [vmem:[#allocation2 + $0x8] sm:$0xff]
    %v875 = vld [vmem:[#allocation2 + $0x10] sm:$0xff]
    %v876 = vld [vmem:[#allocation2 + $0x18] sm:$0xf]
    %v877 = vld [vmem:[#allocation2 + $0x1c] sm:$0xff]
    %v878 = vld [vmem:[#allocation2 + $0x24] sm:$0xff]
    %v879 = vld [vmem:[#allocation2 + $0x2c] sm:$0xff]
    %v880 = vld [vmem:[#allocation2 + $0x34] sm:$0xf]
    %v881 = vld [vmem:[#allocation2 + $0x38] sm:$0xff]
    %v882 = vld [vmem:[#allocation2 + $0x40] sm:$0xff]
    %v883 = vld [vmem:[#allocation2 + $0x48] sm:$0xff]
    %v884 = vld [vmem:[#allocation2 + $0x50] sm:$0xf]
    %v885 = vld [vmem:[#allocation2 + $0x54] sm:$0xff]
    %v886 = vld [vmem:[#allocation2 + $0x5c] sm:$0xff]
    %v887 = vld [vmem:[#allocation2 + $0x64] sm:$0xff]
    %v888 = vld [vmem:[#allocation2 + $0x6c] sm:$0xf]
    %v889 = vld [vmem:[#allocation2 + $0x70] sm:$0xff]
    %v890 = vld [vmem:[#allocation2 + $0x78] sm:$0xff]
    %v891 = vld [vmem:[#allocation2 + $0x80] sm:$0xff]
    %v892 = vld [vmem:[#allocation2 + $0x88] sm:$0xf]
    %v893 = vld [vmem:[#allocation2 + $0x8c] sm:$0xff]
    %v894 = vld [vmem:[#allocation2 + $0x94] sm:$0xff]
    %v895 = vld [vmem:[#allocation2 + $0x9c] sm:$0xff]
    %v896 = vld [vmem:[#allocation2 + $0xa4] sm:$0xf]
    %v897 = vld [vmem:[#allocation2 + $0xa8] sm:$0xff]
    %v898 = vld [vmem:[#allocation2 + $0xb0] sm:$0xff]
    %v899 = vld [vmem:[#allocation2 + $0xb8] sm:$0xff]
    %v900 = vld [vmem:[#allocation2 + $0xc0] sm:$0xf]
    %v901 = vld [vmem:[#allocation2 + $0xc4] sm:$0xff]
    %v902 = vld [vmem:[#allocation2 + $0xcc] sm:$0xff]
    %v903 = vld [vmem:[#allocation2 + $0xd4] sm:$0xff]
    %v904 = vld [vmem:[#allocation2 + $0xdc] sm:$0xf]
    %v905 = vld [vmem:[#allocation2 + $0xe0] sm:$0xff]
    %v906 = vld [vmem:[#allocation2 + $0xe8] sm:$0xff]
    %v907 = vld [vmem:[#allocation2 + $0xf0] sm:$0xff]
    %v908 = vld [vmem:[#allocation2 + $0xf8] sm:$0xf]
    %v909 = vld [vmem:[#allocation2 + $0xfc] sm:$0xff]
    %v910 = vld [vmem:[#allocation2 + $0x104] sm:$0xff]
    %v911 = vld [vmem:[#allocation2 + $0x10c] sm:$0xff]
    %v912 = vld [vmem:[#allocation2 + $0x114] sm:$0xf]
    %v913 = vld [vmem:[#allocation2 + $0x118] sm:$0xff]
    %v914 = vld [vmem:[#allocation2 + $0x120] sm:$0xff]
    %v915 = vld [vmem:[#allocation2 + $0x128] sm:$0xff]
    %v916 = vld [vmem:[#allocation2 + $0x130] sm:$0xf]
    %v917 = vld [vmem:[#allocation2 + $0x134] sm:$0xff]
    %v918 = vld [vmem:[#allocation2 + $0x13c] sm:$0xff]
    %v919 = vld [vmem:[#allocation2 + $0x144] sm:$0xff]
    %v920 = vld [vmem:[#allocation2 + $0x14c] sm:$0xf]
    %v921 = vld [vmem:[#allocation2 + $0x150] sm:$0xff]
    %v922 = vld [vmem:[#allocation2 + $0x158] sm:$0xff]
    %v923 = vld [vmem:[#allocation2 + $0x160] sm:$0xff]
    %v924 = vld [vmem:[#allocation2 + $0x168] sm:$0xf]
    %v925 = vld [vmem:[#allocation2 + $0x16c] sm:$0xff]
    %v926 = vld [vmem:[#allocation2 + $0x174] sm:$0xff]
    %v927 = vld [vmem:[#allocation2 + $0x17c] sm:$0xff]
    %v928 = vld [vmem:[#allocation2 + $0x184] sm:$0xf]
    %v929 = vld [vmem:[#allocation2 + $0x188] sm:$0xff]
    %v930 = vld [vmem:[#allocation2 + $0x190] sm:$0xff]
    %v931 = vld [vmem:[#allocation2 + $0x198] sm:$0xff]
    %v932 = vld [vmem:[#allocation2 + $0x1a0] sm:$0xf]
    %v933 = vld [vmem:[#allocation2 + $0x1a4] sm:$0xff]
    %v934 = vld [vmem:[#allocation2 + $0x1ac] sm:$0xff]
    %v935 = vld [vmem:[#allocation2 + $0x1b4] sm:$0xff]
    %v936 = vld [vmem:[#allocation2 + $0x1bc] sm:$0xf]
    %v937 = vld [vmem:[#allocation3] sm:$0xff]
    %v938 = vld [vmem:[#allocation3 + $0x8] sm:$0xff]
    %v939 = vld [vmem:[#allocation3 + $0x10] sm:$0xff]
    %v940 = vld [vmem:[#allocation3 + $0x18] sm:$0xff]
    %v941 = vld [vmem:[#allocation3 + $0x20] sm:$0xff]
    %v942 = vld [vmem:[#allocation3 + $0x28] sm:$0xff]
    %v943 = vld [vmem:[#allocation3 + $0x30] sm:$0xff]
    %v944 = vld [vmem:[#allocation3 + $0x38] sm:$0xff]
    %v945 = vld [vmem:[#allocation3 + $0x40] sm:$0xff]
    %v946 = vld [vmem:[#allocation3 + $0x48] sm:$0xff]
    %v947 = vld [vmem:[#allocation3 + $0x50] sm:$0xff]
    %v948 = vld [vmem:[#allocation3 + $0x58] sm:$0xff]
    %v949 = vld [vmem:[#allocation3 + $0x60] sm:$0xff]
    %v950 = vld [vmem:[#allocation3 + $0x68] sm:$0xff]
    %v951 = vld [vmem:[#allocation3 + $0x70] sm:$0xff]
    %v952 = vld [vmem:[#allocation3 + $0x78] sm:$0xff]
    %v953 = vld [vmem:[#allocation3 + $0x80] sm:$0xff]
    %v954 = vld [vmem:[#allocation3 + $0x88] sm:$0xff]
    %v955 = vld [vmem:[#allocation3 + $0x90] sm:$0xff]
    %v956 = vld [vmem:[#allocation3 + $0x98] sm:$0xff]
    %v957 = vld [vmem:[#allocation3 + $0xa0] sm:$0xff]
    %v958 = vld [vmem:[#allocation3 + $0xa8] sm:$0xff]
    %v959 = vld [vmem:[#allocation3 + $0xb0] sm:$0xff]
    %v960 = vld [vmem:[#allocation3 + $0xb8] sm:$0xff]
    %v961 = vld [vmem:[#allocation3 + $0xc0] sm:$0xff]
    %v962 = vld [vmem:[#allocation3 + $0xc8] sm:$0xff]
    %v963 = vld [vmem:[#allocation3 + $0xd0] sm:$0xff]
    %v964 = vld [vmem:[#allocation3 + $0xd8] sm:$0xff]
    %v965 = vld [vmem:[#allocation3 + $0xe0] sm:$0xff]
    %v966 = vld [vmem:[#allocation3 + $0xe8] sm:$0xff]
    %v967 = vld [vmem:[#allocation3 + $0xf0] sm:$0xff]
    %v968 = vld [vmem:[#allocation3 + $0xf8] sm:$0xff]
    %v969 = vld [vmem:[#allocation3 + $0x100] sm:$0xff]
    %v970 = vld [vmem:[#allocation3 + $0x108] sm:$0xff]
    %v971 = vld [vmem:[#allocation3 + $0x110] sm:$0xff]
    %v972 = vld [vmem:[#allocation3 + $0x118] sm:$0xff]
    %v973 = vld [vmem:[#allocation3 + $0x120] sm:$0xff]
    %v974 = vld [vmem:[#allocation3 + $0x128] sm:$0xff]
    %v975 = vld [vmem:[#allocation3 + $0x130] sm:$0xff]
    %v976 = vld [vmem:[#allocation3 + $0x138] sm:$0xff]
    %v977 = vld [vmem:[#allocation3 + $0x140] sm:$0xff]
    %v978 = vld [vmem:[#allocation3 + $0x148] sm:$0xff]
    %v979 = vld [vmem:[#allocation3 + $0x150] sm:$0xff]
    %v980 = vld [vmem:[#allocation3 + $0x158] sm:$0xff]
    %v981 = vld [vmem:[#allocation3 + $0x160] sm:$0xff]
    %v982 = vld [vmem:[#allocation3 + $0x168] sm:$0xff]
    %v983 = vld [vmem:[#allocation3 + $0x170] sm:$0xff]
    %v984 = vld [vmem:[#allocation3 + $0x178] sm:$0xff]
    %v985 = vld [vmem:[#allocation3 + $0x180] sm:$0xff]
    %v986 = vld [vmem:[#allocation3 + $0x188] sm:$0xff]
    %v987 = vld [vmem:[#allocation3 + $0x190] sm:$0xff]
    %v988 = vld [vmem:[#allocation3 + $0x198] sm:$0xff]
    %v989 = vld [vmem:[#allocation3 + $0x1a0] sm:$0xff]
    %v990 = vld [vmem:[#allocation3 + $0x1a8] sm:$0xff]
    %v991 = vld [vmem:[#allocation3 + $0x1b0] sm:$0xff]
    %v992 = vld [vmem:[#allocation3 + $0x1b8] sm:$0xff]
    %v993 = vld [vmem:[#allocation3 + $0x1c0] sm:$0xff]
    %v994 = vld [vmem:[#allocation3 + $0x1c8] sm:$0xff]
    %v995 = vld [vmem:[#allocation3 + $0x1d0] sm:$0xff]
    %v996 = vld [vmem:[#allocation3 + $0x1d8] sm:$0xff]
    %v997 = vld [vmem:[#allocation3 + $0x1e0] sm:$0xff]
    %v998 = vld [vmem:[#allocation3 + $0x1e8] sm:$0xff]
    %v999 = vld [vmem:[#allocation3 + $0x1f0] sm:$0xff]
    %v1000 = vld [vmem:[#allocation3 + $0x1f8] sm:$0xff]
    %v1001 = vld [vmem:[#allocation3 + $0x200] sm:$0xff]
    %v1002 = vld [vmem:[#allocation3 + $0x208] sm:$0xff]
    %v1003 = vld [vmem:[#allocation3 + $0x210] sm:$0xff]
    %v1004 = vld [vmem:[#allocation3 + $0x218] sm:$0xff]
    %v1005 = vld [vmem:[#allocation3 + $0x220] sm:$0xff]
    %v1006 = vld [vmem:[#allocation3 + $0x228] sm:$0xff]
    %v1007 = vld [vmem:[#allocation3 + $0x230] sm:$0xff]
    %v1008 = vld [vmem:[#allocation3 + $0x238] sm:$0xff]
    %v1009 = vld [vmem:[#allocation3 + $0x240] sm:$0xff]
    %v1010 = vld [vmem:[#allocation3 + $0x248] sm:$0xff]
    %v1011 = vld [vmem:[#allocation3 + $0x250] sm:$0xff]
    %v1012 = vld [vmem:[#allocation3 + $0x258] sm:$0xff]
    %v1013 = vld [vmem:[#allocation3 + $0x260] sm:$0xff]
    %v1014 = vld [vmem:[#allocation3 + $0x268] sm:$0xff]
    %v1015 = vld [vmem:[#allocation3 + $0x270] sm:$0xff]
    %v1016 = vld [vmem:[#allocation3 + $0x278] sm:$0xff]
    %v1017 = vld [vmem:[#allocation3 + $0x280] sm:$0xff]
    %v1018 = vld [vmem:[#allocation3 + $0x288] sm:$0xff]
    %v1019 = vld [vmem:[#allocation3 + $0x290] sm:$0xff]
    %v1020 = vld [vmem:[#allocation3 + $0x298] sm:$0xff]
    %v1021 = vld [vmem:[#allocation3 + $0x2a0] sm:$0xff]
    %v1022 = vld [vmem:[#allocation3 + $0x2a8] sm:$0xff]
    %v1023 = vld [vmem:[#allocation3 + $0x2b0] sm:$0xff]
    %v1024 = vld [vmem:[#allocation3 + $0x2b8] sm:$0xff]
    %v1025 = vld [vmem:[#allocation3 + $0x2c0] sm:$0xff]
    %v1026 = vld [vmem:[#allocation3 + $0x2c8] sm:$0xff]
    %v1027 = vld [vmem:[#allocation3 + $0x2d0] sm:$0xff]
    %v1028 = vld [vmem:[#allocation3 + $0x2d8] sm:$0xff]
    %v1029 = vld [vmem:[#allocation3 + $0x2e0] sm:$0xff]
    %v1030 = vld [vmem:[#allocation3 + $0x2e8] sm:$0xff]
    %v1031 = vld [vmem:[#allocation3 + $0x2f0] sm:$0xff]
    %v1032 = vld [vmem:[#allocation3 + $0x2f8] sm:$0xff]
    %v1033 = vld [vmem:[#allocation3 + $0x300] sm:$0xff]
    %v1034 = vld [vmem:[#allocation3 + $0x308] sm:$0xff]
    %v1035 = vld [vmem:[#allocation3 + $0x310] sm:$0xff]
    %v1036 = vld [vmem:[#allocation3 + $0x318] sm:$0xff]
    %v1037 = vld [vmem:[#allocation3 + $0x320] sm:$0xff]
    %v1038 = vld [vmem:[#allocation3 + $0x328] sm:$0xff]
    %v1039 = vld [vmem:[#allocation3 + $0x330] sm:$0xff]
    %v1040 = vld [vmem:[#allocation3 + $0x338] sm:$0xff]
    %v1041 = vld [vmem:[#allocation3 + $0x340] sm:$0xff]
    %v1042 = vld [vmem:[#allocation3 + $0x348] sm:$0xff]
    %v1043 = vld [vmem:[#allocation3 + $0x350] sm:$0xff]
    %v1044 = vld [vmem:[#allocation3 + $0x358] sm:$0xff]
    %v1045 = vld [vmem:[#allocation3 + $0x360] sm:$0xff]
    %v1046 = vld [vmem:[#allocation3 + $0x368] sm:$0xff]
    %v1047 = vld [vmem:[#allocation3 + $0x370] sm:$0xff]
    %v1048 = vld [vmem:[#allocation3 + $0x378] sm:$0xff]
    %v1049 = vld [vmem:[#allocation3 + $0x380] sm:$0xff]
    %v1050 = vld [vmem:[#allocation3 + $0x388] sm:$0xff]
    %v1051 = vld [vmem:[#allocation3 + $0x390] sm:$0xff]
    %v1052 = vld [vmem:[#allocation3 + $0x398] sm:$0xff]
    %v1053 = vld [vmem:[#allocation3 + $0x3a0] sm:$0xff]
    %v1054 = vld [vmem:[#allocation3 + $0x3a8] sm:$0xff]
    %v1055 = vld [vmem:[#allocation3 + $0x3b0] sm:$0xff]
    %v1056 = vld [vmem:[#allocation3 + $0x3b8] sm:$0xff]
    %v1057 = vld [vmem:[#allocation3 + $0x3c0] sm:$0xff]
    %v1058 = vld [vmem:[#allocation3 + $0x3c8] sm:$0xff]
    %v1059 = vld [vmem:[#allocation3 + $0x3d0] sm:$0xff]
    %v1060 = vld [vmem:[#allocation3 + $0x3d8] sm:$0xff]
    %v1061 = vld [vmem:[#allocation3 + $0x3e0] sm:$0xff]
    %v1062 = vld [vmem:[#allocation3 + $0x3e8] sm:$0xff]
    %v1063 = vld [vmem:[#allocation3 + $0x3f0] sm:$0xff]
    %v1064 = vld [vmem:[#allocation3 + $0x3f8] sm:$0xff]
    %v1065 = vld [vmem:[#allocation3 + $0x400] sm:$0xff]
    %v1066 = vld [vmem:[#allocation3 + $0x408] sm:$0xff]
    %v1067 = vld [vmem:[#allocation3 + $0x410] sm:$0xff]
    %v1068 = vld [vmem:[#allocation3 + $0x418] sm:$0xff]
    %v1069 = vld [vmem:[#allocation3 + $0x420] sm:$0xff]
    %v1070 = vld [vmem:[#allocation3 + $0x428] sm:$0xff]
    %v1071 = vld [vmem:[#allocation3 + $0x430] sm:$0xff]
    %v1072 = vld [vmem:[#allocation3 + $0x438] sm:$0xff]
    %v1073 = vld [vmem:[#allocation3 + $0x440] sm:$0xff]
    %v1074 = vld [vmem:[#allocation3 + $0x448] sm:$0xff]
    %v1075 = vld [vmem:[#allocation3 + $0x450] sm:$0xff]
    %v1076 = vld [vmem:[#allocation3 + $0x458] sm:$0xff]
    %v1077 = vld [vmem:[#allocation3 + $0x460] sm:$0xff]
    %v1078 = vld [vmem:[#allocation3 + $0x468] sm:$0xff]
    %v1079 = vld [vmem:[#allocation3 + $0x470] sm:$0xff]
    %v1080 = vld [vmem:[#allocation3 + $0x478] sm:$0xff]
    %v1081 = vld [vmem:[#allocation3 + $0x480] sm:$0xff]
    %v1082 = vld [vmem:[#allocation3 + $0x488] sm:$0xff]
    %v1083 = vld [vmem:[#allocation3 + $0x490] sm:$0xff]
    %v1084 = vld [vmem:[#allocation3 + $0x498] sm:$0xff]
    %v1085 = vld [vmem:[#allocation3 + $0x4a0] sm:$0xff]
    %v1086 = vld [vmem:[#allocation3 + $0x4a8] sm:$0xff]
    %v1087 = vld [vmem:[#allocation3 + $0x4b0] sm:$0xff]
    %v1088 = vld [vmem:[#allocation3 + $0x4b8] sm:$0xff]
    %v1089 = vld [vmem:[#allocation3 + $0x4c0] sm:$0xff]
    %v1090 = vld [vmem:[#allocation3 + $0x4c8] sm:$0xff]
    %v1091 = vld [vmem:[#allocation3 + $0x4d0] sm:$0xff]
    %v1092 = vld [vmem:[#allocation3 + $0x4d8] sm:$0xff]
    %v1093 = vld [vmem:[#allocation3 + $0x4e0] sm:$0xff]
    %v1094 = vld [vmem:[#allocation3 + $0x4e8] sm:$0xff]
    %v1095 = vld [vmem:[#allocation3 + $0x4f0] sm:$0xff]
    %v1096 = vld [vmem:[#allocation3 + $0x4f8] sm:$0xff]
    %v1097 = vld [vmem:[#allocation3 + $0x500] sm:$0xff]
    %v1098 = vld [vmem:[#allocation3 + $0x508] sm:$0xff]
    %v1099 = vld [vmem:[#allocation3 + $0x510] sm:$0xff]
    %v1100 = vld [vmem:[#allocation3 + $0x518] sm:$0xff]
    %v1101 = vld [vmem:[#allocation3 + $0x520] sm:$0xff]
    %v1102 = vld [vmem:[#allocation3 + $0x528] sm:$0xff]
    %v1103 = vld [vmem:[#allocation3 + $0x530] sm:$0xff]
    %v1104 = vld [vmem:[#allocation3 + $0x538] sm:$0xff]
    %v1105 = vld [vmem:[#allocation3 + $0x540] sm:$0xff]
    %v1106 = vld [vmem:[#allocation3 + $0x548] sm:$0xff]
    %v1107 = vld [vmem:[#allocation3 + $0x550] sm:$0xff]
    %v1108 = vld [vmem:[#allocation3 + $0x558] sm:$0xff]
    %v1109 = vld [vmem:[#allocation3 + $0x560] sm:$0xff]
    %v1110 = vld [vmem:[#allocation3 + $0x568] sm:$0xff]
    %v1111 = vld [vmem:[#allocation3 + $0x570] sm:$0xff]
    %v1112 = vld [vmem:[#allocation3 + $0x578] sm:$0xff]
    %v1113 = vld [vmem:[#allocation3 + $0x580] sm:$0xff]
    %v1114 = vld [vmem:[#allocation3 + $0x588] sm:$0xff]
    %v1115 = vld [vmem:[#allocation3 + $0x590] sm:$0xff]
    %v1116 = vld [vmem:[#allocation3 + $0x598] sm:$0xff]
    %v1117 = vld [vmem:[#allocation3 + $0x5a0] sm:$0xff]
    %v1118 = vld [vmem:[#allocation3 + $0x5a8] sm:$0xff]
    %v1119 = vld [vmem:[#allocation3 + $0x5b0] sm:$0xff]
    %v1120 = vld [vmem:[#allocation3 + $0x5b8] sm:$0xff]
    %v1121 = vld [vmem:[#allocation3 + $0x5c0] sm:$0xff]
    %v1122 = vld [vmem:[#allocation3 + $0x5c8] sm:$0xff]
    %v1123 = vld [vmem:[#allocation3 + $0x5d0] sm:$0xff]
    %v1124 = vld [vmem:[#allocation3 + $0x5d8] sm:$0xff]
    %v1125 = vld [vmem:[#allocation3 + $0x5e0] sm:$0xff]
    %v1126 = vld [vmem:[#allocation3 + $0x5e8] sm:$0xff]
    %v1127 = vld [vmem:[#allocation3 + $0x5f0] sm:$0xff]
    %v1128 = vld [vmem:[#allocation3 + $0x5f8] sm:$0xff]
    %v1129 = vld [vmem:[#allocation3 + $0x600] sm:$0xff]
    %v1130 = vld [vmem:[#allocation3 + $0x608] sm:$0xff]
    %v1131 = vld [vmem:[#allocation3 + $0x610] sm:$0xff]
    %v1132 = vld [vmem:[#allocation3 + $0x618] sm:$0xff]
    %v1133 = vld [vmem:[#allocation3 + $0x620] sm:$0xff]
    %v1134 = vld [vmem:[#allocation3 + $0x628] sm:$0xff]
    %v1135 = vld [vmem:[#allocation3 + $0x630] sm:$0xff]
    %v1136 = vld [vmem:[#allocation3 + $0x638] sm:$0xff]
    %v1137 = vld [vmem:[#allocation3 + $0x640] sm:$0xff]
    %v1138 = vld [vmem:[#allocation3 + $0x648] sm:$0xff]
    %v1139 = vld [vmem:[#allocation3 + $0x650] sm:$0xff]
    %v1140 = vld [vmem:[#allocation3 + $0x658] sm:$0xff]
    %v1141 = vld [vmem:[#allocation3 + $0x660] sm:$0xff]
    %v1142 = vld [vmem:[#allocation3 + $0x668] sm:$0xff]
    %v1143 = vld [vmem:[#allocation3 + $0x670] sm:$0xff]
    %v1144 = vld [vmem:[#allocation3 + $0x678] sm:$0xff]
    %v1145 = vld [vmem:[#allocation3 + $0x680] sm:$0xff]
    %v1146 = vld [vmem:[#allocation3 + $0x688] sm:$0xff]
    %v1147 = vld [vmem:[#allocation3 + $0x690] sm:$0xff]
    %v1148 = vld [vmem:[#allocation3 + $0x698] sm:$0xff]
    %v1149 = vld [vmem:[#allocation3 + $0x6a0] sm:$0xff]
    %v1150 = vld [vmem:[#allocation3 + $0x6a8] sm:$0xff]
    %v1151 = vld [vmem:[#allocation3 + $0x6b0] sm:$0xff]
    %v1152 = vld [vmem:[#allocation3 + $0x6b8] sm:$0xff]
    %v1153 = vld [vmem:[#allocation3 + $0x6c0] sm:$0xff]
    %v1154 = vld [vmem:[#allocation3 + $0x6c8] sm:$0xff]
    %v1155 = vld [vmem:[#allocation3 + $0x6d0] sm:$0xff]
    %v1156 = vld [vmem:[#allocation3 + $0x6d8] sm:$0xff]
    %v1157 = vld [vmem:[#allocation3 + $0x6e0] sm:$0xff]
    %v1158 = vld [vmem:[#allocation3 + $0x6e8] sm:$0xff]
    %v1159 = vld [vmem:[#allocation3 + $0x6f0] sm:$0xff]
    %v1160 = vld [vmem:[#allocation3 + $0x6f8] sm:$0xff]
    %v1161 = vld [vmem:[%s2] sm:$0xf]
    %v1163 = vperm.slane %v1161, 0
    %v1164 = vperm.slane %v1161, 1
    %v1165 = vperm.slane %v1161, 2
    %v1166 = vperm.slane %v1161, 3
    %v1235 = vunpack.c.l.b16 %v873
    %v1236 = vunpack.c.h.b16 %v873
    %v1237 = vunpack.c.l.b16 %v874
    %v1238 = vunpack.c.h.b16 %v874
    %v1239 = vunpack.c.l.b16 %v875
    %v1240 = vunpack.c.h.b16 %v875
    %v1241 = vunpack.c.l.b16 %v876
    %v1242 = vunpack.c.l.b16 %v877
    %v1243 = vunpack.c.h.b16 %v877
    %v1244 = vunpack.c.l.b16 %v878
    %v1245 = vunpack.c.h.b16 %v878
    %v1246 = vunpack.c.l.b16 %v879
    %v1247 = vunpack.c.h.b16 %v879
    %v1248 = vunpack.c.l.b16 %v880
    %v1249 = vunpack.c.l.b16 %v881
    %v1250 = vunpack.c.h.b16 %v881
    %v1251 = vunpack.c.l.b16 %v882
    %v1252 = vunpack.c.h.b16 %v882
    %v1253 = vunpack.c.l.b16 %v883
    %v1254 = vunpack.c.h.b16 %v883
    %v1255 = vunpack.c.l.b16 %v884
    %v1256 = vunpack.c.l.b16 %v885
    %v1257 = vunpack.c.h.b16 %v885
    %v1258 = vunpack.c.l.b16 %v886
    %v1259 = vunpack.c.h.b16 %v886
    %v1260 = vunpack.c.l.b16 %v887
    %v1261 = vunpack.c.h.b16 %v887
    %v1262 = vunpack.c.l.b16 %v888
    %v1263 = vunpack.c.l.b16 %v889
    %v1264 = vunpack.c.h.b16 %v889
    %v1265 = vunpack.c.l.b16 %v890
    %v1266 = vunpack.c.h.b16 %v890
    %v1267 = vunpack.c.l.b16 %v891
    %v1268 = vunpack.c.h.b16 %v891
    %v1269 = vunpack.c.l.b16 %v892
    %v1270 = vunpack.c.l.b16 %v893
    %v1271 = vunpack.c.h.b16 %v893
    %v1272 = vunpack.c.l.b16 %v894
    %v1273 = vunpack.c.h.b16 %v894
    %v1274 = vunpack.c.l.b16 %v895
    %v1275 = vunpack.c.h.b16 %v895
    %v1276 = vunpack.c.l.b16 %v896
    %v1277 = vunpack.c.l.b16 %v897
    %v1278 = vunpack.c.h.b16 %v897
    %v1279 = vunpack.c.l.b16 %v898
    %v1280 = vunpack.c.h.b16 %v898
    %v1281 = vunpack.c.l.b16 %v899
    %v1282 = vunpack.c.h.b16 %v899
    %v1283 = vunpack.c.l.b16 %v900
    %v1284 = vunpack.c.l.b16 %v901
    %v1285 = vunpack.c.h.b16 %v901
    %v1286 = vunpack.c.l.b16 %v902
    %v1287 = vunpack.c.h.b16 %v902
    %v1288 = vunpack.c.l.b16 %v903
    %v1289 = vunpack.c.h.b16 %v903
    %v1290 = vunpack.c.l.b16 %v904
    %v1291 = vunpack.c.l.b16 %v905
    %v1292 = vunpack.c.h.b16 %v905
    %v1293 = vunpack.c.l.b16 %v906
    %v1294 = vunpack.c.h.b16 %v906
    %v1295 = vunpack.c.l.b16 %v907
    %v1296 = vunpack.c.h.b16 %v907
    %v1297 = vunpack.c.l.b16 %v908
    %v1298 = vunpack.c.l.b16 %v909
    %v1299 = vunpack.c.h.b16 %v909
    %v1300 = vunpack.c.l.b16 %v910
    %v1301 = vunpack.c.h.b16 %v910
    %v1302 = vunpack.c.l.b16 %v911
    %v1303 = vunpack.c.h.b16 %v911
    %v1304 = vunpack.c.l.b16 %v912
    %v1305 = vunpack.c.l.b16 %v913
    %v1306 = vunpack.c.h.b16 %v913
    %v1307 = vunpack.c.l.b16 %v914
    %v1308 = vunpack.c.h.b16 %v914
    %v1309 = vunpack.c.l.b16 %v915
    %v1310 = vunpack.c.h.b16 %v915
    %v1311 = vunpack.c.l.b16 %v916
    %v1312 = vunpack.c.l.b16 %v917
    %v1313 = vunpack.c.h.b16 %v917
    %v1314 = vunpack.c.l.b16 %v918
    %v1315 = vunpack.c.h.b16 %v918
    %v1316 = vunpack.c.l.b16 %v919
    %v1317 = vunpack.c.h.b16 %v919
    %v1318 = vunpack.c.l.b16 %v920
    %v1319 = vunpack.c.l.b16 %v921
    %v1320 = vunpack.c.h.b16 %v921
    %v1321 = vunpack.c.l.b16 %v922
    %v1322 = vunpack.c.h.b16 %v922
    %v1323 = vunpack.c.l.b16 %v923
    %v1324 = vunpack.c.h.b16 %v923
    %v1325 = vunpack.c.l.b16 %v924
    %v1326 = vunpack.c.l.b16 %v925
    %v1327 = vunpack.c.h.b16 %v925
    %v1328 = vunpack.c.l.b16 %v926
    %v1329 = vunpack.c.h.b16 %v926
    %v1330 = vunpack.c.l.b16 %v927
    %v1331 = vunpack.c.h.b16 %v927
    %v1332 = vunpack.c.l.b16 %v928
    %v1333 = vunpack.c.l.b16 %v929
    %v1334 = vunpack.c.h.b16 %v929
    %v1335 = vunpack.c.l.b16 %v930
    %v1336 = vunpack.c.h.b16 %v930
    %v1337 = vunpack.c.l.b16 %v931
    %v1338 = vunpack.c.h.b16 %v931
    %v1339 = vunpack.c.l.b16 %v932
    %v1340 = vunpack.c.l.b16 %v933
    %v1341 = vunpack.c.h.b16 %v933
    %v1342 = vunpack.c.l.b16 %v934
    %v1343 = vunpack.c.h.b16 %v934
    %v1344 = vunpack.c.l.b16 %v935
    %v1345 = vunpack.c.h.b16 %v935
    %v1346 = vunpack.c.l.b16 %v936
    %v1347 = vpack.c.b16 %v1242, %v1235
    %v1348 = vpack.c.b16 %v1243, %v1236
    %v1349 = vpack.c.b16 %v1244, %v1237
    %v1350 = vpack.c.b16 %v1245, %v1238
    %v1351 = vpack.c.b16 %v1246, %v1239
    %v1352 = vpack.c.b16 %v1247, %v1240
    %v1353 = vpack.c.b16 %v1248, %v1241
    %v1354 = vpack.c.b16 %v1256, %v1249
    %v1355 = vpack.c.b16 %v1257, %v1250
    %v1356 = vpack.c.b16 %v1258, %v1251
    %v1357 = vpack.c.b16 %v1259, %v1252
    %v1358 = vpack.c.b16 %v1260, %v1253
    %v1359 = vpack.c.b16 %v1261, %v1254
    %v1360 = vpack.c.b16 %v1262, %v1255
    %v1361 = vpack.c.b16 %v1270, %v1263
    %v1362 = vpack.c.b16 %v1271, %v1264
    %v1363 = vpack.c.b16 %v1272, %v1265
    %v1364 = vpack.c.b16 %v1273, %v1266
    %v1365 = vpack.c.b16 %v1274, %v1267
    %v1366 = vpack.c.b16 %v1275, %v1268
    %v1367 = vpack.c.b16 %v1276, %v1269
    %v1368 = vpack.c.b16 %v1284, %v1277
    %v1369 = vpack.c.b16 %v1285, %v1278
    %v1370 = vpack.c.b16 %v1286, %v1279
    %v1371 = vpack.c.b16 %v1287, %v1280
    %v1372 = vpack.c.b16 %v1288, %v1281
    %v1373 = vpack.c.b16 %v1289, %v1282
    %v1374 = vpack.c.b16 %v1290, %v1283
    %v1375 = vpack.c.b16 %v1298, %v1291
    %v1376 = vpack.c.b16 %v1299, %v1292
    %v1377 = vpack.c.b16 %v1300, %v1293
    %v1378 = vpack.c.b16 %v1301, %v1294
    %v1379 = vpack.c.b16 %v1302, %v1295
    %v1380 = vpack.c.b16 %v1303, %v1296
    %v1381 = vpack.c.b16 %v1304, %v1297
    %v1382 = vpack.c.b16 %v1312, %v1305
    %v1383 = vpack.c.b16 %v1313, %v1306
    %v1384 = vpack.c.b16 %v1314, %v1307
    %v1385 = vpack.c.b16 %v1315, %v1308
    %v1386 = vpack.c.b16 %v1316, %v1309
    %v1387 = vpack.c.b16 %v1317, %v1310
    %v1388 = vpack.c.b16 %v1318, %v1311
    %v1389 = vpack.c.b16 %v1326, %v1319
    %v1390 = vpack.c.b16 %v1327, %v1320
    %v1391 = vpack.c.b16 %v1328, %v1321
    %v1392 = vpack.c.b16 %v1329, %v1322
    %v1393 = vpack.c.b16 %v1330, %v1323
    %v1394 = vpack.c.b16 %v1331, %v1324
    %v1395 = vpack.c.b16 %v1332, %v1325
    %v1396 = vpack.c.b16 %v1340, %v1333
    %v1397 = vpack.c.b16 %v1341, %v1334
    %v1398 = vpack.c.b16 %v1342, %v1335
    %v1399 = vpack.c.b16 %v1343, %v1336
    %v1400 = vpack.c.b16 %v1344, %v1337
    %v1401 = vpack.c.b16 %v1345, %v1338
    %v1402 = vpack.c.b16 %v1346, %v1339
    %v1683 = vunpack.c.l.b16 %v937
    %v1684 = vunpack.c.h.b16 %v937
    %v1685 = vunpack.c.l.b16 %v938
    %v1686 = vunpack.c.h.b16 %v938
    %v1687 = vunpack.c.l.b16 %v939
    %v1688 = vunpack.c.h.b16 %v939
    %v1689 = vunpack.c.l.b16 %v940
    %v1690 = vunpack.c.h.b16 %v940
    %v1691 = vunpack.c.l.b16 %v941
    %v1692 = vunpack.c.h.b16 %v941
    %v1693 = vunpack.c.l.b16 %v942
    %v1694 = vunpack.c.h.b16 %v942
    %v1695 = vunpack.c.l.b16 %v943
    %v1696 = vunpack.c.h.b16 %v943
    %v1697 = vunpack.c.l.b16 %v944
    %v1698 = vunpack.c.h.b16 %v944
    %v1699 = vunpack.c.l.b16 %v945
    %v1700 = vunpack.c.h.b16 %v945
    %v1701 = vunpack.c.l.b16 %v946
    %v1702 = vunpack.c.h.b16 %v946
    %v1703 = vunpack.c.l.b16 %v947
    %v1704 = vunpack.c.h.b16 %v947
    %v1705 = vunpack.c.l.b16 %v948
    %v1706 = vunpack.c.h.b16 %v948
    %v1707 = vunpack.c.l.b16 %v949
    %v1708 = vunpack.c.h.b16 %v949
    %v1709 = vunpack.c.l.b16 %v950
    %v1710 = vunpack.c.h.b16 %v950
    %v1711 = vunpack.c.l.b16 %v951
    %v1712 = vunpack.c.h.b16 %v951
    %v1713 = vunpack.c.l.b16 %v952
    %v1714 = vunpack.c.h.b16 %v952
    %v1715 = vunpack.c.l.b16 %v953
    %v1716 = vunpack.c.h.b16 %v953
    %v1717 = vunpack.c.l.b16 %v954
    %v1718 = vunpack.c.h.b16 %v954
    %v1719 = vunpack.c.l.b16 %v955
    %v1720 = vunpack.c.h.b16 %v955
    %v1721 = vunpack.c.l.b16 %v956
    %v1722 = vunpack.c.h.b16 %v956
    %v1723 = vunpack.c.l.b16 %v957
    %v1724 = vunpack.c.h.b16 %v957
    %v1725 = vunpack.c.l.b16 %v958
    %v1726 = vunpack.c.h.b16 %v958
    %v1727 = vunpack.c.l.b16 %v959
    %v1728 = vunpack.c.h.b16 %v959
    %v1729 = vunpack.c.l.b16 %v960
    %v1730 = vunpack.c.h.b16 %v960
    %v1731 = vunpack.c.l.b16 %v961
    %v1732 = vunpack.c.h.b16 %v961
    %v1733 = vunpack.c.l.b16 %v962
    %v1734 = vunpack.c.h.b16 %v962
    %v1735 = vunpack.c.l.b16 %v963
    %v1736 = vunpack.c.h.b16 %v963
    %v1737 = vunpack.c.l.b16 %v964
    %v1738 = vunpack.c.h.b16 %v964
    %v1739 = vunpack.c.l.b16 %v965
    %v1740 = vunpack.c.h.b16 %v965
    %v1741 = vunpack.c.l.b16 %v966
    %v1742 = vunpack.c.h.b16 %v966
    %v1743 = vunpack.c.l.b16 %v967
    %v1744 = vunpack.c.h.b16 %v967
    %v1745 = vunpack.c.l.b16 %v968
    %v1746 = vunpack.c.h.b16 %v968
    %v1747 = vunpack.c.l.b16 %v969
    %v1748 = vunpack.c.h.b16 %v969
    %v1749 = vunpack.c.l.b16 %v970
    %v1750 = vunpack.c.h.b16 %v970
    %v1751 = vunpack.c.l.b16 %v971
    %v1752 = vunpack.c.h.b16 %v971
    %v1753 = vunpack.c.l.b16 %v972
    %v1754 = vunpack.c.h.b16 %v972
    %v1755 = vunpack.c.l.b16 %v973
    %v1756 = vunpack.c.h.b16 %v973
    %v1757 = vunpack.c.l.b16 %v974
    %v1758 = vunpack.c.h.b16 %v974
    %v1759 = vunpack.c.l.b16 %v975
    %v1760 = vunpack.c.h.b16 %v975
    %v1761 = vunpack.c.l.b16 %v976
    %v1762 = vunpack.c.h.b16 %v976
    %v1763 = vunpack.c.l.b16 %v977
    %v1764 = vunpack.c.h.b16 %v977
    %v1765 = vunpack.c.l.b16 %v978
    %v1766 = vunpack.c.h.b16 %v978
    %v1767 = vunpack.c.l.b16 %v979
    %v1768 = vunpack.c.h.b16 %v979
    %v1769 = vunpack.c.l.b16 %v980
    %v1770 = vunpack.c.h.b16 %v980
    %v1771 = vunpack.c.l.b16 %v981
    %v1772 = vunpack.c.h.b16 %v981
    %v1773 = vunpack.c.l.b16 %v982
    %v1774 = vunpack.c.h.b16 %v982
    %v1775 = vunpack.c.l.b16 %v983
    %v1776 = vunpack.c.h.b16 %v983
    %v1777 = vunpack.c.l.b16 %v984
    %v1778 = vunpack.c.h.b16 %v984
    %v1779 = vunpack.c.l.b16 %v985
    %v1780 = vunpack.c.h.b16 %v985
    %v1781 = vunpack.c.l.b16 %v986
    %v1782 = vunpack.c.h.b16 %v986
    %v1783 = vunpack.c.l.b16 %v987
    %v1784 = vunpack.c.h.b16 %v987
    %v1785 = vunpack.c.l.b16 %v988
    %v1786 = vunpack.c.h.b16 %v988
    %v1787 = vunpack.c.l.b16 %v989
    %v1788 = vunpack.c.h.b16 %v989
    %v1789 = vunpack.c.l.b16 %v990
    %v1790 = vunpack.c.h.b16 %v990
    %v1791 = vunpack.c.l.b16 %v991
    %v1792 = vunpack.c.h.b16 %v991
    %v1793 = vunpack.c.l.b16 %v992
    %v1794 = vunpack.c.h.b16 %v992
    %v1795 = vunpack.c.l.b16 %v993
    %v1796 = vunpack.c.h.b16 %v993
    %v1797 = vunpack.c.l.b16 %v994
    %v1798 = vunpack.c.h.b16 %v994
    %v1799 = vunpack.c.l.b16 %v995
    %v1800 = vunpack.c.h.b16 %v995
    %v1801 = vunpack.c.l.b16 %v996
    %v1802 = vunpack.c.h.b16 %v996
    %v1803 = vunpack.c.l.b16 %v997
    %v1804 = vunpack.c.h.b16 %v997
    %v1805 = vunpack.c.l.b16 %v998
    %v1806 = vunpack.c.h.b16 %v998
    %v1807 = vunpack.c.l.b16 %v999
    %v1808 = vunpack.c.h.b16 %v999
    %v1809 = vunpack.c.l.b16 %v1000
    %v1810 = vunpack.c.h.b16 %v1000
    %v1811 = vunpack.c.l.b16 %v1001
    %v1812 = vunpack.c.h.b16 %v1001
    %v1813 = vunpack.c.l.b16 %v1002
    %v1814 = vunpack.c.h.b16 %v1002
    %v1815 = vunpack.c.l.b16 %v1003
    %v1816 = vunpack.c.h.b16 %v1003
    %v1817 = vunpack.c.l.b16 %v1004
    %v1818 = vunpack.c.h.b16 %v1004
    %v1819 = vunpack.c.l.b16 %v1005
    %v1820 = vunpack.c.h.b16 %v1005
    %v1821 = vunpack.c.l.b16 %v1006
    %v1822 = vunpack.c.h.b16 %v1006
    %v1823 = vunpack.c.l.b16 %v1007
    %v1824 = vunpack.c.h.b16 %v1007
    %v1825 = vunpack.c.l.b16 %v1008
    %v1826 = vunpack.c.h.b16 %v1008
    %v1827 = vunpack.c.l.b16 %v1009
    %v1828 = vunpack.c.h.b16 %v1009
    %v1829 = vunpack.c.l.b16 %v1010
    %v1830 = vunpack.c.h.b16 %v1010
    %v1831 = vunpack.c.l.b16 %v1011
    %v1832 = vunpack.c.h.b16 %v1011
    %v1833 = vunpack.c.l.b16 %v1012
    %v1834 = vunpack.c.h.b16 %v1012
    %v1835 = vunpack.c.l.b16 %v1013
    %v1836 = vunpack.c.h.b16 %v1013
    %v1837 = vunpack.c.l.b16 %v1014
    %v1838 = vunpack.c.h.b16 %v1014
    %v1839 = vunpack.c.l.b16 %v1015
    %v1840 = vunpack.c.h.b16 %v1015
    %v1841 = vunpack.c.l.b16 %v1016
    %v1842 = vunpack.c.h.b16 %v1016
    %v1843 = vunpack.c.l.b16 %v1017
    %v1844 = vunpack.c.h.b16 %v1017
    %v1845 = vunpack.c.l.b16 %v1018
    %v1846 = vunpack.c.h.b16 %v1018
    %v1847 = vunpack.c.l.b16 %v1019
    %v1848 = vunpack.c.h.b16 %v1019
    %v1849 = vunpack.c.l.b16 %v1020
    %v1850 = vunpack.c.h.b16 %v1020
    %v1851 = vunpack.c.l.b16 %v1021
    %v1852 = vunpack.c.h.b16 %v1021
    %v1853 = vunpack.c.l.b16 %v1022
    %v1854 = vunpack.c.h.b16 %v1022
    %v1855 = vunpack.c.l.b16 %v1023
    %v1856 = vunpack.c.h.b16 %v1023
    %v1857 = vunpack.c.l.b16 %v1024
    %v1858 = vunpack.c.h.b16 %v1024
    %v1859 = vunpack.c.l.b16 %v1025
    %v1860 = vunpack.c.h.b16 %v1025
    %v1861 = vunpack.c.l.b16 %v1026
    %v1862 = vunpack.c.h.b16 %v1026
    %v1863 = vunpack.c.l.b16 %v1027
    %v1864 = vunpack.c.h.b16 %v1027
    %v1865 = vunpack.c.l.b16 %v1028
    %v1866 = vunpack.c.h.b16 %v1028
    %v1867 = vunpack.c.l.b16 %v1029
    %v1868 = vunpack.c.h.b16 %v1029
    %v1869 = vunpack.c.l.b16 %v1030
    %v1870 = vunpack.c.h.b16 %v1030
    %v1871 = vunpack.c.l.b16 %v1031
    %v1872 = vunpack.c.h.b16 %v1031
    %v1873 = vunpack.c.l.b16 %v1032
    %v1874 = vunpack.c.h.b16 %v1032
    %v1875 = vunpack.c.l.b16 %v1033
    %v1876 = vunpack.c.h.b16 %v1033
    %v1877 = vunpack.c.l.b16 %v1034
    %v1878 = vunpack.c.h.b16 %v1034
    %v1879 = vunpack.c.l.b16 %v1035
    %v1880 = vunpack.c.h.b16 %v1035
    %v1881 = vunpack.c.l.b16 %v1036
    %v1882 = vunpack.c.h.b16 %v1036
    %v1883 = vunpack.c.l.b16 %v1037
    %v1884 = vunpack.c.h.b16 %v1037
    %v1885 = vunpack.c.l.b16 %v1038
    %v1886 = vunpack.c.h.b16 %v1038
    %v1887 = vunpack.c.l.b16 %v1039
    %v1888 = vunpack.c.h.b16 %v1039
    %v1889 = vunpack.c.l.b16 %v1040
    %v1890 = vunpack.c.h.b16 %v1040
    %v1891 = vunpack.c.l.b16 %v1041
    %v1892 = vunpack.c.h.b16 %v1041
    %v1893 = vunpack.c.l.b16 %v1042
    %v1894 = vunpack.c.h.b16 %v1042
    %v1895 = vunpack.c.l.b16 %v1043
    %v1896 = vunpack.c.h.b16 %v1043
    %v1897 = vunpack.c.l.b16 %v1044
    %v1898 = vunpack.c.h.b16 %v1044
    %v1899 = vunpack.c.l.b16 %v1045
    %v1900 = vunpack.c.h.b16 %v1045
    %v1901 = vunpack.c.l.b16 %v1046
    %v1902 = vunpack.c.h.b16 %v1046
    %v1903 = vunpack.c.l.b16 %v1047
    %v1904 = vunpack.c.h.b16 %v1047
    %v1905 = vunpack.c.l.b16 %v1048
    %v1906 = vunpack.c.h.b16 %v1048
    %v1907 = vunpack.c.l.b16 %v1049
    %v1908 = vunpack.c.h.b16 %v1049
    %v1909 = vunpack.c.l.b16 %v1050
    %v1910 = vunpack.c.h.b16 %v1050
    %v1911 = vunpack.c.l.b16 %v1051
    %v1912 = vunpack.c.h.b16 %v1051
    %v1913 = vunpack.c.l.b16 %v1052
    %v1914 = vunpack.c.h.b16 %v1052
    %v1915 = vunpack.c.l.b16 %v1053
    %v1916 = vunpack.c.h.b16 %v1053
    %v1917 = vunpack.c.l.b16 %v1054
    %v1918 = vunpack.c.h.b16 %v1054
    %v1919 = vunpack.c.l.b16 %v1055
    %v1920 = vunpack.c.h.b16 %v1055
    %v1921 = vunpack.c.l.b16 %v1056
    %v1922 = vunpack.c.h.b16 %v1056
    %v1923 = vunpack.c.l.b16 %v1057
    %v1924 = vunpack.c.h.b16 %v1057
    %v1925 = vunpack.c.l.b16 %v1058
    %v1926 = vunpack.c.h.b16 %v1058
    %v1927 = vunpack.c.l.b16 %v1059
    %v1928 = vunpack.c.h.b16 %v1059
    %v1929 = vunpack.c.l.b16 %v1060
    %v1930 = vunpack.c.h.b16 %v1060
    %v1931 = vunpack.c.l.b16 %v1061
    %v1932 = vunpack.c.h.b16 %v1061
    %v1933 = vunpack.c.l.b16 %v1062
    %v1934 = vunpack.c.h.b16 %v1062
    %v1935 = vunpack.c.l.b16 %v1063
    %v1936 = vunpack.c.h.b16 %v1063
    %v1937 = vunpack.c.l.b16 %v1064
    %v1938 = vunpack.c.h.b16 %v1064
    %v1939 = vunpack.c.l.b16 %v1065
    %v1940 = vunpack.c.h.b16 %v1065
    %v1941 = vunpack.c.l.b16 %v1066
    %v1942 = vunpack.c.h.b16 %v1066
    %v1943 = vunpack.c.l.b16 %v1067
    %v1944 = vunpack.c.h.b16 %v1067
    %v1945 = vunpack.c.l.b16 %v1068
    %v1946 = vunpack.c.h.b16 %v1068
    %v1947 = vunpack.c.l.b16 %v1069
    %v1948 = vunpack.c.h.b16 %v1069
    %v1949 = vunpack.c.l.b16 %v1070
    %v1950 = vunpack.c.h.b16 %v1070
    %v1951 = vunpack.c.l.b16 %v1071
    %v1952 = vunpack.c.h.b16 %v1071
    %v1953 = vunpack.c.l.b16 %v1072
    %v1954 = vunpack.c.h.b16 %v1072
    %v1955 = vunpack.c.l.b16 %v1073
    %v1956 = vunpack.c.h.b16 %v1073
    %v1957 = vunpack.c.l.b16 %v1074
    %v1958 = vunpack.c.h.b16 %v1074
    %v1959 = vunpack.c.l.b16 %v1075
    %v1960 = vunpack.c.h.b16 %v1075
    %v1961 = vunpack.c.l.b16 %v1076
    %v1962 = vunpack.c.h.b16 %v1076
    %v1963 = vunpack.c.l.b16 %v1077
    %v1964 = vunpack.c.h.b16 %v1077
    %v1965 = vunpack.c.l.b16 %v1078
    %v1966 = vunpack.c.h.b16 %v1078
    %v1967 = vunpack.c.l.b16 %v1079
    %v1968 = vunpack.c.h.b16 %v1079
    %v1969 = vunpack.c.l.b16 %v1080
    %v1970 = vunpack.c.h.b16 %v1080
    %v1971 = vunpack.c.l.b16 %v1081
    %v1972 = vunpack.c.h.b16 %v1081
    %v1973 = vunpack.c.l.b16 %v1082
    %v1974 = vunpack.c.h.b16 %v1082
    %v1975 = vunpack.c.l.b16 %v1083
    %v1976 = vunpack.c.h.b16 %v1083
    %v1977 = vunpack.c.l.b16 %v1084
    %v1978 = vunpack.c.h.b16 %v1084
    %v1979 = vunpack.c.l.b16 %v1085
    %v1980 = vunpack.c.h.b16 %v1085
    %v1981 = vunpack.c.l.b16 %v1086
    %v1982 = vunpack.c.h.b16 %v1086
    %v1983 = vunpack.c.l.b16 %v1087
    %v1984 = vunpack.c.h.b16 %v1087
    %v1985 = vunpack.c.l.b16 %v1088
    %v1986 = vunpack.c.h.b16 %v1088
    %v1987 = vunpack.c.l.b16 %v1089
    %v1988 = vunpack.c.h.b16 %v1089
    %v1989 = vunpack.c.l.b16 %v1090
    %v1990 = vunpack.c.h.b16 %v1090
    %v1991 = vunpack.c.l.b16 %v1091
    %v1992 = vunpack.c.h.b16 %v1091
    %v1993 = vunpack.c.l.b16 %v1092
    %v1994 = vunpack.c.h.b16 %v1092
    %v1995 = vunpack.c.l.b16 %v1093
    %v1996 = vunpack.c.h.b16 %v1093
    %v1997 = vunpack.c.l.b16 %v1094
    %v1998 = vunpack.c.h.b16 %v1094
    %v1999 = vunpack.c.l.b16 %v1095
    %v2000 = vunpack.c.h.b16 %v1095
    %v2001 = vunpack.c.l.b16 %v1096
    %v2002 = vunpack.c.h.b16 %v1096
    %v2003 = vunpack.c.l.b16 %v1097
    %v2004 = vunpack.c.h.b16 %v1097
    %v2005 = vunpack.c.l.b16 %v1098
    %v2006 = vunpack.c.h.b16 %v1098
    %v2007 = vunpack.c.l.b16 %v1099
    %v2008 = vunpack.c.h.b16 %v1099
    %v2009 = vunpack.c.l.b16 %v1100
    %v2010 = vunpack.c.h.b16 %v1100
    %v2011 = vunpack.c.l.b16 %v1101
    %v2012 = vunpack.c.h.b16 %v1101
    %v2013 = vunpack.c.l.b16 %v1102
    %v2014 = vunpack.c.h.b16 %v1102
    %v2015 = vunpack.c.l.b16 %v1103
    %v2016 = vunpack.c.h.b16 %v1103
    %v2017 = vunpack.c.l.b16 %v1104
    %v2018 = vunpack.c.h.b16 %v1104
    %v2019 = vunpack.c.l.b16 %v1105
    %v2020 = vunpack.c.h.b16 %v1105
    %v2021 = vunpack.c.l.b16 %v1106
    %v2022 = vunpack.c.h.b16 %v1106
    %v2023 = vunpack.c.l.b16 %v1107
    %v2024 = vunpack.c.h.b16 %v1107
    %v2025 = vunpack.c.l.b16 %v1108
    %v2026 = vunpack.c.h.b16 %v1108
    %v2027 = vunpack.c.l.b16 %v1109
    %v2028 = vunpack.c.h.b16 %v1109
    %v2029 = vunpack.c.l.b16 %v1110
    %v2030 = vunpack.c.h.b16 %v1110
    %v2031 = vunpack.c.l.b16 %v1111
    %v2032 = vunpack.c.h.b16 %v1111
    %v2033 = vunpack.c.l.b16 %v1112
    %v2034 = vunpack.c.h.b16 %v1112
    %v2035 = vunpack.c.l.b16 %v1113
    %v2036 = vunpack.c.h.b16 %v1113
    %v2037 = vunpack.c.l.b16 %v1114
    %v2038 = vunpack.c.h.b16 %v1114
    %v2039 = vunpack.c.l.b16 %v1115
    %v2040 = vunpack.c.h.b16 %v1115
    %v2041 = vunpack.c.l.b16 %v1116
    %v2042 = vunpack.c.h.b16 %v1116
    %v2043 = vunpack.c.l.b16 %v1117
    %v2044 = vunpack.c.h.b16 %v1117
    %v2045 = vunpack.c.l.b16 %v1118
    %v2046 = vunpack.c.h.b16 %v1118
    %v2047 = vunpack.c.l.b16 %v1119
    %v2048 = vunpack.c.h.b16 %v1119
    %v2049 = vunpack.c.l.b16 %v1120
    %v2050 = vunpack.c.h.b16 %v1120
    %v2051 = vunpack.c.l.b16 %v1121
    %v2052 = vunpack.c.h.b16 %v1121
    %v2053 = vunpack.c.l.b16 %v1122
    %v2054 = vunpack.c.h.b16 %v1122
    %v2055 = vunpack.c.l.b16 %v1123
    %v2056 = vunpack.c.h.b16 %v1123
    %v2057 = vunpack.c.l.b16 %v1124
    %v2058 = vunpack.c.h.b16 %v1124
    %v2059 = vunpack.c.l.b16 %v1125
    %v2060 = vunpack.c.h.b16 %v1125
    %v2061 = vunpack.c.l.b16 %v1126
    %v2062 = vunpack.c.h.b16 %v1126
    %v2063 = vunpack.c.l.b16 %v1127
    %v2064 = vunpack.c.h.b16 %v1127
    %v2065 = vunpack.c.l.b16 %v1128
    %v2066 = vunpack.c.h.b16 %v1128
    %v2067 = vunpack.c.l.b16 %v1129
    %v2068 = vunpack.c.h.b16 %v1129
    %v2069 = vunpack.c.l.b16 %v1130
    %v2070 = vunpack.c.h.b16 %v1130
    %v2071 = vunpack.c.l.b16 %v1131
    %v2072 = vunpack.c.h.b16 %v1131
    %v2073 = vunpack.c.l.b16 %v1132
    %v2074 = vunpack.c.h.b16 %v1132
    %v2075 = vunpack.c.l.b16 %v1133
    %v2076 = vunpack.c.h.b16 %v1133
    %v2077 = vunpack.c.l.b16 %v1134
    %v2078 = vunpack.c.h.b16 %v1134
    %v2079 = vunpack.c.l.b16 %v1135
    %v2080 = vunpack.c.h.b16 %v1135
    %v2081 = vunpack.c.l.b16 %v1136
    %v2082 = vunpack.c.h.b16 %v1136
    %v2083 = vunpack.c.l.b16 %v1137
    %v2084 = vunpack.c.h.b16 %v1137
    %v2085 = vunpack.c.l.b16 %v1138
    %v2086 = vunpack.c.h.b16 %v1138
    %v2087 = vunpack.c.l.b16 %v1139
    %v2088 = vunpack.c.h.b16 %v1139
    %v2089 = vunpack.c.l.b16 %v1140
    %v2090 = vunpack.c.h.b16 %v1140
    %v2091 = vunpack.c.l.b16 %v1141
    %v2092 = vunpack.c.h.b16 %v1141
    %v2093 = vunpack.c.l.b16 %v1142
    %v2094 = vunpack.c.h.b16 %v1142
    %v2095 = vunpack.c.l.b16 %v1143
    %v2096 = vunpack.c.h.b16 %v1143
    %v2097 = vunpack.c.l.b16 %v1144
    %v2098 = vunpack.c.h.b16 %v1144
    %v2099 = vunpack.c.l.b16 %v1145
    %v2100 = vunpack.c.h.b16 %v1145
    %v2101 = vunpack.c.l.b16 %v1146
    %v2102 = vunpack.c.h.b16 %v1146
    %v2103 = vunpack.c.l.b16 %v1147
    %v2104 = vunpack.c.h.b16 %v1147
    %v2105 = vunpack.c.l.b16 %v1148
    %v2106 = vunpack.c.h.b16 %v1148
    %v2107 = vunpack.c.l.b16 %v1149
    %v2108 = vunpack.c.h.b16 %v1149
    %v2109 = vunpack.c.l.b16 %v1150
    %v2110 = vunpack.c.h.b16 %v1150
    %v2111 = vunpack.c.l.b16 %v1151
    %v2112 = vunpack.c.h.b16 %v1151
    %v2113 = vunpack.c.l.b16 %v1152
    %v2114 = vunpack.c.h.b16 %v1152
    %v2115 = vunpack.c.l.b16 %v1153
    %v2116 = vunpack.c.h.b16 %v1153
    %v2117 = vunpack.c.l.b16 %v1154
    %v2118 = vunpack.c.h.b16 %v1154
    %v2119 = vunpack.c.l.b16 %v1155
    %v2120 = vunpack.c.h.b16 %v1155
    %v2121 = vunpack.c.l.b16 %v1156
    %v2122 = vunpack.c.h.b16 %v1156
    %v2123 = vunpack.c.l.b16 %v1157
    %v2124 = vunpack.c.h.b16 %v1157
    %v2125 = vunpack.c.l.b16 %v1158
    %v2126 = vunpack.c.h.b16 %v1158
    %v2127 = vunpack.c.l.b16 %v1159
    %v2128 = vunpack.c.h.b16 %v1159
    %v2129 = vunpack.c.l.b16 %v1160
    %v2130 = vunpack.c.h.b16 %v1160
    %v2131 = vpack.c.b16 %v1687, %v1683
    %v2132 = vpack.c.b16 %v1688, %v1684
    %v2133 = vpack.c.b16 %v1689, %v1685
    %v2134 = vpack.c.b16 %v1690, %v1686
    %v2135 = vpack.c.b16 %v1695, %v1691
    %v2136 = vpack.c.b16 %v1696, %v1692
    %v2137 = vpack.c.b16 %v1697, %v1693
    %v2138 = vpack.c.b16 %v1698, %v1694
    %v2139 = vpack.c.b16 %v1703, %v1699
    %v2140 = vpack.c.b16 %v1704, %v1700
    %v2141 = vpack.c.b16 %v1705, %v1701
    %v2142 = vpack.c.b16 %v1706, %v1702
    %v2143 = vpack.c.b16 %v1711, %v1707
    %v2144 = vpack.c.b16 %v1712, %v1708
    %v2145 = vpack.c.b16 %v1713, %v1709
    %v2146 = vpack.c.b16 %v1714, %v1710
    %v2147 = vpack.c.b16 %v1719, %v1715
    %v2148 = vpack.c.b16 %v1720, %v1716
    %v2149 = vpack.c.b16 %v1721, %v1717
    %v2150 = vpack.c.b16 %v1722, %v1718
    %v2151 = vpack.c.b16 %v1727, %v1723
    %v2152 = vpack.c.b16 %v1728, %v1724
    %v2153 = vpack.c.b16 %v1729, %v1725
    %v2154 = vpack.c.b16 %v1730, %v1726
    %v2155 = vpack.c.b16 %v1735, %v1731
    %v2156 = vpack.c.b16 %v1736, %v1732
    %v2157 = vpack.c.b16 %v1737, %v1733
    %v2158 = vpack.c.b16 %v1738, %v1734
    %v2159 = vpack.c.b16 %v1743, %v1739
    %v2160 = vpack.c.b16 %v1744, %v1740
    %v2161 = vpack.c.b16 %v1745, %v1741
    %v2162 = vpack.c.b16 %v1746, %v1742
    %v2163 = vpack.c.b16 %v1751, %v1747
    %v2164 = vpack.c.b16 %v1752, %v1748
    %v2165 = vpack.c.b16 %v1753, %v1749
    %v2166 = vpack.c.b16 %v1754, %v1750
    %v2167 = vpack.c.b16 %v1759, %v1755
    %v2168 = vpack.c.b16 %v1760, %v1756
    %v2169 = vpack.c.b16 %v1761, %v1757
    %v2170 = vpack.c.b16 %v1762, %v1758
    %v2171 = vpack.c.b16 %v1767, %v1763
    %v2172 = vpack.c.b16 %v1768, %v1764
    %v2173 = vpack.c.b16 %v1769, %v1765
    %v2174 = vpack.c.b16 %v1770, %v1766
    %v2175 = vpack.c.b16 %v1775, %v1771
    %v2176 = vpack.c.b16 %v1776, %v1772
    %v2177 = vpack.c.b16 %v1777, %v1773
    %v2178 = vpack.c.b16 %v1778, %v1774
    %v2179 = vpack.c.b16 %v1783, %v1779
    %v2180 = vpack.c.b16 %v1784, %v1780
    %v2181 = vpack.c.b16 %v1785, %v1781
    %v2182 = vpack.c.b16 %v1786, %v1782
    %v2183 = vpack.c.b16 %v1791, %v1787
    %v2184 = vpack.c.b16 %v1792, %v1788
    %v2185 = vpack.c.b16 %v1793, %v1789
    %v2186 = vpack.c.b16 %v1794, %v1790
    %v2187 = vpack.c.b16 %v1799, %v1795
    %v2188 = vpack.c.b16 %v1800, %v1796
    %v2189 = vpack.c.b16 %v1801, %v1797
    %v2190 = vpack.c.b16 %v1802, %v1798
    %v2191 = vpack.c.b16 %v1807, %v1803
    %v2192 = vpack.c.b16 %v1808, %v1804
    %v2193 = vpack.c.b16 %v1809, %v1805
    %v2194 = vpack.c.b16 %v1810, %v1806
    %v2195 = vpack.c.b16 %v1815, %v1811
    %v2196 = vpack.c.b16 %v1816, %v1812
    %v2197 = vpack.c.b16 %v1817, %v1813
    %v2198 = vpack.c.b16 %v1818, %v1814
    %v2199 = vpack.c.b16 %v1823, %v1819
    %v2200 = vpack.c.b16 %v1824, %v1820
    %v2201 = vpack.c.b16 %v1825, %v1821
    %v2202 = vpack.c.b16 %v1826, %v1822
    %v2203 = vpack.c.b16 %v1831, %v1827
    %v2204 = vpack.c.b16 %v1832, %v1828
    %v2205 = vpack.c.b16 %v1833, %v1829
    %v2206 = vpack.c.b16 %v1834, %v1830
    %v2207 = vpack.c.b16 %v1839, %v1835
    %v2208 = vpack.c.b16 %v1840, %v1836
    %v2209 = vpack.c.b16 %v1841, %v1837
    %v2210 = vpack.c.b16 %v1842, %v1838
    %v2211 = vpack.c.b16 %v1847, %v1843
    %v2212 = vpack.c.b16 %v1848, %v1844
    %v2213 = vpack.c.b16 %v1849, %v1845
    %v2214 = vpack.c.b16 %v1850, %v1846
    %v2215 = vpack.c.b16 %v1855, %v1851
    %v2216 = vpack.c.b16 %v1856, %v1852
    %v2217 = vpack.c.b16 %v1857, %v1853
    %v2218 = vpack.c.b16 %v1858, %v1854
    %v2219 = vpack.c.b16 %v1863, %v1859
    %v2220 = vpack.c.b16 %v1864, %v1860
    %v2221 = vpack.c.b16 %v1865, %v1861
    %v2222 = vpack.c.b16 %v1866, %v1862
    %v2223 = vpack.c.b16 %v1871, %v1867
    %v2224 = vpack.c.b16 %v1872, %v1868
    %v2225 = vpack.c.b16 %v1873, %v1869
    %v2226 = vpack.c.b16 %v1874, %v1870
    %v2227 = vpack.c.b16 %v1879, %v1875
    %v2228 = vpack.c.b16 %v1880, %v1876
    %v2229 = vpack.c.b16 %v1881, %v1877
    %v2230 = vpack.c.b16 %v1882, %v1878
    %v2231 = vpack.c.b16 %v1887, %v1883
    %v2232 = vpack.c.b16 %v1888, %v1884
    %v2233 = vpack.c.b16 %v1889, %v1885
    %v2234 = vpack.c.b16 %v1890, %v1886
    %v2235 = vpack.c.b16 %v1895, %v1891
    %v2236 = vpack.c.b16 %v1896, %v1892
    %v2237 = vpack.c.b16 %v1897, %v1893
    %v2238 = vpack.c.b16 %v1898, %v1894
    %v2239 = vpack.c.b16 %v1903, %v1899
    %v2240 = vpack.c.b16 %v1904, %v1900
    %v2241 = vpack.c.b16 %v1905, %v1901
    %v2242 = vpack.c.b16 %v1906, %v1902
    %v2243 = vpack.c.b16 %v1911, %v1907
    %v2244 = vpack.c.b16 %v1912, %v1908
    %v2245 = vpack.c.b16 %v1913, %v1909
    %v2246 = vpack.c.b16 %v1914, %v1910
    %v2247 = vpack.c.b16 %v1919, %v1915
    %v2248 = vpack.c.b16 %v1920, %v1916
    %v2249 = vpack.c.b16 %v1921, %v1917
    %v2250 = vpack.c.b16 %v1922, %v1918
    %v2251 = vpack.c.b16 %v1927, %v1923
    %v2252 = vpack.c.b16 %v1928, %v1924
    %v2253 = vpack.c.b16 %v1929, %v1925
    %v2254 = vpack.c.b16 %v1930, %v1926
    %v2255 = vpack.c.b16 %v1935, %v1931
    %v2256 = vpack.c.b16 %v1936, %v1932
    %v2257 = vpack.c.b16 %v1937, %v1933
    %v2258 = vpack.c.b16 %v1938, %v1934
    %v2259 = vpack.c.b16 %v1943, %v1939
    %v2260 = vpack.c.b16 %v1944, %v1940
    %v2261 = vpack.c.b16 %v1945, %v1941
    %v2262 = vpack.c.b16 %v1946, %v1942
    %v2263 = vpack.c.b16 %v1951, %v1947
    %v2264 = vpack.c.b16 %v1952, %v1948
    %v2265 = vpack.c.b16 %v1953, %v1949
    %v2266 = vpack.c.b16 %v1954, %v1950
    %v2267 = vpack.c.b16 %v1959, %v1955
    %v2268 = vpack.c.b16 %v1960, %v1956
    %v2269 = vpack.c.b16 %v1961, %v1957
    %v2270 = vpack.c.b16 %v1962, %v1958
    %v2271 = vpack.c.b16 %v1967, %v1963
    %v2272 = vpack.c.b16 %v1968, %v1964
    %v2273 = vpack.c.b16 %v1969, %v1965
    %v2274 = vpack.c.b16 %v1970, %v1966
    %v2275 = vpack.c.b16 %v1975, %v1971
    %v2276 = vpack.c.b16 %v1976, %v1972
    %v2277 = vpack.c.b16 %v1977, %v1973
    %v2278 = vpack.c.b16 %v1978, %v1974
    %v2279 = vpack.c.b16 %v1983, %v1979
    %v2280 = vpack.c.b16 %v1984, %v1980
    %v2281 = vpack.c.b16 %v1985, %v1981
    %v2282 = vpack.c.b16 %v1986, %v1982
    %v2283 = vpack.c.b16 %v1991, %v1987
    %v2284 = vpack.c.b16 %v1992, %v1988
    %v2285 = vpack.c.b16 %v1993, %v1989
    %v2286 = vpack.c.b16 %v1994, %v1990
    %v2287 = vpack.c.b16 %v1999, %v1995
    %v2288 = vpack.c.b16 %v2000, %v1996
    %v2289 = vpack.c.b16 %v2001, %v1997
    %v2290 = vpack.c.b16 %v2002, %v1998
    %v2291 = vpack.c.b16 %v2007, %v2003
    %v2292 = vpack.c.b16 %v2008, %v2004
    %v2293 = vpack.c.b16 %v2009, %v2005
    %v2294 = vpack.c.b16 %v2010, %v2006
    %v2295 = vpack.c.b16 %v2015, %v2011
    %v2296 = vpack.c.b16 %v2016, %v2012
    %v2297 = vpack.c.b16 %v2017, %v2013
    %v2298 = vpack.c.b16 %v2018, %v2014
    %v2299 = vpack.c.b16 %v2023, %v2019
    %v2300 = vpack.c.b16 %v2024, %v2020
    %v2301 = vpack.c.b16 %v2025, %v2021
    %v2302 = vpack.c.b16 %v2026, %v2022
    %v2303 = vpack.c.b16 %v2031, %v2027
    %v2304 = vpack.c.b16 %v2032, %v2028
    %v2305 = vpack.c.b16 %v2033, %v2029
    %v2306 = vpack.c.b16 %v2034, %v2030
    %v2307 = vpack.c.b16 %v2039, %v2035
    %v2308 = vpack.c.b16 %v2040, %v2036
    %v2309 = vpack.c.b16 %v2041, %v2037
    %v2310 = vpack.c.b16 %v2042, %v2038
    %v2311 = vpack.c.b16 %v2047, %v2043
    %v2312 = vpack.c.b16 %v2048, %v2044
    %v2313 = vpack.c.b16 %v2049, %v2045
    %v2314 = vpack.c.b16 %v2050, %v2046
    %v2315 = vpack.c.b16 %v2055, %v2051
    %v2316 = vpack.c.b16 %v2056, %v2052
    %v2317 = vpack.c.b16 %v2057, %v2053
    %v2318 = vpack.c.b16 %v2058, %v2054
    %v2319 = vpack.c.b16 %v2063, %v2059
    %v2320 = vpack.c.b16 %v2064, %v2060
    %v2321 = vpack.c.b16 %v2065, %v2061
    %v2322 = vpack.c.b16 %v2066, %v2062
    %v2323 = vpack.c.b16 %v2071, %v2067
    %v2324 = vpack.c.b16 %v2072, %v2068
    %v2325 = vpack.c.b16 %v2073, %v2069
    %v2326 = vpack.c.b16 %v2074, %v2070
    %v2327 = vpack.c.b16 %v2079, %v2075
    %v2328 = vpack.c.b16 %v2080, %v2076
    %v2329 = vpack.c.b16 %v2081, %v2077
    %v2330 = vpack.c.b16 %v2082, %v2078
    %v2331 = vpack.c.b16 %v2087, %v2083
    %v2332 = vpack.c.b16 %v2088, %v2084
    %v2333 = vpack.c.b16 %v2089, %v2085
    %v2334 = vpack.c.b16 %v2090, %v2086
    %v2335 = vpack.c.b16 %v2095, %v2091
    %v2336 = vpack.c.b16 %v2096, %v2092
    %v2337 = vpack.c.b16 %v2097, %v2093
    %v2338 = vpack.c.b16 %v2098, %v2094
    %v2339 = vpack.c.b16 %v2103, %v2099
    %v2340 = vpack.c.b16 %v2104, %v2100
    %v2341 = vpack.c.b16 %v2105, %v2101
    %v2342 = vpack.c.b16 %v2106, %v2102
    %v2343 = vpack.c.b16 %v2111, %v2107
    %v2344 = vpack.c.b16 %v2112, %v2108
    %v2345 = vpack.c.b16 %v2113, %v2109
    %v2346 = vpack.c.b16 %v2114, %v2110
    %v2347 = vpack.c.b16 %v2119, %v2115
    %v2348 = vpack.c.b16 %v2120, %v2116
    %v2349 = vpack.c.b16 %v2121, %v2117
    %v2350 = vpack.c.b16 %v2122, %v2118
    %v2351 = vpack.c.b16 %v2127, %v2123
    %v2352 = vpack.c.b16 %v2128, %v2124
    %v2353 = vpack.c.b16 %v2129, %v2125
    %v2354 = vpack.c.b16 %v2130, %v2126
    %2579 = vmatpush.bf16.msra.mxu0 %v2159
    %2580 = vmatpush.bf16.msra.mxu0 %v2155
    %2581 = vmatpush.bf16.msra.mxu0 %v2151
    %2582 = vmatpush.bf16.msra.mxu0 %v2147
    %2583 = vmatpush.bf16.msra.mxu0 %v2143
    %2584 = vmatpush.bf16.msra.mxu0 %v2139
    %2585 = vmatpush.bf16.msra.mxu0 %v2135
    %2586 = vmatpush.bf16.msra.mxu0 %v2131
    %2587 = vmatmul.bf16.gmra.mxu0 %v1347
    %v2588 = vpop.f32.mrf.mxu0
    %v2589 = vadd.f32 %v1163, %v2588
    %v2590 = vpop.f32.mrf.mxu0
    %v2591 = vadd.f32 %v1163, %v2590
    %2592 = vmatmul.bf16.gmra.mxu0 %v1354
    %v2593 = vpop.f32.mrf.mxu0
    %v2594 = vadd.f32 %v1163, %v2593
    %v2595 = vpop.f32.mrf.mxu0
    %v2596 = vadd.f32 %v1163, %v2595
    %2597 = vmatmul.bf16.gmra.mxu0 %v1361
    %v2598 = vpop.f32.mrf.mxu0
    %v2599 = vadd.f32 %v1163, %v2598
    %v2600 = vpop.f32.mrf.mxu0
    %v2601 = vadd.f32 %v1163, %v2600
    %2602 = vmatmul.bf16.gmra.mxu0 %v1368
    %v2603 = vpop.f32.mrf.mxu0
    %v2604 = vadd.f32 %v1163, %v2603
    %v2605 = vpop.f32.mrf.mxu0
    %v2606 = vadd.f32 %v1163, %v2605
    %2607 = vmatmul.bf16.gmra.mxu0 %v1375
    %v2608 = vpop.f32.mrf.mxu0
    %v2609 = vadd.f32 %v1163, %v2608
    %v2610 = vpop.f32.mrf.mxu0
    %v2611 = vadd.f32 %v1163, %v2610
    %2612 = vmatmul.bf16.gmra.mxu0 %v1382
    %v2613 = vpop.f32.mrf.mxu0
    %v2614 = vadd.f32 %v1163, %v2613
    %v2615 = vpop.f32.mrf.mxu0
    %v2616 = vadd.f32 %v1163, %v2615
    %2617 = vmatmul.bf16.gmra.mxu0 %v1389
    %v2618 = vpop.f32.mrf.mxu0
    %v2619 = vadd.f32 %v1163, %v2618
    %v2620 = vpop.f32.mrf.mxu0
    %v2621 = vadd.f32 %v1163, %v2620
    %2622 = vmatmul.bf16.gmra.mxu0 %v1396
    %v2623 = vpop.f32.mrf.mxu0
    %v2624 = vadd.f32 %v1163, %v2623
    %v2625 = vpop.f32.mrf.mxu0
    %v2626 = vadd.f32 %v1163, %v2625
    %2627 = vdwg.mxu0
    %2628 = vmatpush.bf16.msra.mxu0 %v2191
    %2629 = vmatpush.bf16.msra.mxu0 %v2187
    %2630 = vmatpush.bf16.msra.mxu0 %v2183
    %2631 = vmatpush.bf16.msra.mxu0 %v2179
    %2632 = vmatpush.bf16.msra.mxu0 %v2175
    %2633 = vmatpush.bf16.msra.mxu0 %v2171
    %2634 = vmatpush.bf16.msra.mxu0 %v2167
    %2635 = vmatpush.bf16.msra.mxu0 %v2163
    %2636 = vmatmul.bf16.gmra.mxu0 %v1348
    %v2637 = vpop.f32.mrf.mxu0
    %v2638 = vadd.f32 %v2589, %v2637
    %v2639 = vpop.f32.mrf.mxu0
    %v2640 = vadd.f32 %v2591, %v2639
    %2641 = vmatmul.bf16.gmra.mxu0 %v1355
    %v2642 = vpop.f32.mrf.mxu0
    %v2643 = vadd.f32 %v2594, %v2642
    %v2644 = vpop.f32.mrf.mxu0
    %v2645 = vadd.f32 %v2596, %v2644
    %2646 = vmatmul.bf16.gmra.mxu0 %v1362
    %v2647 = vpop.f32.mrf.mxu0
    %v2648 = vadd.f32 %v2599, %v2647
    %v2649 = vpop.f32.mrf.mxu0
    %v2650 = vadd.f32 %v2601, %v2649
    %2651 = vmatmul.bf16.gmra.mxu0 %v1369
    %v2652 = vpop.f32.mrf.mxu0
    %v2653 = vadd.f32 %v2604, %v2652
    %v2654 = vpop.f32.mrf.mxu0
    %v2655 = vadd.f32 %v2606, %v2654
    %2656 = vmatmul.bf16.gmra.mxu0 %v1376
    %v2657 = vpop.f32.mrf.mxu0
    %v2658 = vadd.f32 %v2609, %v2657
    %v2659 = vpop.f32.mrf.mxu0
    %v2660 = vadd.f32 %v2611, %v2659
    %2661 = vmatmul.bf16.gmra.mxu0 %v1383
    %v2662 = vpop.f32.mrf.mxu0
    %v2663 = vadd.f32 %v2614, %v2662
    %v2664 = vpop.f32.mrf.mxu0
    %v2665 = vadd.f32 %v2616, %v2664
    %2666 = vmatmul.bf16.gmra.mxu0 %v1390
    %v2667 = vpop.f32.mrf.mxu0
    %v2668 = vadd.f32 %v2619, %v2667
    %v2669 = vpop.f32.mrf.mxu0
    %v2670 = vadd.f32 %v2621, %v2669
    %2671 = vmatmul.bf16.gmra.mxu0 %v1397
    %v2672 = vpop.f32.mrf.mxu0
    %v2673 = vadd.f32 %v2624, %v2672
    %v2674 = vpop.f32.mrf.mxu0
    %v2675 = vadd.f32 %v2626, %v2674
    %2676 = vdwg.mxu0
    %2677 = vmatpush.bf16.msra.mxu0 %v2223
    %2678 = vmatpush.bf16.msra.mxu0 %v2219
    %2679 = vmatpush.bf16.msra.mxu0 %v2215
    %2680 = vmatpush.bf16.msra.mxu0 %v2211
    %2681 = vmatpush.bf16.msra.mxu0 %v2207
    %2682 = vmatpush.bf16.msra.mxu0 %v2203
    %2683 = vmatpush.bf16.msra.mxu0 %v2199
    %2684 = vmatpush.bf16.msra.mxu0 %v2195
    %2685 = vmatmul.bf16.gmra.mxu0 %v1349
    %v2686 = vpop.f32.mrf.mxu0
    %v2687 = vadd.f32 %v2638, %v2686
    %v2688 = vpop.f32.mrf.mxu0
    %v2689 = vadd.f32 %v2640, %v2688
    %2690 = vmatmul.bf16.gmra.mxu0 %v1356
    %v2691 = vpop.f32.mrf.mxu0
    %v2692 = vadd.f32 %v2643, %v2691
    %v2693 = vpop.f32.mrf.mxu0
    %v2694 = vadd.f32 %v2645, %v2693
    %2695 = vmatmul.bf16.gmra.mxu0 %v1363
    %v2696 = vpop.f32.mrf.mxu0
    %v2697 = vadd.f32 %v2648, %v2696
    %v2698 = vpop.f32.mrf.mxu0
    %v2699 = vadd.f32 %v2650, %v2698
    %2700 = vmatmul.bf16.gmra.mxu0 %v1370
    %v2701 = vpop.f32.mrf.mxu0
    %v2702 = vadd.f32 %v2653, %v2701
    %v2703 = vpop.f32.mrf.mxu0
    %v2704 = vadd.f32 %v2655, %v2703
    %2705 = vmatmul.bf16.gmra.mxu0 %v1377
    %v2706 = vpop.f32.mrf.mxu0
    %v2707 = vadd.f32 %v2658, %v2706
    %v2708 = vpop.f32.mrf.mxu0
    %v2709 = vadd.f32 %v2660, %v2708
    %2710 = vmatmul.bf16.gmra.mxu0 %v1384
    %v2711 = vpop.f32.mrf.mxu0
    %v2712 = vadd.f32 %v2663, %v2711
    %v2713 = vpop.f32.mrf.mxu0
    %v2714 = vadd.f32 %v2665, %v2713
    %2715 = vmatmul.bf16.gmra.mxu0 %v1391
    %v2716 = vpop.f32.mrf.mxu0
    %v2717 = vadd.f32 %v2668, %v2716
    %v2718 = vpop.f32.mrf.mxu0
    %v2719 = vadd.f32 %v2670, %v2718
    %2720 = vmatmul.bf16.gmra.mxu0 %v1398
    %v2721 = vpop.f32.mrf.mxu0
    %v2722 = vadd.f32 %v2673, %v2721
    %v2723 = vpop.f32.mrf.mxu0
    %v2724 = vadd.f32 %v2675, %v2723
    %2725 = vdwg.mxu0
    %2726 = vmatpush.bf16.msra.mxu0 %v2255
    %2727 = vmatpush.bf16.msra.mxu0 %v2251
    %2728 = vmatpush.bf16.msra.mxu0 %v2247
    %2729 = vmatpush.bf16.msra.mxu0 %v2243
    %2730 = vmatpush.bf16.msra.mxu0 %v2239
    %2731 = vmatpush.bf16.msra.mxu0 %v2235
    %2732 = vmatpush.bf16.msra.mxu0 %v2231
    %2733 = vmatpush.bf16.msra.mxu0 %v2227
    %2734 = vmatmul.bf16.gmra.mxu0 %v1350
    %v2735 = vpop.f32.mrf.mxu0
    %v2736 = vadd.f32 %v2687, %v2735
    %v2737 = vpop.f32.mrf.mxu0
    %v2738 = vadd.f32 %v2689, %v2737
    %2739 = vmatmul.bf16.gmra.mxu0 %v1357
    %v2740 = vpop.f32.mrf.mxu0
    %v2741 = vadd.f32 %v2692, %v2740
    %v2742 = vpop.f32.mrf.mxu0
    %v2743 = vadd.f32 %v2694, %v2742
    %2744 = vmatmul.bf16.gmra.mxu0 %v1364
    %v2745 = vpop.f32.mrf.mxu0
    %v2746 = vadd.f32 %v2697, %v2745
    %v2747 = vpop.f32.mrf.mxu0
    %v2748 = vadd.f32 %v2699, %v2747
    %2749 = vmatmul.bf16.gmra.mxu0 %v1371
    %v2750 = vpop.f32.mrf.mxu0
    %v2751 = vadd.f32 %v2702, %v2750
    %v2752 = vpop.f32.mrf.mxu0
    %v2753 = vadd.f32 %v2704, %v2752
    %2754 = vmatmul.bf16.gmra.mxu0 %v1378
    %v2755 = vpop.f32.mrf.mxu0
    %v2756 = vadd.f32 %v2707, %v2755
    %v2757 = vpop.f32.mrf.mxu0
    %v2758 = vadd.f32 %v2709, %v2757
    %2759 = vmatmul.bf16.gmra.mxu0 %v1385
    %v2760 = vpop.f32.mrf.mxu0
    %v2761 = vadd.f32 %v2712, %v2760
    %v2762 = vpop.f32.mrf.mxu0
    %v2763 = vadd.f32 %v2714, %v2762
    %2764 = vmatmul.bf16.gmra.mxu0 %v1392
    %v2765 = vpop.f32.mrf.mxu0
    %v2766 = vadd.f32 %v2717, %v2765
    %v2767 = vpop.f32.mrf.mxu0
    %v2768 = vadd.f32 %v2719, %v2767
    %2769 = vmatmul.bf16.gmra.mxu0 %v1399
    %v2770 = vpop.f32.mrf.mxu0
    %v2771 = vadd.f32 %v2722, %v2770
    %v2772 = vpop.f32.mrf.mxu0
    %v2773 = vadd.f32 %v2724, %v2772
    %2774 = vdwg.mxu0
    %2775 = vmatpush.bf16.msra.mxu0 %v2287
    %2776 = vmatpush.bf16.msra.mxu0 %v2283
    %2777 = vmatpush.bf16.msra.mxu0 %v2279
    %2778 = vmatpush.bf16.msra.mxu0 %v2275
    %2779 = vmatpush.bf16.msra.mxu0 %v2271
    %2780 = vmatpush.bf16.msra.mxu0 %v2267
    %2781 = vmatpush.bf16.msra.mxu0 %v2263
    %2782 = vmatpush.bf16.msra.mxu0 %v2259
    %2783 = vmatmul.bf16.gmra.mxu0 %v1351
    %v2784 = vpop.f32.mrf.mxu0
    %v2785 = vadd.f32 %v2736, %v2784
    %v2786 = vpop.f32.mrf.mxu0
    %v2787 = vadd.f32 %v2738, %v2786
    %2788 = vmatmul.bf16.gmra.mxu0 %v1358
    %v2789 = vpop.f32.mrf.mxu0
    %v2790 = vadd.f32 %v2741, %v2789
    %v2791 = vpop.f32.mrf.mxu0
    %v2792 = vadd.f32 %v2743, %v2791
    %2793 = vmatmul.bf16.gmra.mxu0 %v1365
    %v2794 = vpop.f32.mrf.mxu0
    %v2795 = vadd.f32 %v2746, %v2794
    %v2796 = vpop.f32.mrf.mxu0
    %v2797 = vadd.f32 %v2748, %v2796
    %2798 = vmatmul.bf16.gmra.mxu0 %v1372
    %v2799 = vpop.f32.mrf.mxu0
    %v2800 = vadd.f32 %v2751, %v2799
    %v2801 = vpop.f32.mrf.mxu0
    %v2802 = vadd.f32 %v2753, %v2801
    %2803 = vmatmul.bf16.gmra.mxu0 %v1379
    %v2804 = vpop.f32.mrf.mxu0
    %v2805 = vadd.f32 %v2756, %v2804
    %v2806 = vpop.f32.mrf.mxu0
    %v2807 = vadd.f32 %v2758, %v2806
    %2808 = vmatmul.bf16.gmra.mxu0 %v1386
    %v2809 = vpop.f32.mrf.mxu0
    %v2810 = vadd.f32 %v2761, %v2809
    %v2811 = vpop.f32.mrf.mxu0
    %v2812 = vadd.f32 %v2763, %v2811
    %2813 = vmatmul.bf16.gmra.mxu0 %v1393
    %v2814 = vpop.f32.mrf.mxu0
    %v2815 = vadd.f32 %v2766, %v2814
    %v2816 = vpop.f32.mrf.mxu0
    %v2817 = vadd.f32 %v2768, %v2816
    %2818 = vmatmul.bf16.gmra.mxu0 %v1400
    %v2819 = vpop.f32.mrf.mxu0
    %v2820 = vadd.f32 %v2771, %v2819
    %v2821 = vpop.f32.mrf.mxu0
    %v2822 = vadd.f32 %v2773, %v2821
    %2823 = vdwg.mxu0
    %2824 = vmatpush.bf16.msra.mxu0 %v2319
    %2825 = vmatpush.bf16.msra.mxu0 %v2315
    %2826 = vmatpush.bf16.msra.mxu0 %v2311
    %2827 = vmatpush.bf16.msra.mxu0 %v2307
    %2828 = vmatpush.bf16.msra.mxu0 %v2303
    %2829 = vmatpush.bf16.msra.mxu0 %v2299
    %2830 = vmatpush.bf16.msra.mxu0 %v2295
    %2831 = vmatpush.bf16.msra.mxu0 %v2291
    %2832 = vmatmul.bf16.gmra.mxu0 %v1352
    %v2833 = vpop.f32.mrf.mxu0
    %v2834 = vadd.f32 %v2785, %v2833
    %v2835 = vpop.f32.mrf.mxu0
    %v2836 = vadd.f32 %v2787, %v2835
    %2837 = vmatmul.bf16.gmra.mxu0 %v1359
    %v2838 = vpop.f32.mrf.mxu0
    %v2839 = vadd.f32 %v2790, %v2838
    %v2840 = vpop.f32.mrf.mxu0
    %v2841 = vadd.f32 %v2792, %v2840
    %2842 = vmatmul.bf16.gmra.mxu0 %v1366
    %v2843 = vpop.f32.mrf.mxu0
    %v2844 = vadd.f32 %v2795, %v2843
    %v2845 = vpop.f32.mrf.mxu0
    %v2846 = vadd.f32 %v2797, %v2845
    %2847 = vmatmul.bf16.gmra.mxu0 %v1373
    %v2848 = vpop.f32.mrf.mxu0
    %v2849 = vadd.f32 %v2800, %v2848
    %v2850 = vpop.f32.mrf.mxu0
    %v2851 = vadd.f32 %v2802, %v2850
    %2852 = vmatmul.bf16.gmra.mxu0 %v1380
    %v2853 = vpop.f32.mrf.mxu0
    %v2854 = vadd.f32 %v2805, %v2853
    %v2855 = vpop.f32.mrf.mxu0
    %v2856 = vadd.f32 %v2807, %v2855
    %2857 = vmatmul.bf16.gmra.mxu0 %v1387
    %v2858 = vpop.f32.mrf.mxu0
    %v2859 = vadd.f32 %v2810, %v2858
    %v2860 = vpop.f32.mrf.mxu0
    %v2861 = vadd.f32 %v2812, %v2860
    %2862 = vmatmul.bf16.gmra.mxu0 %v1394
    %v2863 = vpop.f32.mrf.mxu0
    %v2864 = vadd.f32 %v2815, %v2863
    %v2865 = vpop.f32.mrf.mxu0
    %v2866 = vadd.f32 %v2817, %v2865
    %2867 = vmatmul.bf16.gmra.mxu0 %v1401
    %v2868 = vpop.f32.mrf.mxu0
    %v2869 = vadd.f32 %v2820, %v2868
    %v2870 = vpop.f32.mrf.mxu0
    %v2871 = vadd.f32 %v2822, %v2870
    %2872 = vdwg.mxu0
    %2873 = vmatpush.bf16.msra.mxu0 %v2351
    %2874 = vmatpush.bf16.msra.mxu0 %v2347
    %2875 = vmatpush.bf16.msra.mxu0 %v2343
    %2876 = vmatpush.bf16.msra.mxu0 %v2339
    %2877 = vmatpush.bf16.msra.mxu0 %v2335
    %2878 = vmatpush.bf16.msra.mxu0 %v2331
    %2879 = vmatpush.bf16.msra.mxu0 %v2327
    %2880 = vmatpush.bf16.msra.mxu0 %v2323
    %2881 = vmatmul.bf16.gmra.mxu0 %v1353
    %v2882 = vpop.f32.mrf.mxu0
    %v2883 = vadd.f32 %v2834, %v2882
    %v2884 = vpop.f32.mrf.mxu0
    %v2885 = vadd.f32 %v2836, %v2884
    %2886 = vmatmul.bf16.gmra.mxu0 %v1360
    %v2887 = vpop.f32.mrf.mxu0
    %v2888 = vadd.f32 %v2839, %v2887
    %v2889 = vpop.f32.mrf.mxu0
    %v2890 = vadd.f32 %v2841, %v2889
    %2891 = vmatmul.bf16.gmra.mxu0 %v1367
    %v2892 = vpop.f32.mrf.mxu0
    %v2893 = vadd.f32 %v2844, %v2892
    %v2894 = vpop.f32.mrf.mxu0
    %v2895 = vadd.f32 %v2846, %v2894
    %2896 = vmatmul.bf16.gmra.mxu0 %v1374
    %v2897 = vpop.f32.mrf.mxu0
    %v2898 = vadd.f32 %v2849, %v2897
    %v2899 = vpop.f32.mrf.mxu0
    %v2900 = vadd.f32 %v2851, %v2899
    %2901 = vmatmul.bf16.gmra.mxu0 %v1381
    %v2902 = vpop.f32.mrf.mxu0
    %v2903 = vadd.f32 %v2854, %v2902
    %v2904 = vpop.f32.mrf.mxu0
    %v2905 = vadd.f32 %v2856, %v2904
    %2906 = vmatmul.bf16.gmra.mxu0 %v1388
    %v2907 = vpop.f32.mrf.mxu0
    %v2908 = vadd.f32 %v2859, %v2907
    %v2909 = vpop.f32.mrf.mxu0
    %v2910 = vadd.f32 %v2861, %v2909
    %2911 = vmatmul.bf16.gmra.mxu0 %v1395
    %v2912 = vpop.f32.mrf.mxu0
    %v2913 = vadd.f32 %v2864, %v2912
    %v2914 = vpop.f32.mrf.mxu0
    %v2915 = vadd.f32 %v2866, %v2914
    %2916 = vmatmul.bf16.gmra.mxu0 %v1402
    %v2917 = vpop.f32.mrf.mxu0
    %v2918 = vadd.f32 %v2869, %v2917
    %v2919 = vpop.f32.mrf.mxu0
    %v2920 = vadd.f32 %v2871, %v2919
    %2921 = vdwg.mxu0
    %2922 = vmatpush.bf16.msra.mxu0 %v2160
    %2923 = vmatpush.bf16.msra.mxu0 %v2156
    %2924 = vmatpush.bf16.msra.mxu0 %v2152
    %2925 = vmatpush.bf16.msra.mxu0 %v2148
    %2926 = vmatpush.bf16.msra.mxu0 %v2144
    %2927 = vmatpush.bf16.msra.mxu0 %v2140
    %2928 = vmatpush.bf16.msra.mxu0 %v2136
    %2929 = vmatpush.bf16.msra.mxu0 %v2132
    %2930 = vmatmul.bf16.gmra.mxu0 %v1347
    %v2931 = vpop.f32.mrf.mxu0
    %v2932 = vadd.f32 %v1164, %v2931
    %v2933 = vpop.f32.mrf.mxu0
    %v2934 = vadd.f32 %v1164, %v2933
    %2935 = vmatmul.bf16.gmra.mxu0 %v1354
    %v2936 = vpop.f32.mrf.mxu0
    %v2937 = vadd.f32 %v1164, %v2936
    %v2938 = vpop.f32.mrf.mxu0
    %v2939 = vadd.f32 %v1164, %v2938
    %2940 = vmatmul.bf16.gmra.mxu0 %v1361
    %v2941 = vpop.f32.mrf.mxu0
    %v2942 = vadd.f32 %v1164, %v2941
    %v2943 = vpop.f32.mrf.mxu0
    %v2944 = vadd.f32 %v1164, %v2943
    %2945 = vmatmul.bf16.gmra.mxu0 %v1368
    %v2946 = vpop.f32.mrf.mxu0
    %v2947 = vadd.f32 %v1164, %v2946
    %v2948 = vpop.f32.mrf.mxu0
    %v2949 = vadd.f32 %v1164, %v2948
    %2950 = vmatmul.bf16.gmra.mxu0 %v1375
    %v2951 = vpop.f32.mrf.mxu0
    %v2952 = vadd.f32 %v1164, %v2951
    %v2953 = vpop.f32.mrf.mxu0
    %v2954 = vadd.f32 %v1164, %v2953
    %2955 = vmatmul.bf16.gmra.mxu0 %v1382
    %v2956 = vpop.f32.mrf.mxu0
    %v2957 = vadd.f32 %v1164, %v2956
    %v2958 = vpop.f32.mrf.mxu0
    %v2959 = vadd.f32 %v1164, %v2958
    %2960 = vmatmul.bf16.gmra.mxu0 %v1389
    %v2961 = vpop.f32.mrf.mxu0
    %v2962 = vadd.f32 %v1164, %v2961
    %v2963 = vpop.f32.mrf.mxu0
    %v2964 = vadd.f32 %v1164, %v2963
    %2965 = vmatmul.bf16.gmra.mxu0 %v1396
    %v2966 = vpop.f32.mrf.mxu0
    %v2967 = vadd.f32 %v1164, %v2966
    %v2968 = vpop.f32.mrf.mxu0
    %v2969 = vadd.f32 %v1164, %v2968
    %2970 = vdwg.mxu0
    %2971 = vmatpush.bf16.msra.mxu0 %v2192
    %2972 = vmatpush.bf16.msra.mxu0 %v2188
    %2973 = vmatpush.bf16.msra.mxu0 %v2184
    %2974 = vmatpush.bf16.msra.mxu0 %v2180
    %2975 = vmatpush.bf16.msra.mxu0 %v2176
    %2976 = vmatpush.bf16.msra.mxu0 %v2172
    %2977 = vmatpush.bf16.msra.mxu0 %v2168
    %2978 = vmatpush.bf16.msra.mxu0 %v2164
    %2979 = vmatmul.bf16.gmra.mxu0 %v1348
    %v2980 = vpop.f32.mrf.mxu0
    %v2981 = vadd.f32 %v2932, %v2980
    %v2982 = vpop.f32.mrf.mxu0
    %v2983 = vadd.f32 %v2934, %v2982
    %2984 = vmatmul.bf16.gmra.mxu0 %v1355
    %v2985 = vpop.f32.mrf.mxu0
    %v2986 = vadd.f32 %v2937, %v2985
    %v2987 = vpop.f32.mrf.mxu0
    %v2988 = vadd.f32 %v2939, %v2987
    %2989 = vmatmul.bf16.gmra.mxu0 %v1362
    %v2990 = vpop.f32.mrf.mxu0
    %v2991 = vadd.f32 %v2942, %v2990
    %v2992 = vpop.f32.mrf.mxu0
    %v2993 = vadd.f32 %v2944, %v2992
    %2994 = vmatmul.bf16.gmra.mxu0 %v1369
    %v2995 = vpop.f32.mrf.mxu0
    %v2996 = vadd.f32 %v2947, %v2995
    %v2997 = vpop.f32.mrf.mxu0
    %v2998 = vadd.f32 %v2949, %v2997
    %2999 = vmatmul.bf16.gmra.mxu0 %v1376
    %v3000 = vpop.f32.mrf.mxu0
    %v3001 = vadd.f32 %v2952, %v3000
    %v3002 = vpop.f32.mrf.mxu0
    %v3003 = vadd.f32 %v2954, %v3002
    %3004 = vmatmul.bf16.gmra.mxu0 %v1383
    %v3005 = vpop.f32.mrf.mxu0
    %v3006 = vadd.f32 %v2957, %v3005
    %v3007 = vpop.f32.mrf.mxu0
    %v3008 = vadd.f32 %v2959, %v3007
    %3009 = vmatmul.bf16.gmra.mxu0 %v1390
    %v3010 = vpop.f32.mrf.mxu0
    %v3011 = vadd.f32 %v2962, %v3010
    %v3012 = vpop.f32.mrf.mxu0
    %v3013 = vadd.f32 %v2964, %v3012
    %3014 = vmatmul.bf16.gmra.mxu0 %v1397
    %v3015 = vpop.f32.mrf.mxu0
    %v3016 = vadd.f32 %v2967, %v3015
    %v3017 = vpop.f32.mrf.mxu0
    %v3018 = vadd.f32 %v2969, %v3017
    %3019 = vdwg.mxu0
    %3020 = vmatpush.bf16.msra.mxu0 %v2224
    %3021 = vmatpush.bf16.msra.mxu0 %v2220
    %3022 = vmatpush.bf16.msra.mxu0 %v2216
    %3023 = vmatpush.bf16.msra.mxu0 %v2212
    %3024 = vmatpush.bf16.msra.mxu0 %v2208
    %3025 = vmatpush.bf16.msra.mxu0 %v2204
    %3026 = vmatpush.bf16.msra.mxu0 %v2200
    %3027 = vmatpush.bf16.msra.mxu0 %v2196
    %3028 = vmatmul.bf16.gmra.mxu0 %v1349
    %v3029 = vpop.f32.mrf.mxu0
    %v3030 = vadd.f32 %v2981, %v3029
    %v3031 = vpop.f32.mrf.mxu0
    %v3032 = vadd.f32 %v2983, %v3031
    %3033 = vmatmul.bf16.gmra.mxu0 %v1356
    %v3034 = vpop.f32.mrf.mxu0
    %v3035 = vadd.f32 %v2986, %v3034
    %v3036 = vpop.f32.mrf.mxu0
    %v3037 = vadd.f32 %v2988, %v3036
    %3038 = vmatmul.bf16.gmra.mxu0 %v1363
    %v3039 = vpop.f32.mrf.mxu0
    %v3040 = vadd.f32 %v2991, %v3039
    %v3041 = vpop.f32.mrf.mxu0
    %v3042 = vadd.f32 %v2993, %v3041
    %3043 = vmatmul.bf16.gmra.mxu0 %v1370
    %v3044 = vpop.f32.mrf.mxu0
    %v3045 = vadd.f32 %v2996, %v3044
    %v3046 = vpop.f32.mrf.mxu0
    %v3047 = vadd.f32 %v2998, %v3046
    %3048 = vmatmul.bf16.gmra.mxu0 %v1377
    %v3049 = vpop.f32.mrf.mxu0
    %v3050 = vadd.f32 %v3001, %v3049
    %v3051 = vpop.f32.mrf.mxu0
    %v3052 = vadd.f32 %v3003, %v3051
    %3053 = vmatmul.bf16.gmra.mxu0 %v1384
    %v3054 = vpop.f32.mrf.mxu0
    %v3055 = vadd.f32 %v3006, %v3054
    %v3056 = vpop.f32.mrf.mxu0
    %v3057 = vadd.f32 %v3008, %v3056
    %3058 = vmatmul.bf16.gmra.mxu0 %v1391
    %v3059 = vpop.f32.mrf.mxu0
    %v3060 = vadd.f32 %v3011, %v3059
    %v3061 = vpop.f32.mrf.mxu0
    %v3062 = vadd.f32 %v3013, %v3061
    %3063 = vmatmul.bf16.gmra.mxu0 %v1398
    %v3064 = vpop.f32.mrf.mxu0
    %v3065 = vadd.f32 %v3016, %v3064
    %v3066 = vpop.f32.mrf.mxu0
    %v3067 = vadd.f32 %v3018, %v3066
    %3068 = vdwg.mxu0
    %3069 = vmatpush.bf16.msra.mxu0 %v2256
    %3070 = vmatpush.bf16.msra.mxu0 %v2252
    %3071 = vmatpush.bf16.msra.mxu0 %v2248
    %3072 = vmatpush.bf16.msra.mxu0 %v2244
    %3073 = vmatpush.bf16.msra.mxu0 %v2240
    %3074 = vmatpush.bf16.msra.mxu0 %v2236
    %3075 = vmatpush.bf16.msra.mxu0 %v2232
    %3076 = vmatpush.bf16.msra.mxu0 %v2228
    %3077 = vmatmul.bf16.gmra.mxu0 %v1350
    %v3078 = vpop.f32.mrf.mxu0
    %v3079 = vadd.f32 %v3030, %v3078
    %v3080 = vpop.f32.mrf.mxu0
    %v3081 = vadd.f32 %v3032, %v3080
    %3082 = vmatmul.bf16.gmra.mxu0 %v1357
    %v3083 = vpop.f32.mrf.mxu0
    %v3084 = vadd.f32 %v3035, %v3083
    %v3085 = vpop.f32.mrf.mxu0
    %v3086 = vadd.f32 %v3037, %v3085
    %3087 = vmatmul.bf16.gmra.mxu0 %v1364
    %v3088 = vpop.f32.mrf.mxu0
    %v3089 = vadd.f32 %v3040, %v3088
    %v3090 = vpop.f32.mrf.mxu0
    %v3091 = vadd.f32 %v3042, %v3090
    %3092 = vmatmul.bf16.gmra.mxu0 %v1371
    %v3093 = vpop.f32.mrf.mxu0
    %v3094 = vadd.f32 %v3045, %v3093
    %v3095 = vpop.f32.mrf.mxu0
    %v3096 = vadd.f32 %v3047, %v3095
    %3097 = vmatmul.bf16.gmra.mxu0 %v1378
    %v3098 = vpop.f32.mrf.mxu0
    %v3099 = vadd.f32 %v3050, %v3098
    %v3100 = vpop.f32.mrf.mxu0
    %v3101 = vadd.f32 %v3052, %v3100
    %3102 = vmatmul.bf16.gmra.mxu0 %v1385
    %v3103 = vpop.f32.mrf.mxu0
    %v3104 = vadd.f32 %v3055, %v3103
    %v3105 = vpop.f32.mrf.mxu0
    %v3106 = vadd.f32 %v3057, %v3105
    %3107 = vmatmul.bf16.gmra.mxu0 %v1392
    %v3108 = vpop.f32.mrf.mxu0
    %v3109 = vadd.f32 %v3060, %v3108
    %v3110 = vpop.f32.mrf.mxu0
    %v3111 = vadd.f32 %v3062, %v3110
    %3112 = vmatmul.bf16.gmra.mxu0 %v1399
    %v3113 = vpop.f32.mrf.mxu0
    %v3114 = vadd.f32 %v3065, %v3113
    %v3115 = vpop.f32.mrf.mxu0
    %v3116 = vadd.f32 %v3067, %v3115
    %3117 = vdwg.mxu0
    %3118 = vmatpush.bf16.msra.mxu0 %v2288
    %3119 = vmatpush.bf16.msra.mxu0 %v2284
    %3120 = vmatpush.bf16.msra.mxu0 %v2280
    %3121 = vmatpush.bf16.msra.mxu0 %v2276
    %3122 = vmatpush.bf16.msra.mxu0 %v2272
    %3123 = vmatpush.bf16.msra.mxu0 %v2268
    %3124 = vmatpush.bf16.msra.mxu0 %v2264
    %3125 = vmatpush.bf16.msra.mxu0 %v2260
    %3126 = vmatmul.bf16.gmra.mxu0 %v1351
    %v3127 = vpop.f32.mrf.mxu0
    %v3128 = vadd.f32 %v3079, %v3127
    %v3129 = vpop.f32.mrf.mxu0
    %v3130 = vadd.f32 %v3081, %v3129
    %3131 = vmatmul.bf16.gmra.mxu0 %v1358
    %v3132 = vpop.f32.mrf.mxu0
    %v3133 = vadd.f32 %v3084, %v3132
    %v3134 = vpop.f32.mrf.mxu0
    %v3135 = vadd.f32 %v3086, %v3134
    %3136 = vmatmul.bf16.gmra.mxu0 %v1365
    %v3137 = vpop.f32.mrf.mxu0
    %v3138 = vadd.f32 %v3089, %v3137
    %v3139 = vpop.f32.mrf.mxu0
    %v3140 = vadd.f32 %v3091, %v3139
    %3141 = vmatmul.bf16.gmra.mxu0 %v1372
    %v3142 = vpop.f32.mrf.mxu0
    %v3143 = vadd.f32 %v3094, %v3142
    %v3144 = vpop.f32.mrf.mxu0
    %v3145 = vadd.f32 %v3096, %v3144
    %3146 = vmatmul.bf16.gmra.mxu0 %v1379
    %v3147 = vpop.f32.mrf.mxu0
    %v3148 = vadd.f32 %v3099, %v3147
    %v3149 = vpop.f32.mrf.mxu0
    %v3150 = vadd.f32 %v3101, %v3149
    %3151 = vmatmul.bf16.gmra.mxu0 %v1386
    %v3152 = vpop.f32.mrf.mxu0
    %v3153 = vadd.f32 %v3104, %v3152
    %v3154 = vpop.f32.mrf.mxu0
    %v3155 = vadd.f32 %v3106, %v3154
    %3156 = vmatmul.bf16.gmra.mxu0 %v1393
    %v3157 = vpop.f32.mrf.mxu0
    %v3158 = vadd.f32 %v3109, %v3157
    %v3159 = vpop.f32.mrf.mxu0
    %v3160 = vadd.f32 %v3111, %v3159
    %3161 = vmatmul.bf16.gmra.mxu0 %v1400
    %v3162 = vpop.f32.mrf.mxu0
    %v3163 = vadd.f32 %v3114, %v3162
    %v3164 = vpop.f32.mrf.mxu0
    %v3165 = vadd.f32 %v3116, %v3164
    %3166 = vdwg.mxu0
    %3167 = vmatpush.bf16.msra.mxu0 %v2320
    %3168 = vmatpush.bf16.msra.mxu0 %v2316
    %3169 = vmatpush.bf16.msra.mxu0 %v2312
    %3170 = vmatpush.bf16.msra.mxu0 %v2308
    %3171 = vmatpush.bf16.msra.mxu0 %v2304
    %3172 = vmatpush.bf16.msra.mxu0 %v2300
    %3173 = vmatpush.bf16.msra.mxu0 %v2296
    %3174 = vmatpush.bf16.msra.mxu0 %v2292
    %3175 = vmatmul.bf16.gmra.mxu0 %v1352
    %v3176 = vpop.f32.mrf.mxu0
    %v3177 = vadd.f32 %v3128, %v3176
    %v3178 = vpop.f32.mrf.mxu0
    %v3179 = vadd.f32 %v3130, %v3178
    %3180 = vmatmul.bf16.gmra.mxu0 %v1359
    %v3181 = vpop.f32.mrf.mxu0
    %v3182 = vadd.f32 %v3133, %v3181
    %v3183 = vpop.f32.mrf.mxu0
    %v3184 = vadd.f32 %v3135, %v3183
    %3185 = vmatmul.bf16.gmra.mxu0 %v1366
    %v3186 = vpop.f32.mrf.mxu0
    %v3187 = vadd.f32 %v3138, %v3186
    %v3188 = vpop.f32.mrf.mxu0
    %v3189 = vadd.f32 %v3140, %v3188
    %3190 = vmatmul.bf16.gmra.mxu0 %v1373
    %v3191 = vpop.f32.mrf.mxu0
    %v3192 = vadd.f32 %v3143, %v3191
    %v3193 = vpop.f32.mrf.mxu0
    %v3194 = vadd.f32 %v3145, %v3193
    %3195 = vmatmul.bf16.gmra.mxu0 %v1380
    %v3196 = vpop.f32.mrf.mxu0
    %v3197 = vadd.f32 %v3148, %v3196
    %v3198 = vpop.f32.mrf.mxu0
    %v3199 = vadd.f32 %v3150, %v3198
    %3200 = vmatmul.bf16.gmra.mxu0 %v1387
    %v3201 = vpop.f32.mrf.mxu0
    %v3202 = vadd.f32 %v3153, %v3201
    %v3203 = vpop.f32.mrf.mxu0
    %v3204 = vadd.f32 %v3155, %v3203
    %3205 = vmatmul.bf16.gmra.mxu0 %v1394
    %v3206 = vpop.f32.mrf.mxu0
    %v3207 = vadd.f32 %v3158, %v3206
    %v3208 = vpop.f32.mrf.mxu0
    %v3209 = vadd.f32 %v3160, %v3208
    %3210 = vmatmul.bf16.gmra.mxu0 %v1401
    %v3211 = vpop.f32.mrf.mxu0
    %v3212 = vadd.f32 %v3163, %v3211
    %v3213 = vpop.f32.mrf.mxu0
    %v3214 = vadd.f32 %v3165, %v3213
    %3215 = vdwg.mxu0
    %3216 = vmatpush.bf16.msra.mxu0 %v2352
    %3217 = vmatpush.bf16.msra.mxu0 %v2348
    %3218 = vmatpush.bf16.msra.mxu0 %v2344
    %3219 = vmatpush.bf16.msra.mxu0 %v2340
    %3220 = vmatpush.bf16.msra.mxu0 %v2336
    %3221 = vmatpush.bf16.msra.mxu0 %v2332
    %3222 = vmatpush.bf16.msra.mxu0 %v2328
    %3223 = vmatpush.bf16.msra.mxu0 %v2324
    %3224 = vmatmul.bf16.gmra.mxu0 %v1353
    %v3225 = vpop.f32.mrf.mxu0
    %v3226 = vadd.f32 %v3177, %v3225
    %v3227 = vpop.f32.mrf.mxu0
    %v3228 = vadd.f32 %v3179, %v3227
    %3229 = vmatmul.bf16.gmra.mxu0 %v1360
    %v3230 = vpop.f32.mrf.mxu0
    %v3231 = vadd.f32 %v3182, %v3230
    %v3232 = vpop.f32.mrf.mxu0
    %v3233 = vadd.f32 %v3184, %v3232
    %3234 = vmatmul.bf16.gmra.mxu0 %v1367
    %v3235 = vpop.f32.mrf.mxu0
    %v3236 = vadd.f32 %v3187, %v3235
    %v3237 = vpop.f32.mrf.mxu0
    %v3238 = vadd.f32 %v3189, %v3237
    %3239 = vmatmul.bf16.gmra.mxu0 %v1374
    %v3240 = vpop.f32.mrf.mxu0
    %v3241 = vadd.f32 %v3192, %v3240
    %v3242 = vpop.f32.mrf.mxu0
    %v3243 = vadd.f32 %v3194, %v3242
    %3244 = vmatmul.bf16.gmra.mxu0 %v1381
    %v3245 = vpop.f32.mrf.mxu0
    %v3246 = vadd.f32 %v3197, %v3245
    %v3247 = vpop.f32.mrf.mxu0
    %v3248 = vadd.f32 %v3199, %v3247
    %3249 = vmatmul.bf16.gmra.mxu0 %v1388
    %v3250 = vpop.f32.mrf.mxu0
    %v3251 = vadd.f32 %v3202, %v3250
    %v3252 = vpop.f32.mrf.mxu0
    %v3253 = vadd.f32 %v3204, %v3252
    %3254 = vmatmul.bf16.gmra.mxu0 %v1395
    %v3255 = vpop.f32.mrf.mxu0
    %v3256 = vadd.f32 %v3207, %v3255
    %v3257 = vpop.f32.mrf.mxu0
    %v3258 = vadd.f32 %v3209, %v3257
    %3259 = vmatmul.bf16.gmra.mxu0 %v1402
    %v3260 = vpop.f32.mrf.mxu0
    %v3261 = vadd.f32 %v3212, %v3260
    %v3262 = vpop.f32.mrf.mxu0
    %v3263 = vadd.f32 %v3214, %v3262
    %3264 = vdwg.mxu0
    %3265 = vmatpush.bf16.msra.mxu0 %v2161
    %3266 = vmatpush.bf16.msra.mxu0 %v2157
    %3267 = vmatpush.bf16.msra.mxu0 %v2153
    %3268 = vmatpush.bf16.msra.mxu0 %v2149
    %3269 = vmatpush.bf16.msra.mxu0 %v2145
    %3270 = vmatpush.bf16.msra.mxu0 %v2141
    %3271 = vmatpush.bf16.msra.mxu0 %v2137
    %3272 = vmatpush.bf16.msra.mxu0 %v2133
    %3273 = vmatmul.bf16.gmra.mxu0 %v1347
    %v3274 = vpop.f32.mrf.mxu0
    %v3275 = vadd.f32 %v1165, %v3274
    %v3276 = vpop.f32.mrf.mxu0
    %v3277 = vadd.f32 %v1165, %v3276
    %3278 = vmatmul.bf16.gmra.mxu0 %v1354
    %v3279 = vpop.f32.mrf.mxu0
    %v3280 = vadd.f32 %v1165, %v3279
    %v3281 = vpop.f32.mrf.mxu0
    %v3282 = vadd.f32 %v1165, %v3281
    %3283 = vmatmul.bf16.gmra.mxu0 %v1361
    %v3284 = vpop.f32.mrf.mxu0
    %v3285 = vadd.f32 %v1165, %v3284
    %v3286 = vpop.f32.mrf.mxu0
    %v3287 = vadd.f32 %v1165, %v3286
    %3288 = vmatmul.bf16.gmra.mxu0 %v1368
    %v3289 = vpop.f32.mrf.mxu0
    %v3290 = vadd.f32 %v1165, %v3289
    %v3291 = vpop.f32.mrf.mxu0
    %v3292 = vadd.f32 %v1165, %v3291
    %3293 = vmatmul.bf16.gmra.mxu0 %v1375
    %v3294 = vpop.f32.mrf.mxu0
    %v3295 = vadd.f32 %v1165, %v3294
    %v3296 = vpop.f32.mrf.mxu0
    %v3297 = vadd.f32 %v1165, %v3296
    %3298 = vmatmul.bf16.gmra.mxu0 %v1382
    %v3299 = vpop.f32.mrf.mxu0
    %v3300 = vadd.f32 %v1165, %v3299
    %v3301 = vpop.f32.mrf.mxu0
    %v3302 = vadd.f32 %v1165, %v3301
    %3303 = vmatmul.bf16.gmra.mxu0 %v1389
    %v3304 = vpop.f32.mrf.mxu0
    %v3305 = vadd.f32 %v1165, %v3304
    %v3306 = vpop.f32.mrf.mxu0
    %v3307 = vadd.f32 %v1165, %v3306
    %3308 = vmatmul.bf16.gmra.mxu0 %v1396
    %v3309 = vpop.f32.mrf.mxu0
    %v3310 = vadd.f32 %v1165, %v3309
    %v3311 = vpop.f32.mrf.mxu0
    %v3312 = vadd.f32 %v1165, %v3311
    %3313 = vdwg.mxu0
    %3314 = vmatpush.bf16.msra.mxu0 %v2193
    %3315 = vmatpush.bf16.msra.mxu0 %v2189
    %3316 = vmatpush.bf16.msra.mxu0 %v2185
    %3317 = vmatpush.bf16.msra.mxu0 %v2181
    %3318 = vmatpush.bf16.msra.mxu0 %v2177
    %3319 = vmatpush.bf16.msra.mxu0 %v2173
    %3320 = vmatpush.bf16.msra.mxu0 %v2169
    %3321 = vmatpush.bf16.msra.mxu0 %v2165
    %3322 = vmatmul.bf16.gmra.mxu0 %v1348
    %v3323 = vpop.f32.mrf.mxu0
    %v3324 = vadd.f32 %v3275, %v3323
    %v3325 = vpop.f32.mrf.mxu0
    %v3326 = vadd.f32 %v3277, %v3325
    %3327 = vmatmul.bf16.gmra.mxu0 %v1355
    %v3328 = vpop.f32.mrf.mxu0
    %v3329 = vadd.f32 %v3280, %v3328
    %v3330 = vpop.f32.mrf.mxu0
    %v3331 = vadd.f32 %v3282, %v3330
    %3332 = vmatmul.bf16.gmra.mxu0 %v1362
    %v3333 = vpop.f32.mrf.mxu0
    %v3334 = vadd.f32 %v3285, %v3333
    %v3335 = vpop.f32.mrf.mxu0
    %v3336 = vadd.f32 %v3287, %v3335
    %3337 = vmatmul.bf16.gmra.mxu0 %v1369
    %v3338 = vpop.f32.mrf.mxu0
    %v3339 = vadd.f32 %v3290, %v3338
    %v3340 = vpop.f32.mrf.mxu0
    %v3341 = vadd.f32 %v3292, %v3340
    %3342 = vmatmul.bf16.gmra.mxu0 %v1376
    %v3343 = vpop.f32.mrf.mxu0
    %v3344 = vadd.f32 %v3295, %v3343
    %v3345 = vpop.f32.mrf.mxu0
    %v3346 = vadd.f32 %v3297, %v3345
    %3347 = vmatmul.bf16.gmra.mxu0 %v1383
    %v3348 = vpop.f32.mrf.mxu0
    %v3349 = vadd.f32 %v3300, %v3348
    %v3350 = vpop.f32.mrf.mxu0
    %v3351 = vadd.f32 %v3302, %v3350
    %3352 = vmatmul.bf16.gmra.mxu0 %v1390
    %v3353 = vpop.f32.mrf.mxu0
    %v3354 = vadd.f32 %v3305, %v3353
    %v3355 = vpop.f32.mrf.mxu0
    %v3356 = vadd.f32 %v3307, %v3355
    %3357 = vmatmul.bf16.gmra.mxu0 %v1397
    %v3358 = vpop.f32.mrf.mxu0
    %v3359 = vadd.f32 %v3310, %v3358
    %v3360 = vpop.f32.mrf.mxu0
    %v3361 = vadd.f32 %v3312, %v3360
    %3362 = vdwg.mxu0
    %3363 = vmatpush.bf16.msra.mxu0 %v2225
    %3364 = vmatpush.bf16.msra.mxu0 %v2221
    %3365 = vmatpush.bf16.msra.mxu0 %v2217
    %3366 = vmatpush.bf16.msra.mxu0 %v2213
    %3367 = vmatpush.bf16.msra.mxu0 %v2209
    %3368 = vmatpush.bf16.msra.mxu0 %v2205
    %3369 = vmatpush.bf16.msra.mxu0 %v2201
    %3370 = vmatpush.bf16.msra.mxu0 %v2197
    %3371 = vmatmul.bf16.gmra.mxu0 %v1349
    %v3372 = vpop.f32.mrf.mxu0
    %v3373 = vadd.f32 %v3324, %v3372
    %v3374 = vpop.f32.mrf.mxu0
    %v3375 = vadd.f32 %v3326, %v3374
    %3376 = vmatmul.bf16.gmra.mxu0 %v1356
    %v3377 = vpop.f32.mrf.mxu0
    %v3378 = vadd.f32 %v3329, %v3377
    %v3379 = vpop.f32.mrf.mxu0
    %v3380 = vadd.f32 %v3331, %v3379
    %3381 = vmatmul.bf16.gmra.mxu0 %v1363
    %v3382 = vpop.f32.mrf.mxu0
    %v3383 = vadd.f32 %v3334, %v3382
    %v3384 = vpop.f32.mrf.mxu0
    %v3385 = vadd.f32 %v3336, %v3384
    %3386 = vmatmul.bf16.gmra.mxu0 %v1370
    %v3387 = vpop.f32.mrf.mxu0
    %v3388 = vadd.f32 %v3339, %v3387
    %v3389 = vpop.f32.mrf.mxu0
    %v3390 = vadd.f32 %v3341, %v3389
    %3391 = vmatmul.bf16.gmra.mxu0 %v1377
    %v3392 = vpop.f32.mrf.mxu0
    %v3393 = vadd.f32 %v3344, %v3392
    %v3394 = vpop.f32.mrf.mxu0
    %v3395 = vadd.f32 %v3346, %v3394
    %3396 = vmatmul.bf16.gmra.mxu0 %v1384
    %v3397 = vpop.f32.mrf.mxu0
    %v3398 = vadd.f32 %v3349, %v3397
    %v3399 = vpop.f32.mrf.mxu0
    %v3400 = vadd.f32 %v3351, %v3399
    %3401 = vmatmul.bf16.gmra.mxu0 %v1391
    %v3402 = vpop.f32.mrf.mxu0
    %v3403 = vadd.f32 %v3354, %v3402
    %v3404 = vpop.f32.mrf.mxu0
    %v3405 = vadd.f32 %v3356, %v3404
    %3406 = vmatmul.bf16.gmra.mxu0 %v1398
    %v3407 = vpop.f32.mrf.mxu0
    %v3408 = vadd.f32 %v3359, %v3407
    %v3409 = vpop.f32.mrf.mxu0
    %v3410 = vadd.f32 %v3361, %v3409
    %3411 = vdwg.mxu0
    %3412 = vmatpush.bf16.msra.mxu0 %v2257
    %3413 = vmatpush.bf16.msra.mxu0 %v2253
    %3414 = vmatpush.bf16.msra.mxu0 %v2249
    %3415 = vmatpush.bf16.msra.mxu0 %v2245
    %3416 = vmatpush.bf16.msra.mxu0 %v2241
    %3417 = vmatpush.bf16.msra.mxu0 %v2237
    %3418 = vmatpush.bf16.msra.mxu0 %v2233
    %3419 = vmatpush.bf16.msra.mxu0 %v2229
    %3420 = vmatmul.bf16.gmra.mxu0 %v1350
    %v3421 = vpop.f32.mrf.mxu0
    %v3422 = vadd.f32 %v3373, %v3421
    %v3423 = vpop.f32.mrf.mxu0
    %v3424 = vadd.f32 %v3375, %v3423
    %3425 = vmatmul.bf16.gmra.mxu0 %v1357
    %v3426 = vpop.f32.mrf.mxu0
    %v3427 = vadd.f32 %v3378, %v3426
    %v3428 = vpop.f32.mrf.mxu0
    %v3429 = vadd.f32 %v3380, %v3428
    %3430 = vmatmul.bf16.gmra.mxu0 %v1364
    %v3431 = vpop.f32.mrf.mxu0
    %v3432 = vadd.f32 %v3383, %v3431
    %v3433 = vpop.f32.mrf.mxu0
    %v3434 = vadd.f32 %v3385, %v3433
    %3435 = vmatmul.bf16.gmra.mxu0 %v1371
    %v3436 = vpop.f32.mrf.mxu0
    %v3437 = vadd.f32 %v3388, %v3436
    %v3438 = vpop.f32.mrf.mxu0
    %v3439 = vadd.f32 %v3390, %v3438
    %3440 = vmatmul.bf16.gmra.mxu0 %v1378
    %v3441 = vpop.f32.mrf.mxu0
    %v3442 = vadd.f32 %v3393, %v3441
    %v3443 = vpop.f32.mrf.mxu0
    %v3444 = vadd.f32 %v3395, %v3443
    %3445 = vmatmul.bf16.gmra.mxu0 %v1385
    %v3446 = vpop.f32.mrf.mxu0
    %v3447 = vadd.f32 %v3398, %v3446
    %v3448 = vpop.f32.mrf.mxu0
    %v3449 = vadd.f32 %v3400, %v3448
    %3450 = vmatmul.bf16.gmra.mxu0 %v1392
    %v3451 = vpop.f32.mrf.mxu0
    %v3452 = vadd.f32 %v3403, %v3451
    %v3453 = vpop.f32.mrf.mxu0
    %v3454 = vadd.f32 %v3405, %v3453
    %3455 = vmatmul.bf16.gmra.mxu0 %v1399
    %v3456 = vpop.f32.mrf.mxu0
    %v3457 = vadd.f32 %v3408, %v3456
    %v3458 = vpop.f32.mrf.mxu0
    %v3459 = vadd.f32 %v3410, %v3458
    %3460 = vdwg.mxu0
    %3461 = vmatpush.bf16.msra.mxu0 %v2289
    %3462 = vmatpush.bf16.msra.mxu0 %v2285
    %3463 = vmatpush.bf16.msra.mxu0 %v2281
    %3464 = vmatpush.bf16.msra.mxu0 %v2277
    %3465 = vmatpush.bf16.msra.mxu0 %v2273
    %3466 = vmatpush.bf16.msra.mxu0 %v2269
    %3467 = vmatpush.bf16.msra.mxu0 %v2265
    %3468 = vmatpush.bf16.msra.mxu0 %v2261
    %3469 = vmatmul.bf16.gmra.mxu0 %v1351
    %v3470 = vpop.f32.mrf.mxu0
    %v3471 = vadd.f32 %v3422, %v3470
    %v3472 = vpop.f32.mrf.mxu0
    %v3473 = vadd.f32 %v3424, %v3472
    %3474 = vmatmul.bf16.gmra.mxu0 %v1358
    %v3475 = vpop.f32.mrf.mxu0
    %v3476 = vadd.f32 %v3427, %v3475
    %v3477 = vpop.f32.mrf.mxu0
    %v3478 = vadd.f32 %v3429, %v3477
    %3479 = vmatmul.bf16.gmra.mxu0 %v1365
    %v3480 = vpop.f32.mrf.mxu0
    %v3481 = vadd.f32 %v3432, %v3480
    %v3482 = vpop.f32.mrf.mxu0
    %v3483 = vadd.f32 %v3434, %v3482
    %3484 = vmatmul.bf16.gmra.mxu0 %v1372
    %v3485 = vpop.f32.mrf.mxu0
    %v3486 = vadd.f32 %v3437, %v3485
    %v3487 = vpop.f32.mrf.mxu0
    %v3488 = vadd.f32 %v3439, %v3487
    %3489 = vmatmul.bf16.gmra.mxu0 %v1379
    %v3490 = vpop.f32.mrf.mxu0
    %v3491 = vadd.f32 %v3442, %v3490
    %v3492 = vpop.f32.mrf.mxu0
    %v3493 = vadd.f32 %v3444, %v3492
    %3494 = vmatmul.bf16.gmra.mxu0 %v1386
    %v3495 = vpop.f32.mrf.mxu0
    %v3496 = vadd.f32 %v3447, %v3495
    %v3497 = vpop.f32.mrf.mxu0
    %v3498 = vadd.f32 %v3449, %v3497
    %3499 = vmatmul.bf16.gmra.mxu0 %v1393
    %v3500 = vpop.f32.mrf.mxu0
    %v3501 = vadd.f32 %v3452, %v3500
    %v3502 = vpop.f32.mrf.mxu0
    %v3503 = vadd.f32 %v3454, %v3502
    %3504 = vmatmul.bf16.gmra.mxu0 %v1400
    %v3505 = vpop.f32.mrf.mxu0
    %v3506 = vadd.f32 %v3457, %v3505
    %v3507 = vpop.f32.mrf.mxu0
    %v3508 = vadd.f32 %v3459, %v3507
    %3509 = vdwg.mxu0
    %3510 = vmatpush.bf16.msra.mxu0 %v2321
    %3511 = vmatpush.bf16.msra.mxu0 %v2317
    %3512 = vmatpush.bf16.msra.mxu0 %v2313
    %3513 = vmatpush.bf16.msra.mxu0 %v2309
    %3514 = vmatpush.bf16.msra.mxu0 %v2305
    %3515 = vmatpush.bf16.msra.mxu0 %v2301
    %3516 = vmatpush.bf16.msra.mxu0 %v2297
    %3517 = vmatpush.bf16.msra.mxu0 %v2293
    %3518 = vmatmul.bf16.gmra.mxu0 %v1352
    %v3519 = vpop.f32.mrf.mxu0
    %v3520 = vadd.f32 %v3471, %v3519
    %v3521 = vpop.f32.mrf.mxu0
    %v3522 = vadd.f32 %v3473, %v3521
    %3523 = vmatmul.bf16.gmra.mxu0 %v1359
    %v3524 = vpop.f32.mrf.mxu0
    %v3525 = vadd.f32 %v3476, %v3524
    %v3526 = vpop.f32.mrf.mxu0
    %v3527 = vadd.f32 %v3478, %v3526
    %3528 = vmatmul.bf16.gmra.mxu0 %v1366
    %v3529 = vpop.f32.mrf.mxu0
    %v3530 = vadd.f32 %v3481, %v3529
    %v3531 = vpop.f32.mrf.mxu0
    %v3532 = vadd.f32 %v3483, %v3531
    %3533 = vmatmul.bf16.gmra.mxu0 %v1373
    %v3534 = vpop.f32.mrf.mxu0
    %v3535 = vadd.f32 %v3486, %v3534
    %v3536 = vpop.f32.mrf.mxu0
    %v3537 = vadd.f32 %v3488, %v3536
    %3538 = vmatmul.bf16.gmra.mxu0 %v1380
    %v3539 = vpop.f32.mrf.mxu0
    %v3540 = vadd.f32 %v3491, %v3539
    %v3541 = vpop.f32.mrf.mxu0
    %v3542 = vadd.f32 %v3493, %v3541
    %3543 = vmatmul.bf16.gmra.mxu0 %v1387
    %v3544 = vpop.f32.mrf.mxu0
    %v3545 = vadd.f32 %v3496, %v3544
    %v3546 = vpop.f32.mrf.mxu0
    %v3547 = vadd.f32 %v3498, %v3546
    %3548 = vmatmul.bf16.gmra.mxu0 %v1394
    %v3549 = vpop.f32.mrf.mxu0
    %v3550 = vadd.f32 %v3501, %v3549
    %v3551 = vpop.f32.mrf.mxu0
    %v3552 = vadd.f32 %v3503, %v3551
    %3553 = vmatmul.bf16.gmra.mxu0 %v1401
    %v3554 = vpop.f32.mrf.mxu0
    %v3555 = vadd.f32 %v3506, %v3554
    %v3556 = vpop.f32.mrf.mxu0
    %v3557 = vadd.f32 %v3508, %v3556
    %3558 = vdwg.mxu0
    %3559 = vmatpush.bf16.msra.mxu0 %v2353
    %3560 = vmatpush.bf16.msra.mxu0 %v2349
    %3561 = vmatpush.bf16.msra.mxu0 %v2345
    %3562 = vmatpush.bf16.msra.mxu0 %v2341
    %3563 = vmatpush.bf16.msra.mxu0 %v2337
    %3564 = vmatpush.bf16.msra.mxu0 %v2333
    %3565 = vmatpush.bf16.msra.mxu0 %v2329
    %3566 = vmatpush.bf16.msra.mxu0 %v2325
    %3567 = vmatmul.bf16.gmra.mxu0 %v1353
    %v3568 = vpop.f32.mrf.mxu0
    %v3569 = vadd.f32 %v3520, %v3568
    %v3570 = vpop.f32.mrf.mxu0
    %v3571 = vadd.f32 %v3522, %v3570
    %3572 = vmatmul.bf16.gmra.mxu0 %v1360
    %v3573 = vpop.f32.mrf.mxu0
    %v3574 = vadd.f32 %v3525, %v3573
    %v3575 = vpop.f32.mrf.mxu0
    %v3576 = vadd.f32 %v3527, %v3575
    %3577 = vmatmul.bf16.gmra.mxu0 %v1367
    %v3578 = vpop.f32.mrf.mxu0
    %v3579 = vadd.f32 %v3530, %v3578
    %v3580 = vpop.f32.mrf.mxu0
    %v3581 = vadd.f32 %v3532, %v3580
    %3582 = vmatmul.bf16.gmra.mxu0 %v1374
    %v3583 = vpop.f32.mrf.mxu0
    %v3584 = vadd.f32 %v3535, %v3583
    %v3585 = vpop.f32.mrf.mxu0
    %v3586 = vadd.f32 %v3537, %v3585
    %3587 = vmatmul.bf16.gmra.mxu0 %v1381
    %v3588 = vpop.f32.mrf.mxu0
    %v3589 = vadd.f32 %v3540, %v3588
    %v3590 = vpop.f32.mrf.mxu0
    %v3591 = vadd.f32 %v3542, %v3590
    %3592 = vmatmul.bf16.gmra.mxu0 %v1388
    %v3593 = vpop.f32.mrf.mxu0
    %v3594 = vadd.f32 %v3545, %v3593
    %v3595 = vpop.f32.mrf.mxu0
    %v3596 = vadd.f32 %v3547, %v3595
    %3597 = vmatmul.bf16.gmra.mxu0 %v1395
    %v3598 = vpop.f32.mrf.mxu0
    %v3599 = vadd.f32 %v3550, %v3598
    %v3600 = vpop.f32.mrf.mxu0
    %v3601 = vadd.f32 %v3552, %v3600
    %3602 = vmatmul.bf16.gmra.mxu0 %v1402
    %v3603 = vpop.f32.mrf.mxu0
    %v3604 = vadd.f32 %v3555, %v3603
    %v3605 = vpop.f32.mrf.mxu0
    %v3606 = vadd.f32 %v3557, %v3605
    %3607 = vdwg.mxu0
    %3608 = vmatpush.bf16.msra.mxu0 %v2162
    %3609 = vmatpush.bf16.msra.mxu0 %v2158
    %3610 = vmatpush.bf16.msra.mxu0 %v2154
    %3611 = vmatpush.bf16.msra.mxu0 %v2150
    %3612 = vmatpush.bf16.msra.mxu0 %v2146
    %3613 = vmatpush.bf16.msra.mxu0 %v2142
    %3614 = vmatpush.bf16.msra.mxu0 %v2138
    %3615 = vmatpush.bf16.msra.mxu0 %v2134
    %3616 = vmatmul.bf16.gmra.mxu0 %v1347
    %v3617 = vpop.f32.mrf.mxu0
    %v3618 = vadd.f32 %v1166, %v3617
    %v3619 = vpop.f32.mrf.mxu0
    %v3620 = vadd.f32 %v1166, %v3619
    %3621 = vmatmul.bf16.gmra.mxu0 %v1354
    %v3622 = vpop.f32.mrf.mxu0
    %v3623 = vadd.f32 %v1166, %v3622
    %v3624 = vpop.f32.mrf.mxu0
    %v3625 = vadd.f32 %v1166, %v3624
    %3626 = vmatmul.bf16.gmra.mxu0 %v1361
    %v3627 = vpop.f32.mrf.mxu0
    %v3628 = vadd.f32 %v1166, %v3627
    %v3629 = vpop.f32.mrf.mxu0
    %v3630 = vadd.f32 %v1166, %v3629
    %3631 = vmatmul.bf16.gmra.mxu0 %v1368
    %v3632 = vpop.f32.mrf.mxu0
    %v3633 = vadd.f32 %v1166, %v3632
    %v3634 = vpop.f32.mrf.mxu0
    %v3635 = vadd.f32 %v1166, %v3634
    %3636 = vmatmul.bf16.gmra.mxu0 %v1375
    %v3637 = vpop.f32.mrf.mxu0
    %v3638 = vadd.f32 %v1166, %v3637
    %v3639 = vpop.f32.mrf.mxu0
    %v3640 = vadd.f32 %v1166, %v3639
    %3641 = vmatmul.bf16.gmra.mxu0 %v1382
    %v3642 = vpop.f32.mrf.mxu0
    %v3643 = vadd.f32 %v1166, %v3642
    %v3644 = vpop.f32.mrf.mxu0
    %v3645 = vadd.f32 %v1166, %v3644
    %3646 = vmatmul.bf16.gmra.mxu0 %v1389
    %v3647 = vpop.f32.mrf.mxu0
    %v3648 = vadd.f32 %v1166, %v3647
    %v3649 = vpop.f32.mrf.mxu0
    %v3650 = vadd.f32 %v1166, %v3649
    %3651 = vmatmul.bf16.gmra.mxu0 %v1396
    %v3652 = vpop.f32.mrf.mxu0
    %v3653 = vadd.f32 %v1166, %v3652
    %v3654 = vpop.f32.mrf.mxu0
    %v3655 = vadd.f32 %v1166, %v3654
    %3656 = vdwg.mxu0
    %3657 = vmatpush.bf16.msra.mxu0 %v2194
    %3658 = vmatpush.bf16.msra.mxu0 %v2190
    %3659 = vmatpush.bf16.msra.mxu0 %v2186
    %3660 = vmatpush.bf16.msra.mxu0 %v2182
    %3661 = vmatpush.bf16.msra.mxu0 %v2178
    %3662 = vmatpush.bf16.msra.mxu0 %v2174
    %3663 = vmatpush.bf16.msra.mxu0 %v2170
    %3664 = vmatpush.bf16.msra.mxu0 %v2166
    %3665 = vmatmul.bf16.gmra.mxu0 %v1348
    %v3666 = vpop.f32.mrf.mxu0
    %v3667 = vadd.f32 %v3618, %v3666
    %v3668 = vpop.f32.mrf.mxu0
    %v3669 = vadd.f32 %v3620, %v3668
    %3670 = vmatmul.bf16.gmra.mxu0 %v1355
    %v3671 = vpop.f32.mrf.mxu0
    %v3672 = vadd.f32 %v3623, %v3671
    %v3673 = vpop.f32.mrf.mxu0
    %v3674 = vadd.f32 %v3625, %v3673
    %3675 = vmatmul.bf16.gmra.mxu0 %v1362
    %v3676 = vpop.f32.mrf.mxu0
    %v3677 = vadd.f32 %v3628, %v3676
    %v3678 = vpop.f32.mrf.mxu0
    %v3679 = vadd.f32 %v3630, %v3678
    %3680 = vmatmul.bf16.gmra.mxu0 %v1369
    %v3681 = vpop.f32.mrf.mxu0
    %v3682 = vadd.f32 %v3633, %v3681
    %v3683 = vpop.f32.mrf.mxu0
    %v3684 = vadd.f32 %v3635, %v3683
    %3685 = vmatmul.bf16.gmra.mxu0 %v1376
    %v3686 = vpop.f32.mrf.mxu0
    %v3687 = vadd.f32 %v3638, %v3686
    %v3688 = vpop.f32.mrf.mxu0
    %v3689 = vadd.f32 %v3640, %v3688
    %3690 = vmatmul.bf16.gmra.mxu0 %v1383
    %v3691 = vpop.f32.mrf.mxu0
    %v3692 = vadd.f32 %v3643, %v3691
    %v3693 = vpop.f32.mrf.mxu0
    %v3694 = vadd.f32 %v3645, %v3693
    %3695 = vmatmul.bf16.gmra.mxu0 %v1390
    %v3696 = vpop.f32.mrf.mxu0
    %v3697 = vadd.f32 %v3648, %v3696
    %v3698 = vpop.f32.mrf.mxu0
    %v3699 = vadd.f32 %v3650, %v3698
    %3700 = vmatmul.bf16.gmra.mxu0 %v1397
    %v3701 = vpop.f32.mrf.mxu0
    %v3702 = vadd.f32 %v3653, %v3701
    %v3703 = vpop.f32.mrf.mxu0
    %v3704 = vadd.f32 %v3655, %v3703
    %3705 = vdwg.mxu0
    %3706 = vmatpush.bf16.msra.mxu0 %v2226
    %3707 = vmatpush.bf16.msra.mxu0 %v2222
    %3708 = vmatpush.bf16.msra.mxu0 %v2218
    %3709 = vmatpush.bf16.msra.mxu0 %v2214
    %3710 = vmatpush.bf16.msra.mxu0 %v2210
    %3711 = vmatpush.bf16.msra.mxu0 %v2206
    %3712 = vmatpush.bf16.msra.mxu0 %v2202
    %3713 = vmatpush.bf16.msra.mxu0 %v2198
    %3714 = vmatmul.bf16.gmra.mxu0 %v1349
    %v3715 = vpop.f32.mrf.mxu0
    %v3716 = vadd.f32 %v3667, %v3715
    %v3717 = vpop.f32.mrf.mxu0
    %v3718 = vadd.f32 %v3669, %v3717
    %3719 = vmatmul.bf16.gmra.mxu0 %v1356
    %v3720 = vpop.f32.mrf.mxu0
    %v3721 = vadd.f32 %v3672, %v3720
    %v3722 = vpop.f32.mrf.mxu0
    %v3723 = vadd.f32 %v3674, %v3722
    %3724 = vmatmul.bf16.gmra.mxu0 %v1363
    %v3725 = vpop.f32.mrf.mxu0
    %v3726 = vadd.f32 %v3677, %v3725
    %v3727 = vpop.f32.mrf.mxu0
    %v3728 = vadd.f32 %v3679, %v3727
    %3729 = vmatmul.bf16.gmra.mxu0 %v1370
    %v3730 = vpop.f32.mrf.mxu0
    %v3731 = vadd.f32 %v3682, %v3730
    %v3732 = vpop.f32.mrf.mxu0
    %v3733 = vadd.f32 %v3684, %v3732
    %3734 = vmatmul.bf16.gmra.mxu0 %v1377
    %v3735 = vpop.f32.mrf.mxu0
    %v3736 = vadd.f32 %v3687, %v3735
    %v3737 = vpop.f32.mrf.mxu0
    %v3738 = vadd.f32 %v3689, %v3737
    %3739 = vmatmul.bf16.gmra.mxu0 %v1384
    %v3740 = vpop.f32.mrf.mxu0
    %v3741 = vadd.f32 %v3692, %v3740
    %v3742 = vpop.f32.mrf.mxu0
    %v3743 = vadd.f32 %v3694, %v3742
    %3744 = vmatmul.bf16.gmra.mxu0 %v1391
    %v3745 = vpop.f32.mrf.mxu0
    %v3746 = vadd.f32 %v3697, %v3745
    %v3747 = vpop.f32.mrf.mxu0
    %v3748 = vadd.f32 %v3699, %v3747
    %3749 = vmatmul.bf16.gmra.mxu0 %v1398
    %v3750 = vpop.f32.mrf.mxu0
    %v3751 = vadd.f32 %v3702, %v3750
    %v3752 = vpop.f32.mrf.mxu0
    %v3753 = vadd.f32 %v3704, %v3752
    %3754 = vdwg.mxu0
    %3755 = vmatpush.bf16.msra.mxu0 %v2258
    %3756 = vmatpush.bf16.msra.mxu0 %v2254
    %3757 = vmatpush.bf16.msra.mxu0 %v2250
    %3758 = vmatpush.bf16.msra.mxu0 %v2246
    %3759 = vmatpush.bf16.msra.mxu0 %v2242
    %3760 = vmatpush.bf16.msra.mxu0 %v2238
    %3761 = vmatpush.bf16.msra.mxu0 %v2234
    %3762 = vmatpush.bf16.msra.mxu0 %v2230
    %3763 = vmatmul.bf16.gmra.mxu0 %v1350
    %v3764 = vpop.f32.mrf.mxu0
    %v3765 = vadd.f32 %v3716, %v3764
    %v3766 = vpop.f32.mrf.mxu0
    %v3767 = vadd.f32 %v3718, %v3766
    %3768 = vmatmul.bf16.gmra.mxu0 %v1357
    %v3769 = vpop.f32.mrf.mxu0
    %v3770 = vadd.f32 %v3721, %v3769
    %v3771 = vpop.f32.mrf.mxu0
    %v3772 = vadd.f32 %v3723, %v3771
    %3773 = vmatmul.bf16.gmra.mxu0 %v1364
    %v3774 = vpop.f32.mrf.mxu0
    %v3775 = vadd.f32 %v3726, %v3774
    %v3776 = vpop.f32.mrf.mxu0
    %v3777 = vadd.f32 %v3728, %v3776
    %3778 = vmatmul.bf16.gmra.mxu0 %v1371
    %v3779 = vpop.f32.mrf.mxu0
    %v3780 = vadd.f32 %v3731, %v3779
    %v3781 = vpop.f32.mrf.mxu0
    %v3782 = vadd.f32 %v3733, %v3781
    %3783 = vmatmul.bf16.gmra.mxu0 %v1378
    %v3784 = vpop.f32.mrf.mxu0
    %v3785 = vadd.f32 %v3736, %v3784
    %v3786 = vpop.f32.mrf.mxu0
    %v3787 = vadd.f32 %v3738, %v3786
    %3788 = vmatmul.bf16.gmra.mxu0 %v1385
    %v3789 = vpop.f32.mrf.mxu0
    %v3790 = vadd.f32 %v3741, %v3789
    %v3791 = vpop.f32.mrf.mxu0
    %v3792 = vadd.f32 %v3743, %v3791
    %3793 = vmatmul.bf16.gmra.mxu0 %v1392
    %v3794 = vpop.f32.mrf.mxu0
    %v3795 = vadd.f32 %v3746, %v3794
    %v3796 = vpop.f32.mrf.mxu0
    %v3797 = vadd.f32 %v3748, %v3796
    %3798 = vmatmul.bf16.gmra.mxu0 %v1399
    %v3799 = vpop.f32.mrf.mxu0
    %v3800 = vadd.f32 %v3751, %v3799
    %v3801 = vpop.f32.mrf.mxu0
    %v3802 = vadd.f32 %v3753, %v3801
    %3803 = vdwg.mxu0
    %3804 = vmatpush.bf16.msra.mxu0 %v2290
    %3805 = vmatpush.bf16.msra.mxu0 %v2286
    %3806 = vmatpush.bf16.msra.mxu0 %v2282
    %3807 = vmatpush.bf16.msra.mxu0 %v2278
    %3808 = vmatpush.bf16.msra.mxu0 %v2274
    %3809 = vmatpush.bf16.msra.mxu0 %v2270
    %3810 = vmatpush.bf16.msra.mxu0 %v2266
    %3811 = vmatpush.bf16.msra.mxu0 %v2262
    %3812 = vmatmul.bf16.gmra.mxu0 %v1351
    %v3813 = vpop.f32.mrf.mxu0
    %v3814 = vadd.f32 %v3765, %v3813
    %v3815 = vpop.f32.mrf.mxu0
    %v3816 = vadd.f32 %v3767, %v3815
    %3817 = vmatmul.bf16.gmra.mxu0 %v1358
    %v3818 = vpop.f32.mrf.mxu0
    %v3819 = vadd.f32 %v3770, %v3818
    %v3820 = vpop.f32.mrf.mxu0
    %v3821 = vadd.f32 %v3772, %v3820
    %3822 = vmatmul.bf16.gmra.mxu0 %v1365
    %v3823 = vpop.f32.mrf.mxu0
    %v3824 = vadd.f32 %v3775, %v3823
    %v3825 = vpop.f32.mrf.mxu0
    %v3826 = vadd.f32 %v3777, %v3825
    %3827 = vmatmul.bf16.gmra.mxu0 %v1372
    %v3828 = vpop.f32.mrf.mxu0
    %v3829 = vadd.f32 %v3780, %v3828
    %v3830 = vpop.f32.mrf.mxu0
    %v3831 = vadd.f32 %v3782, %v3830
    %3832 = vmatmul.bf16.gmra.mxu0 %v1379
    %v3833 = vpop.f32.mrf.mxu0
    %v3834 = vadd.f32 %v3785, %v3833
    %v3835 = vpop.f32.mrf.mxu0
    %v3836 = vadd.f32 %v3787, %v3835
    %3837 = vmatmul.bf16.gmra.mxu0 %v1386
    %v3838 = vpop.f32.mrf.mxu0
    %v3839 = vadd.f32 %v3790, %v3838
    %v3840 = vpop.f32.mrf.mxu0
    %v3841 = vadd.f32 %v3792, %v3840
    %3842 = vmatmul.bf16.gmra.mxu0 %v1393
    %v3843 = vpop.f32.mrf.mxu0
    %v3844 = vadd.f32 %v3795, %v3843
    %v3845 = vpop.f32.mrf.mxu0
    %v3846 = vadd.f32 %v3797, %v3845
    %3847 = vmatmul.bf16.gmra.mxu0 %v1400
    %v3848 = vpop.f32.mrf.mxu0
    %v3849 = vadd.f32 %v3800, %v3848
    %v3850 = vpop.f32.mrf.mxu0
    %v3851 = vadd.f32 %v3802, %v3850
    %3852 = vdwg.mxu0
    %3853 = vmatpush.bf16.msra.mxu0 %v2322
    %3854 = vmatpush.bf16.msra.mxu0 %v2318
    %3855 = vmatpush.bf16.msra.mxu0 %v2314
    %3856 = vmatpush.bf16.msra.mxu0 %v2310
    %3857 = vmatpush.bf16.msra.mxu0 %v2306
    %3858 = vmatpush.bf16.msra.mxu0 %v2302
    %3859 = vmatpush.bf16.msra.mxu0 %v2298
    %3860 = vmatpush.bf16.msra.mxu0 %v2294
    %3861 = vmatmul.bf16.gmra.mxu0 %v1352
    %v3862 = vpop.f32.mrf.mxu0
    %v3863 = vadd.f32 %v3814, %v3862
    %v3864 = vpop.f32.mrf.mxu0
    %v3865 = vadd.f32 %v3816, %v3864
    %3866 = vmatmul.bf16.gmra.mxu0 %v1359
    %v3867 = vpop.f32.mrf.mxu0
    %v3868 = vadd.f32 %v3819, %v3867
    %v3869 = vpop.f32.mrf.mxu0
    %v3870 = vadd.f32 %v3821, %v3869
    %3871 = vmatmul.bf16.gmra.mxu0 %v1366
    %v3872 = vpop.f32.mrf.mxu0
    %v3873 = vadd.f32 %v3824, %v3872
    %v3874 = vpop.f32.mrf.mxu0
    %v3875 = vadd.f32 %v3826, %v3874
    %3876 = vmatmul.bf16.gmra.mxu0 %v1373
    %v3877 = vpop.f32.mrf.mxu0
    %v3878 = vadd.f32 %v3829, %v3877
    %v3879 = vpop.f32.mrf.mxu0
    %v3880 = vadd.f32 %v3831, %v3879
    %3881 = vmatmul.bf16.gmra.mxu0 %v1380
    %v3882 = vpop.f32.mrf.mxu0
    %v3883 = vadd.f32 %v3834, %v3882
    %v3884 = vpop.f32.mrf.mxu0
    %v3885 = vadd.f32 %v3836, %v3884
    %3886 = vmatmul.bf16.gmra.mxu0 %v1387
    %v3887 = vpop.f32.mrf.mxu0
    %v3888 = vadd.f32 %v3839, %v3887
    %v3889 = vpop.f32.mrf.mxu0
    %v3890 = vadd.f32 %v3841, %v3889
    %3891 = vmatmul.bf16.gmra.mxu0 %v1394
    %v3892 = vpop.f32.mrf.mxu0
    %v3893 = vadd.f32 %v3844, %v3892
    %v3894 = vpop.f32.mrf.mxu0
    %v3895 = vadd.f32 %v3846, %v3894
    %3896 = vmatmul.bf16.gmra.mxu0 %v1401
    %v3897 = vpop.f32.mrf.mxu0
    %v3898 = vadd.f32 %v3849, %v3897
    %v3899 = vpop.f32.mrf.mxu0
    %v3900 = vadd.f32 %v3851, %v3899
    %3901 = vdwg.mxu0
    %3902 = vmatpush.bf16.msra.mxu0 %v2354
    %3903 = vmatpush.bf16.msra.mxu0 %v2350
    %3904 = vmatpush.bf16.msra.mxu0 %v2346
    %3905 = vmatpush.bf16.msra.mxu0 %v2342
    %3906 = vmatpush.bf16.msra.mxu0 %v2338
    %3907 = vmatpush.bf16.msra.mxu0 %v2334
    %3908 = vmatpush.bf16.msra.mxu0 %v2330
    %3909 = vmatpush.bf16.msra.mxu0 %v2326
    %3910 = vmatmul.bf16.gmra.mxu0 %v1353
    %v3911 = vpop.f32.mrf.mxu0
    %v3912 = vadd.f32 %v3863, %v3911
    %v3913 = vpop.f32.mrf.mxu0
    %v3914 = vadd.f32 %v3865, %v3913
    %3915 = vmatmul.bf16.gmra.mxu0 %v1360
    %v3916 = vpop.f32.mrf.mxu0
    %v3917 = vadd.f32 %v3868, %v3916
    %v3918 = vpop.f32.mrf.mxu0
    %v3919 = vadd.f32 %v3870, %v3918
    %3920 = vmatmul.bf16.gmra.mxu0 %v1367
    %v3921 = vpop.f32.mrf.mxu0
    %v3922 = vadd.f32 %v3873, %v3921
    %v3923 = vpop.f32.mrf.mxu0
    %v3924 = vadd.f32 %v3875, %v3923
    %3925 = vmatmul.bf16.gmra.mxu0 %v1374
    %v3926 = vpop.f32.mrf.mxu0
    %v3927 = vadd.f32 %v3878, %v3926
    %v3928 = vpop.f32.mrf.mxu0
    %v3929 = vadd.f32 %v3880, %v3928
    %3930 = vmatmul.bf16.gmra.mxu0 %v1381
    %v3931 = vpop.f32.mrf.mxu0
    %v3932 = vadd.f32 %v3883, %v3931
    %v3933 = vpop.f32.mrf.mxu0
    %v3934 = vadd.f32 %v3885, %v3933
    %3935 = vmatmul.bf16.gmra.mxu0 %v1388
    %v3936 = vpop.f32.mrf.mxu0
    %v3937 = vadd.f32 %v3888, %v3936
    %v3938 = vpop.f32.mrf.mxu0
    %v3939 = vadd.f32 %v3890, %v3938
    %3940 = vmatmul.bf16.gmra.mxu0 %v1395
    %v3941 = vpop.f32.mrf.mxu0
    %v3942 = vadd.f32 %v3893, %v3941
    %v3943 = vpop.f32.mrf.mxu0
    %v3944 = vadd.f32 %v3895, %v3943
    %3945 = vmatmul.bf16.gmra.mxu0 %v1402
    %v3946 = vpop.f32.mrf.mxu0
    %v3947 = vadd.f32 %v3898, %v3946
    %v3948 = vpop.f32.mrf.mxu0
    %v3949 = vadd.f32 %v3900, %v3948
    %3950 = vdwg.mxu0
    %v3951 = vmax.f32 %v2883, 0.0
    %v3952 = vmax.f32 %v3226, 0.0
    %v3953 = vmax.f32 %v3569, 0.0
    %v3954 = vmax.f32 %v3912, 0.0
    %v3955 = vmax.f32 %v2885, 0.0
    %v3956 = vmax.f32 %v3228, 0.0
    %v3957 = vmax.f32 %v3571, 0.0
    %v3958 = vmax.f32 %v3914, 0.0
    %v3959 = vmax.f32 %v2888, 0.0
    %v3960 = vmax.f32 %v3231, 0.0
    %v3961 = vmax.f32 %v3574, 0.0
    %v3962 = vmax.f32 %v3917, 0.0
    %v3963 = vmax.f32 %v2890, 0.0
    %v3964 = vmax.f32 %v3233, 0.0
    %v3965 = vmax.f32 %v3576, 0.0
    %v3966 = vmax.f32 %v3919, 0.0
    %v3967 = vmax.f32 %v2893, 0.0
    %v3968 = vmax.f32 %v3236, 0.0
    %v3969 = vmax.f32 %v3579, 0.0
    %v3970 = vmax.f32 %v3922, 0.0
    %v3971 = vmax.f32 %v2895, 0.0
    %v3972 = vmax.f32 %v3238, 0.0
    %v3973 = vmax.f32 %v3581, 0.0
    %v3974 = vmax.f32 %v3924, 0.0
    %v3975 = vmax.f32 %v2898, 0.0
    %v3976 = vmax.f32 %v3241, 0.0
    %v3977 = vmax.f32 %v3584, 0.0
    %v3978 = vmax.f32 %v3927, 0.0
    %v3979 = vmax.f32 %v2900, 0.0
    %v3980 = vmax.f32 %v3243, 0.0
    %v3981 = vmax.f32 %v3586, 0.0
    %v3982 = vmax.f32 %v3929, 0.0
    %v3983 = vmax.f32 %v2903, 0.0
    %v3984 = vmax.f32 %v3246, 0.0
    %v3985 = vmax.f32 %v3589, 0.0
    %v3986 = vmax.f32 %v3932, 0.0
    %v3987 = vmax.f32 %v2905, 0.0
    %v3988 = vmax.f32 %v3248, 0.0
    %v3989 = vmax.f32 %v3591, 0.0
    %v3990 = vmax.f32 %v3934, 0.0
    %v3991 = vmax.f32 %v2908, 0.0
    %v3992 = vmax.f32 %v3251, 0.0
    %v3993 = vmax.f32 %v3594, 0.0
    %v3994 = vmax.f32 %v3937, 0.0
    %v3995 = vmax.f32 %v2910, 0.0
    %v3996 = vmax.f32 %v3253, 0.0
    %v3997 = vmax.f32 %v3596, 0.0
    %v3998 = vmax.f32 %v3939, 0.0
    %v3999 = vmax.f32 %v2913, 0.0
    %v4000 = vmax.f32 %v3256, 0.0
    %v4001 = vmax.f32 %v3599, 0.0
    %v4002 = vmax.f32 %v3942, 0.0
    %v4003 = vmax.f32 %v2915, 0.0
    %v4004 = vmax.f32 %v3258, 0.0
    %v4005 = vmax.f32 %v3601, 0.0
    %v4006 = vmax.f32 %v3944, 0.0
    %v4007 = vmax.f32 %v2918, 0.0
    %v4008 = vmax.f32 %v3261, 0.0
    %v4009 = vmax.f32 %v3604, 0.0
    %v4010 = vmax.f32 %v3947, 0.0
    %v4011 = vmax.f32 %v2920, 0.0
    %v4012 = vmax.f32 %v3263, 0.0
    %v4013 = vmax.f32 %v3606, 0.0
    %v4014 = vmax.f32 %v3949, 0.0
    %v4015 = vpack.c.bf16 %v3955, %v3951
    %v4016 = vpack.c.bf16 %v3956, %v3952
    %v4017 = vpack.c.bf16 %v3957, %v3953
    %v4018 = vpack.c.bf16 %v3958, %v3954
    %v4019 = vpack.c.bf16 %v3963, %v3959
    %v4020 = vpack.c.bf16 %v3964, %v3960
    %v4021 = vpack.c.bf16 %v3965, %v3961
    %v4022 = vpack.c.bf16 %v3966, %v3962
    %v4023 = vpack.c.bf16 %v3971, %v3967
    %v4024 = vpack.c.bf16 %v3972, %v3968
    %v4025 = vpack.c.bf16 %v3973, %v3969
    %v4026 = vpack.c.bf16 %v3974, %v3970
    %v4027 = vpack.c.bf16 %v3979, %v3975
    %v4028 = vpack.c.bf16 %v3980, %v3976
    %v4029 = vpack.c.bf16 %v3981, %v3977
    %v4030 = vpack.c.bf16 %v3982, %v3978
    %v4031 = vpack.c.bf16 %v3987, %v3983
    %v4032 = vpack.c.bf16 %v3988, %v3984
    %v4033 = vpack.c.bf16 %v3989, %v3985
    %v4034 = vpack.c.bf16 %v3990, %v3986
    %v4035 = vpack.c.bf16 %v3995, %v3991
    %v4036 = vpack.c.bf16 %v3996, %v3992
    %v4037 = vpack.c.bf16 %v3997, %v3993
    %v4038 = vpack.c.bf16 %v3998, %v3994
    %v4039 = vpack.c.bf16 %v4003, %v3999
    %v4040 = vpack.c.bf16 %v4004, %v4000
    %v4041 = vpack.c.bf16 %v4005, %v4001
    %v4042 = vpack.c.bf16 %v4006, %v4002
    %v4043 = vpack.c.bf16 %v4011, %v4007
    %v4044 = vpack.c.bf16 %v4012, %v4008
    %v4045 = vpack.c.bf16 %v4013, %v4009
    %v4046 = vpack.c.bf16 %v4014, %v4010
    %v4047 = vld [vmem:[#allocation5] sm:$0xf]
    %v4048 = vld [vmem:[#allocation5 + $0x4] sm:$0xf]
    %v4049 = vld [vmem:[#allocation5 + $0x8] sm:$0xf]
    %v4050 = vld [vmem:[#allocation5 + $0xc] sm:$0xf]
    %v4051 = vld [vmem:[#allocation5 + $0x10] sm:$0xf]
    %v4052 = vld [vmem:[#allocation5 + $0x14] sm:$0xf]
    %v4053 = vld [vmem:[#allocation5 + $0x18] sm:$0xf]
    %v4054 = vld [vmem:[#allocation5 + $0x1c] sm:$0xf]
    %v4055 = vld [vmem:[#allocation5 + $0x20] sm:$0xf]
    %v4056 = vld [vmem:[#allocation5 + $0x24] sm:$0xf]
    %v4057 = vld [vmem:[#allocation5 + $0x28] sm:$0xf]
    %v4058 = vld [vmem:[#allocation5 + $0x2c] sm:$0xf]
    %v4059 = vld [vmem:[#allocation5 + $0x30] sm:$0xf]
    %v4060 = vld [vmem:[#allocation5 + $0x34] sm:$0xf]
    %v4061 = vld [vmem:[#allocation5 + $0x38] sm:$0xf]
    %v4062 = vld [vmem:[#allocation5 + $0x3c] sm:$0xf]
    %v4063 = vld [vmem:[#allocation5 + $0x40] sm:$0xf]
    %v4064 = vld [vmem:[#allocation5 + $0x44] sm:$0xf]
    %v4065 = vld [vmem:[#allocation5 + $0x48] sm:$0xf]
    %v4066 = vld [vmem:[#allocation5 + $0x4c] sm:$0xf]
    %v4067 = vld [vmem:[#allocation5 + $0x50] sm:$0xf]
    %v4068 = vld [vmem:[#allocation5 + $0x54] sm:$0xf]
    %v4069 = vld [vmem:[#allocation5 + $0x58] sm:$0xf]
    %v4070 = vld [vmem:[#allocation5 + $0x5c] sm:$0xf]
    %v4071 = vld [vmem:[#allocation5 + $0x60] sm:$0xf]
    %v4072 = vld [vmem:[#allocation5 + $0x64] sm:$0xf]
    %v4073 = vld [vmem:[#allocation5 + $0x68] sm:$0xf]
    %v4074 = vld [vmem:[#allocation5 + $0x6c] sm:$0xf]
    %v4075 = vld [vmem:[#allocation5 + $0x70] sm:$0xf]
    %v4076 = vld [vmem:[#allocation5 + $0x74] sm:$0xf]
    %v4077 = vld [vmem:[#allocation5 + $0x78] sm:$0xf]
    %v4078 = vld [vmem:[#allocation5 + $0x7c] sm:$0xf]
    %v4079 = vld [vmem:[#allocation5 + $0x80] sm:$0xf]
    %v4080 = vld [vmem:[#allocation5 + $0x84] sm:$0xf]
    %v4081 = vld [vmem:[#allocation5 + $0x88] sm:$0xf]
    %v4082 = vld [vmem:[#allocation5 + $0x8c] sm:$0xf]
    %v4083 = vld [vmem:[#allocation5 + $0x90] sm:$0xf]
    %v4084 = vld [vmem:[#allocation5 + $0x94] sm:$0xf]
    %v4085 = vld [vmem:[#allocation5 + $0x98] sm:$0xf]
    %v4086 = vld [vmem:[#allocation5 + $0x9c] sm:$0xf]
    %v4087 = vld [vmem:[#allocation5 + $0xa0] sm:$0xf]
    %v4088 = vld [vmem:[#allocation5 + $0xa4] sm:$0xf]
    %v4089 = vld [vmem:[#allocation5 + $0xa8] sm:$0xf]
    %v4090 = vld [vmem:[#allocation5 + $0xac] sm:$0xf]
    %v4091 = vld [vmem:[#allocation5 + $0xb0] sm:$0xf]
    %v4092 = vld [vmem:[#allocation5 + $0xb4] sm:$0xf]
    %v4093 = vld [vmem:[#allocation5 + $0xb8] sm:$0xf]
    %v4094 = vld [vmem:[#allocation5 + $0xbc] sm:$0xf]
    %v4095 = vld [vmem:[#allocation5 + $0xc0] sm:$0xf]
    %v4096 = vld [vmem:[#allocation5 + $0xc4] sm:$0xf]
    %v4097 = vld [vmem:[#allocation5 + $0xc8] sm:$0xf]
    %v4098 = vld [vmem:[#allocation5 + $0xcc] sm:$0xf]
    %v4099 = vld [vmem:[#allocation5 + $0xd0] sm:$0xf]
    %v4100 = vld [vmem:[#allocation5 + $0xd4] sm:$0xf]
    %v4101 = vld [vmem:[#allocation5 + $0xd8] sm:$0xf]
    %v4102 = vld [vmem:[#allocation5 + $0xdc] sm:$0xf]
    %v4103 = vld [vmem:[#allocation5 + $0xe0] sm:$0xf]
    %v4104 = vld [vmem:[#allocation5 + $0xe4] sm:$0xf]
    %v4105 = vld [vmem:[#allocation5 + $0xe8] sm:$0xf]
    %v4106 = vld [vmem:[#allocation5 + $0xec] sm:$0xf]
    %v4107 = vld [vmem:[#allocation5 + $0xf0] sm:$0xf]
    %v4108 = vld [vmem:[#allocation5 + $0xf4] sm:$0xf]
    %v4109 = vld [vmem:[#allocation5 + $0xf8] sm:$0xf]
    %v4110 = vld [vmem:[#allocation5 + $0xfc] sm:$0xf]
    %v4111 = vld [vmem:[%s4] sm:$0x1]
    %v4113 = vperm.slane %v4111, 0
    %v4179 = vunpack.c.l.b16 %v4047
    %v4180 = vunpack.c.l.b16 %v4048
    %v4181 = vunpack.c.l.b16 %v4049
    %v4182 = vunpack.c.l.b16 %v4050
    %v4183 = vunpack.c.l.b16 %v4051
    %v4184 = vunpack.c.l.b16 %v4052
    %v4185 = vunpack.c.l.b16 %v4053
    %v4186 = vunpack.c.l.b16 %v4054
    %v4187 = vunpack.c.l.b16 %v4055
    %v4188 = vunpack.c.l.b16 %v4056
    %v4189 = vunpack.c.l.b16 %v4057
    %v4190 = vunpack.c.l.b16 %v4058
    %v4191 = vunpack.c.l.b16 %v4059
    %v4192 = vunpack.c.l.b16 %v4060
    %v4193 = vunpack.c.l.b16 %v4061
    %v4194 = vunpack.c.l.b16 %v4062
    %v4195 = vunpack.c.l.b16 %v4063
    %v4196 = vunpack.c.l.b16 %v4064
    %v4197 = vunpack.c.l.b16 %v4065
    %v4198 = vunpack.c.l.b16 %v4066
    %v4199 = vunpack.c.l.b16 %v4067
    %v4200 = vunpack.c.l.b16 %v4068
    %v4201 = vunpack.c.l.b16 %v4069
    %v4202 = vunpack.c.l.b16 %v4070
    %v4203 = vunpack.c.l.b16 %v4071
    %v4204 = vunpack.c.l.b16 %v4072
    %v4205 = vunpack.c.l.b16 %v4073
    %v4206 = vunpack.c.l.b16 %v4074
    %v4207 = vunpack.c.l.b16 %v4075
    %v4208 = vunpack.c.l.b16 %v4076
    %v4209 = vunpack.c.l.b16 %v4077
    %v4210 = vunpack.c.l.b16 %v4078
    %v4211 = vunpack.c.l.b16 %v4079
    %v4212 = vunpack.c.l.b16 %v4080
    %v4213 = vunpack.c.l.b16 %v4081
    %v4214 = vunpack.c.l.b16 %v4082
    %v4215 = vunpack.c.l.b16 %v4083
    %v4216 = vunpack.c.l.b16 %v4084
    %v4217 = vunpack.c.l.b16 %v4085
    %v4218 = vunpack.c.l.b16 %v4086
    %v4219 = vunpack.c.l.b16 %v4087
    %v4220 = vunpack.c.l.b16 %v4088
    %v4221 = vunpack.c.l.b16 %v4089
    %v4222 = vunpack.c.l.b16 %v4090
    %v4223 = vunpack.c.l.b16 %v4091
    %v4224 = vunpack.c.l.b16 %v4092
    %v4225 = vunpack.c.l.b16 %v4093
    %v4226 = vunpack.c.l.b16 %v4094
    %v4227 = vunpack.c.l.b16 %v4095
    %v4228 = vunpack.c.l.b16 %v4096
    %v4229 = vunpack.c.l.b16 %v4097
    %v4230 = vunpack.c.l.b16 %v4098
    %v4231 = vunpack.c.l.b16 %v4099
    %v4232 = vunpack.c.l.b16 %v4100
    %v4233 = vunpack.c.l.b16 %v4101
    %v4234 = vunpack.c.l.b16 %v4102
    %v4235 = vunpack.c.l.b16 %v4103
    %v4236 = vunpack.c.l.b16 %v4104
    %v4237 = vunpack.c.l.b16 %v4105
    %v4238 = vunpack.c.l.b16 %v4106
    %v4239 = vunpack.c.l.b16 %v4107
    %v4240 = vunpack.c.l.b16 %v4108
    %v4241 = vunpack.c.l.b16 %v4109
    %v4242 = vunpack.c.l.b16 %v4110
    %v4243 = vpack.c.b16 %v4180, %v4179
    %v4244 = vpack.c.b16 %v4182, %v4181
    %v4245 = vpack.c.b16 %v4184, %v4183
    %v4246 = vpack.c.b16 %v4186, %v4185
    %v4247 = vpack.c.b16 %v4188, %v4187
    %v4248 = vpack.c.b16 %v4190, %v4189
    %v4249 = vpack.c.b16 %v4192, %v4191
    %v4250 = vpack.c.b16 %v4194, %v4193
    %v4251 = vpack.c.b16 %v4196, %v4195
    %v4252 = vpack.c.b16 %v4198, %v4197
    %v4253 = vpack.c.b16 %v4200, %v4199
    %v4254 = vpack.c.b16 %v4202, %v4201
    %v4255 = vpack.c.b16 %v4204, %v4203
    %v4256 = vpack.c.b16 %v4206, %v4205
    %v4257 = vpack.c.b16 %v4208, %v4207
    %v4258 = vpack.c.b16 %v4210, %v4209
    %v4259 = vpack.c.b16 %v4212, %v4211
    %v4260 = vpack.c.b16 %v4214, %v4213
    %v4261 = vpack.c.b16 %v4216, %v4215
    %v4262 = vpack.c.b16 %v4218, %v4217
    %v4263 = vpack.c.b16 %v4220, %v4219
    %v4264 = vpack.c.b16 %v4222, %v4221
    %v4265 = vpack.c.b16 %v4224, %v4223
    %v4266 = vpack.c.b16 %v4226, %v4225
    %v4267 = vpack.c.b16 %v4228, %v4227
    %v4268 = vpack.c.b16 %v4230, %v4229
    %v4269 = vpack.c.b16 %v4232, %v4231
    %v4270 = vpack.c.b16 %v4234, %v4233
    %v4271 = vpack.c.b16 %v4236, %v4235
    %v4272 = vpack.c.b16 %v4238, %v4237
    %v4273 = vpack.c.b16 %v4240, %v4239
    %v4274 = vpack.c.b16 %v4242, %v4241
    %4307 = vmatpush.bf16.msra.mxu0 %v4250
    %4308 = vmatpush.bf16.msra.mxu0 %v4249
    %4309 = vmatpush.bf16.msra.mxu0 %v4248
    %4310 = vmatpush.bf16.msra.mxu0 %v4247
    %4311 = vmatpush.bf16.msra.mxu0 %v4246
    %4312 = vmatpush.bf16.msra.mxu0 %v4245
    %4313 = vmatpush.bf16.msra.mxu0 %v4244
    %4314 = vmatpush.bf16.msra.mxu0 %v4243
    %4315 = vmatmul.bf16.gmra.mxu0 %v4015
    %v4316 = vpop.f32.mrf.mxu0
    %v4317 = vadd.f32 %v4113, %v4316
    %v4318 = vpop.f32.mrf.mxu0
    %v4319 = vadd.f32 %v4113, %v4318
    %4320 = vmatmul.bf16.gmra.mxu0 %v4019
    %v4321 = vpop.f32.mrf.mxu0
    %v4322 = vadd.f32 %v4113, %v4321
    %v4323 = vpop.f32.mrf.mxu0
    %v4324 = vadd.f32 %v4113, %v4323
    %4325 = vmatmul.bf16.gmra.mxu0 %v4023
    %v4326 = vpop.f32.mrf.mxu0
    %v4327 = vadd.f32 %v4113, %v4326
    %v4328 = vpop.f32.mrf.mxu0
    %v4329 = vadd.f32 %v4113, %v4328
    %4330 = vmatmul.bf16.gmra.mxu0 %v4027
    %v4331 = vpop.f32.mrf.mxu0
    %v4332 = vadd.f32 %v4113, %v4331
    %v4333 = vpop.f32.mrf.mxu0
    %v4334 = vadd.f32 %v4113, %v4333
    %4335 = vmatmul.bf16.gmra.mxu0 %v4031
    %v4336 = vpop.f32.mrf.mxu0
    %v4337 = vadd.f32 %v4113, %v4336
    %v4338 = vpop.f32.mrf.mxu0
    %v4339 = vadd.f32 %v4113, %v4338
    %4340 = vmatmul.bf16.gmra.mxu0 %v4035
    %v4341 = vpop.f32.mrf.mxu0
    %v4342 = vadd.f32 %v4113, %v4341
    %v4343 = vpop.f32.mrf.mxu0
    %v4344 = vadd.f32 %v4113, %v4343
    %4345 = vmatmul.bf16.gmra.mxu0 %v4039
    %v4346 = vpop.f32.mrf.mxu0
    %v4347 = vadd.f32 %v4113, %v4346
    %v4348 = vpop.f32.mrf.mxu0
    %v4349 = vadd.f32 %v4113, %v4348
    %4350 = vmatmul.bf16.gmra.mxu0 %v4043
    %v4351 = vpop.f32.mrf.mxu0
    %v4352 = vadd.f32 %v4113, %v4351
    %v4353 = vpop.f32.mrf.mxu0
    %v4354 = vadd.f32 %v4113, %v4353
    %4355 = vdwg.mxu0
    %4356 = vmatpush.bf16.msra.mxu0 %v4258
    %4357 = vmatpush.bf16.msra.mxu0 %v4257
    %4358 = vmatpush.bf16.msra.mxu0 %v4256
    %4359 = vmatpush.bf16.msra.mxu0 %v4255
    %4360 = vmatpush.bf16.msra.mxu0 %v4254
    %4361 = vmatpush.bf16.msra.mxu0 %v4253
    %4362 = vmatpush.bf16.msra.mxu0 %v4252
    %4363 = vmatpush.bf16.msra.mxu0 %v4251
    %4364 = vmatmul.bf16.gmra.mxu0 %v4016
    %v4365 = vpop.f32.mrf.mxu0
    %v4366 = vadd.f32 %v4317, %v4365
    %v4367 = vpop.f32.mrf.mxu0
    %v4368 = vadd.f32 %v4319, %v4367
    %4369 = vmatmul.bf16.gmra.mxu0 %v4020
    %v4370 = vpop.f32.mrf.mxu0
    %v4371 = vadd.f32 %v4322, %v4370
    %v4372 = vpop.f32.mrf.mxu0
    %v4373 = vadd.f32 %v4324, %v4372
    %4374 = vmatmul.bf16.gmra.mxu0 %v4024
    %v4375 = vpop.f32.mrf.mxu0
    %v4376 = vadd.f32 %v4327, %v4375
    %v4377 = vpop.f32.mrf.mxu0
    %v4378 = vadd.f32 %v4329, %v4377
    %4379 = vmatmul.bf16.gmra.mxu0 %v4028
    %v4380 = vpop.f32.mrf.mxu0
    %v4381 = vadd.f32 %v4332, %v4380
    %v4382 = vpop.f32.mrf.mxu0
    %v4383 = vadd.f32 %v4334, %v4382
    %4384 = vmatmul.bf16.gmra.mxu0 %v4032
    %v4385 = vpop.f32.mrf.mxu0
    %v4386 = vadd.f32 %v4337, %v4385
    %v4387 = vpop.f32.mrf.mxu0
    %v4388 = vadd.f32 %v4339, %v4387
    %4389 = vmatmul.bf16.gmra.mxu0 %v4036
    %v4390 = vpop.f32.mrf.mxu0
    %v4391 = vadd.f32 %v4342, %v4390
    %v4392 = vpop.f32.mrf.mxu0
    %v4393 = vadd.f32 %v4344, %v4392
    %4394 = vmatmul.bf16.gmra.mxu0 %v4040
    %v4395 = vpop.f32.mrf.mxu0
    %v4396 = vadd.f32 %v4347, %v4395
    %v4397 = vpop.f32.mrf.mxu0
    %v4398 = vadd.f32 %v4349, %v4397
    %4399 = vmatmul.bf16.gmra.mxu0 %v4044
    %v4400 = vpop.f32.mrf.mxu0
    %v4401 = vadd.f32 %v4352, %v4400
    %v4402 = vpop.f32.mrf.mxu0
    %v4403 = vadd.f32 %v4354, %v4402
    %4404 = vdwg.mxu0
    %4405 = vmatpush.bf16.msra.mxu0 %v4266
    %4406 = vmatpush.bf16.msra.mxu0 %v4265
    %4407 = vmatpush.bf16.msra.mxu0 %v4264
    %4408 = vmatpush.bf16.msra.mxu0 %v4263
    %4409 = vmatpush.bf16.msra.mxu0 %v4262
    %4410 = vmatpush.bf16.msra.mxu0 %v4261
    %4411 = vmatpush.bf16.msra.mxu0 %v4260
    %4412 = vmatpush.bf16.msra.mxu0 %v4259
    %4413 = vmatmul.bf16.gmra.mxu0 %v4017
    %v4414 = vpop.f32.mrf.mxu0
    %v4415 = vadd.f32 %v4366, %v4414
    %v4416 = vpop.f32.mrf.mxu0
    %v4417 = vadd.f32 %v4368, %v4416
    %4418 = vmatmul.bf16.gmra.mxu0 %v4021
    %v4419 = vpop.f32.mrf.mxu0
    %v4420 = vadd.f32 %v4371, %v4419
    %v4421 = vpop.f32.mrf.mxu0
    %v4422 = vadd.f32 %v4373, %v4421
    %4423 = vmatmul.bf16.gmra.mxu0 %v4025
    %v4424 = vpop.f32.mrf.mxu0
    %v4425 = vadd.f32 %v4376, %v4424
    %v4426 = vpop.f32.mrf.mxu0
    %v4427 = vadd.f32 %v4378, %v4426
    %4428 = vmatmul.bf16.gmra.mxu0 %v4029
    %v4429 = vpop.f32.mrf.mxu0
    %v4430 = vadd.f32 %v4381, %v4429
    %v4431 = vpop.f32.mrf.mxu0
    %v4432 = vadd.f32 %v4383, %v4431
    %4433 = vmatmul.bf16.gmra.mxu0 %v4033
    %v4434 = vpop.f32.mrf.mxu0
    %v4435 = vadd.f32 %v4386, %v4434
    %v4436 = vpop.f32.mrf.mxu0
    %v4437 = vadd.f32 %v4388, %v4436
    %4438 = vmatmul.bf16.gmra.mxu0 %v4037
    %v4439 = vpop.f32.mrf.mxu0
    %v4440 = vadd.f32 %v4391, %v4439
    %v4441 = vpop.f32.mrf.mxu0
    %v4442 = vadd.f32 %v4393, %v4441
    %4443 = vmatmul.bf16.gmra.mxu0 %v4041
    %v4444 = vpop.f32.mrf.mxu0
    %v4445 = vadd.f32 %v4396, %v4444
    %v4446 = vpop.f32.mrf.mxu0
    %v4447 = vadd.f32 %v4398, %v4446
    %4448 = vmatmul.bf16.gmra.mxu0 %v4045
    %v4449 = vpop.f32.mrf.mxu0
    %v4450 = vadd.f32 %v4401, %v4449
    %v4451 = vpop.f32.mrf.mxu0
    %v4452 = vadd.f32 %v4403, %v4451
    %4453 = vdwg.mxu0
    %4454 = vmatpush.bf16.msra.mxu0 %v4274
    %4455 = vmatpush.bf16.msra.mxu0 %v4273
    %4456 = vmatpush.bf16.msra.mxu0 %v4272
    %4457 = vmatpush.bf16.msra.mxu0 %v4271
    %4458 = vmatpush.bf16.msra.mxu0 %v4270
    %4459 = vmatpush.bf16.msra.mxu0 %v4269
    %4460 = vmatpush.bf16.msra.mxu0 %v4268
    %4461 = vmatpush.bf16.msra.mxu0 %v4267
    %4462 = vmatmul.bf16.gmra.mxu0 %v4018
    %v4463 = vpop.f32.mrf.mxu0
    %v4464 = vadd.f32 %v4415, %v4463
    %v4465 = vpop.f32.mrf.mxu0
    %v4466 = vadd.f32 %v4417, %v4465
    %4467 = vmatmul.bf16.gmra.mxu0 %v4022
    %v4468 = vpop.f32.mrf.mxu0
    %v4469 = vadd.f32 %v4420, %v4468
    %v4470 = vpop.f32.mrf.mxu0
    %v4471 = vadd.f32 %v4422, %v4470
    %4472 = vmatmul.bf16.gmra.mxu0 %v4026
    %v4473 = vpop.f32.mrf.mxu0
    %v4474 = vadd.f32 %v4425, %v4473
    %v4475 = vpop.f32.mrf.mxu0
    %v4476 = vadd.f32 %v4427, %v4475
    %4477 = vmatmul.bf16.gmra.mxu0 %v4030
    %v4478 = vpop.f32.mrf.mxu0
    %v4479 = vadd.f32 %v4430, %v4478
    %v4480 = vpop.f32.mrf.mxu0
    %v4481 = vadd.f32 %v4432, %v4480
    %4482 = vmatmul.bf16.gmra.mxu0 %v4034
    %v4483 = vpop.f32.mrf.mxu0
    %v4484 = vadd.f32 %v4435, %v4483
    %v4485 = vpop.f32.mrf.mxu0
    %v4486 = vadd.f32 %v4437, %v4485
    %4487 = vmatmul.bf16.gmra.mxu0 %v4038
    %v4488 = vpop.f32.mrf.mxu0
    %v4489 = vadd.f32 %v4440, %v4488
    %v4490 = vpop.f32.mrf.mxu0
    %v4491 = vadd.f32 %v4442, %v4490
    %4492 = vmatmul.bf16.gmra.mxu0 %v4042
    %v4493 = vpop.f32.mrf.mxu0
    %v4494 = vadd.f32 %v4445, %v4493
    %v4495 = vpop.f32.mrf.mxu0
    %v4496 = vadd.f32 %v4447, %v4495
    %4497 = vmatmul.bf16.gmra.mxu0 %v4046
    %v4498 = vpop.f32.mrf.mxu0
    %v4499 = vadd.f32 %v4450, %v4498
    %v4500 = vpop.f32.mrf.mxu0
    %v4501 = vadd.f32 %v4452, %v4500
    %4502 = vdwg.mxu0
    %v4503 = vmax.f32 %v4464, 0.0
    %v4504 = vmax.f32 %v4466, 0.0
    %v4505 = vmax.f32 %v4469, 0.0
    %v4506 = vmax.f32 %v4471, 0.0
    %v4507 = vmax.f32 %v4474, 0.0
    %v4508 = vmax.f32 %v4476, 0.0
    %v4509 = vmax.f32 %v4479, 0.0
    %v4510 = vmax.f32 %v4481, 0.0
    %v4511 = vmax.f32 %v4484, 0.0
    %v4512 = vmax.f32 %v4486, 0.0
    %v4513 = vmax.f32 %v4489, 0.0
    %v4514 = vmax.f32 %v4491, 0.0
    %v4515 = vmax.f32 %v4494, 0.0
    %v4516 = vmax.f32 %v4496, 0.0
    %v4517 = vmax.f32 %v4499, 0.0
    %v4518 = vmax.f32 %v4501, 0.0
    %v4519 = vpack.c.bf16 %v4504, %v4503
    %v4520 = vpack.c.bf16 %v4506, %v4505
    %v4521 = vpack.c.bf16 %v4508, %v4507
    %v4522 = vpack.c.bf16 %v4510, %v4509
    %v4523 = vpack.c.bf16 %v4512, %v4511
    %v4524 = vpack.c.bf16 %v4514, %v4513
    %v4525 = vpack.c.bf16 %v4516, %v4515
    %v4526 = vpack.c.bf16 %v4518, %v4517
    %v4527 = vld [vmem:[%s5] sm:$0xf]
    %v4528 = vld [vmem:[%s5 + $0x4] sm:$0xf]
    %v4529 = vld [vmem:[%s5 + $0x8] sm:$0xf]
    %v4530 = vld [vmem:[%s5 + $0xc] sm:$0xf]
    %v4531 = vld [vmem:[%s5 + $0x10] sm:$0xf]
    %v4532 = vld [vmem:[%s5 + $0x14] sm:$0xf]
    %v4533 = vld [vmem:[%s5 + $0x18] sm:$0xf]
    %v4534 = vld [vmem:[%s5 + $0x1c] sm:$0xf]
    %v4535 = vld [vmem:[%s5 + $0x20] sm:$0xf]
    %v4536 = vld [vmem:[%s5 + $0x24] sm:$0xf]
    %v4537 = vld [vmem:[%s5 + $0x28] sm:$0xf]
    %v4538 = vld [vmem:[%s5 + $0x2c] sm:$0xf]
    %v4539 = vld [vmem:[%s5 + $0x30] sm:$0xf]
    %v4540 = vld [vmem:[%s5 + $0x34] sm:$0xf]
    %v4541 = vld [vmem:[%s5 + $0x38] sm:$0xf]
    %v4542 = vld [vmem:[%s5 + $0x3c] sm:$0xf]
    %v4543 = vld [vmem:[%s6] sm:$0x1]
    %v4545 = vperm.slane %v4543, 0
    %v4563 = vunpack.c.l.b16 %v4527
    %v4564 = vunpack.c.l.b16 %v4528
    %v4565 = vunpack.c.l.b16 %v4529
    %v4566 = vunpack.c.l.b16 %v4530
    %v4567 = vunpack.c.l.b16 %v4531
    %v4568 = vunpack.c.l.b16 %v4532
    %v4569 = vunpack.c.l.b16 %v4533
    %v4570 = vunpack.c.l.b16 %v4534
    %v4571 = vunpack.c.l.b16 %v4535
    %v4572 = vunpack.c.l.b16 %v4536
    %v4573 = vunpack.c.l.b16 %v4537
    %v4574 = vunpack.c.l.b16 %v4538
    %v4575 = vunpack.c.l.b16 %v4539
    %v4576 = vunpack.c.l.b16 %v4540
    %v4577 = vunpack.c.l.b16 %v4541
    %v4578 = vunpack.c.l.b16 %v4542
    %v4579 = vpack.c.b16 %v4564, %v4563
    %v4580 = vpack.c.b16 %v4566, %v4565
    %v4581 = vpack.c.b16 %v4568, %v4567
    %v4582 = vpack.c.b16 %v4570, %v4569
    %v4583 = vpack.c.b16 %v4572, %v4571
    %v4584 = vpack.c.b16 %v4574, %v4573
    %v4585 = vpack.c.b16 %v4576, %v4575
    %v4586 = vpack.c.b16 %v4578, %v4577
    %4595 = vmatpush.bf16.msra.mxu0 %v4586
    %4596 = vmatpush.bf16.msra.mxu0 %v4585
    %4597 = vmatpush.bf16.msra.mxu0 %v4584
    %4598 = vmatpush.bf16.msra.mxu0 %v4583
    %4599 = vmatpush.bf16.msra.mxu0 %v4582
    %4600 = vmatpush.bf16.msra.mxu0 %v4581
    %4601 = vmatpush.bf16.msra.mxu0 %v4580
    %4602 = vmatpush.bf16.msra.mxu0 %v4579
    %4603 = vmatmul.bf16.gmra.mxu0 %v4519
    %v4604 = vpop.f32.mrf.mxu0
    %v4605 = vadd.f32 %v4545, %v4604
    %v4606 = vpop.f32.mrf.mxu0
    %v4607 = vadd.f32 %v4545, %v4606
    %4608 = vmatmul.bf16.gmra.mxu0 %v4520
    %v4609 = vpop.f32.mrf.mxu0
    %v4610 = vadd.f32 %v4545, %v4609
    %v4611 = vpop.f32.mrf.mxu0
    %v4612 = vadd.f32 %v4545, %v4611
    %4613 = vmatmul.bf16.gmra.mxu0 %v4521
    %v4614 = vpop.f32.mrf.mxu0
    %v4615 = vadd.f32 %v4545, %v4614
    %v4616 = vpop.f32.mrf.mxu0
    %v4617 = vadd.f32 %v4545, %v4616
    %4618 = vmatmul.bf16.gmra.mxu0 %v4522
    %v4619 = vpop.f32.mrf.mxu0
    %v4620 = vadd.f32 %v4545, %v4619
    %v4621 = vpop.f32.mrf.mxu0
    %v4622 = vadd.f32 %v4545, %v4621
    %4623 = vmatmul.bf16.gmra.mxu0 %v4523
    %v4624 = vpop.f32.mrf.mxu0
    %v4625 = vadd.f32 %v4545, %v4624
    %v4626 = vpop.f32.mrf.mxu0
    %v4627 = vadd.f32 %v4545, %v4626
    %4628 = vmatmul.bf16.gmra.mxu0 %v4524
    %v4629 = vpop.f32.mrf.mxu0
    %v4630 = vadd.f32 %v4545, %v4629
    %v4631 = vpop.f32.mrf.mxu0
    %v4632 = vadd.f32 %v4545, %v4631
    %4633 = vmatmul.bf16.gmra.mxu0 %v4525
    %v4634 = vpop.f32.mrf.mxu0
    %v4635 = vadd.f32 %v4545, %v4634
    %v4636 = vpop.f32.mrf.mxu0
    %v4637 = vadd.f32 %v4545, %v4636
    %4638 = vmatmul.bf16.gmra.mxu0 %v4526
    %v4639 = vpop.f32.mrf.mxu0
    %v4640 = vadd.f32 %v4545, %v4639
    %v4641 = vpop.f32.mrf.mxu0
    %v4642 = vadd.f32 %v4545, %v4641
    %4643 = vdwg.mxu0
    %v4644 = vmax.f32 %v4605, 0.0
    %v4645 = vmax.f32 %v4607, 0.0
    %v4646 = vmax.f32 %v4610, 0.0
    %v4647 = vmax.f32 %v4612, 0.0
    %v4648 = vmax.f32 %v4615, 0.0
    %v4649 = vmax.f32 %v4617, 0.0
    %v4650 = vmax.f32 %v4620, 0.0
    %v4651 = vmax.f32 %v4622, 0.0
    %v4652 = vmax.f32 %v4625, 0.0
    %v4653 = vmax.f32 %v4627, 0.0
    %v4654 = vmax.f32 %v4630, 0.0
    %v4655 = vmax.f32 %v4632, 0.0
    %v4656 = vmax.f32 %v4635, 0.0
    %v4657 = vmax.f32 %v4637, 0.0
    %v4658 = vmax.f32 %v4640, 0.0
    %v4659 = vmax.f32 %v4642, 0.0
    %v4660 = vpack.c.bf16 %v4645, %v4644
    %v4661 = vpack.c.bf16 %v4647, %v4646
    %v4662 = vpack.c.bf16 %v4649, %v4648
    %v4663 = vpack.c.bf16 %v4651, %v4650
    %v4664 = vpack.c.bf16 %v4653, %v4652
    %v4665 = vpack.c.bf16 %v4655, %v4654
    %v4666 = vpack.c.bf16 %v4657, %v4656
    %v4667 = vpack.c.bf16 %v4659, %v4658
    %v4668 = vld [vmem:[%s7] sm:$0xf]
    %v4669 = vld [vmem:[%s7 + $0x4] sm:$0xf]
    %v4670 = vld [vmem:[%s7 + $0x8] sm:$0xf]
    %v4671 = vld [vmem:[%s7 + $0xc] sm:$0xf]
    %v4672 = vld [vmem:[%s7 + $0x10] sm:$0xf]
    %v4673 = vld [vmem:[%s7 + $0x14] sm:$0xf]
    %v4674 = vld [vmem:[%s7 + $0x18] sm:$0xf]
    %v4675 = vld [vmem:[%s7 + $0x1c] sm:$0xf]
    %v4676 = vld [vmem:[%s7 + $0x20] sm:$0xf]
    %v4677 = vld [vmem:[%s7 + $0x24] sm:$0xf]
    %v4678 = vld [vmem:[%s7 + $0x28] sm:$0xf]
    %v4679 = vld [vmem:[%s7 + $0x2c] sm:$0xf]
    %v4680 = vld [vmem:[%s7 + $0x30] sm:$0xf]
    %v4681 = vld [vmem:[%s7 + $0x34] sm:$0xf]
    %v4682 = vld [vmem:[%s7 + $0x38] sm:$0xf]
    %v4683 = vld [vmem:[%s7 + $0x3c] sm:$0xf]
    %v4684 = vld [vmem:[%s8] sm:$0x1]
    %v4686 = vperm.slane %v4684, 0
    %v4704 = vunpack.c.l.b16 %v4668
    %v4705 = vunpack.c.l.b16 %v4669
    %v4706 = vunpack.c.l.b16 %v4670
    %v4707 = vunpack.c.l.b16 %v4671
    %v4708 = vunpack.c.l.b16 %v4672
    %v4709 = vunpack.c.l.b16 %v4673
    %v4710 = vunpack.c.l.b16 %v4674
    %v4711 = vunpack.c.l.b16 %v4675
    %v4712 = vunpack.c.l.b16 %v4676
    %v4713 = vunpack.c.l.b16 %v4677
    %v4714 = vunpack.c.l.b16 %v4678
    %v4715 = vunpack.c.l.b16 %v4679
    %v4716 = vunpack.c.l.b16 %v4680
    %v4717 = vunpack.c.l.b16 %v4681
    %v4718 = vunpack.c.l.b16 %v4682
    %v4719 = vunpack.c.l.b16 %v4683
    %v4720 = vpack.c.b16 %v4705, %v4704
    %v4721 = vpack.c.b16 %v4707, %v4706
    %v4722 = vpack.c.b16 %v4709, %v4708
    %v4723 = vpack.c.b16 %v4711, %v4710
    %v4724 = vpack.c.b16 %v4713, %v4712
    %v4725 = vpack.c.b16 %v4715, %v4714
    %v4726 = vpack.c.b16 %v4717, %v4716
    %v4727 = vpack.c.b16 %v4719, %v4718
    %4736 = vmatpush.bf16.msra.mxu0 %v4727
    %4737 = vmatpush.bf16.msra.mxu0 %v4726
    %4738 = vmatpush.bf16.msra.mxu0 %v4725
    %4739 = vmatpush.bf16.msra.mxu0 %v4724
    %4740 = vmatpush.bf16.msra.mxu0 %v4723
    %4741 = vmatpush.bf16.msra.mxu0 %v4722
    %4742 = vmatpush.bf16.msra.mxu0 %v4721
    %4743 = vmatpush.bf16.msra.mxu0 %v4720
    %4744 = vmatmul.bf16.gmra.mxu0 %v4660
    %v4745 = vpop.f32.mrf.mxu0
    %v4746 = vadd.f32 %v4686, %v4745
    %v4747 = vpop.f32.mrf.mxu0
    %v4748 = vadd.f32 %v4686, %v4747
    %4749 = vmatmul.bf16.gmra.mxu0 %v4661
    %v4750 = vpop.f32.mrf.mxu0
    %v4751 = vadd.f32 %v4686, %v4750
    %v4752 = vpop.f32.mrf.mxu0
    %v4753 = vadd.f32 %v4686, %v4752
    %4754 = vmatmul.bf16.gmra.mxu0 %v4662
    %v4755 = vpop.f32.mrf.mxu0
    %v4756 = vadd.f32 %v4686, %v4755
    %v4757 = vpop.f32.mrf.mxu0
    %v4758 = vadd.f32 %v4686, %v4757
    %4759 = vmatmul.bf16.gmra.mxu0 %v4663
    %v4760 = vpop.f32.mrf.mxu0
    %v4761 = vadd.f32 %v4686, %v4760
    %v4762 = vpop.f32.mrf.mxu0
    %v4763 = vadd.f32 %v4686, %v4762
    %4764 = vmatmul.bf16.gmra.mxu0 %v4664
    %v4765 = vpop.f32.mrf.mxu0
    %v4766 = vadd.f32 %v4686, %v4765
    %v4767 = vpop.f32.mrf.mxu0
    %v4768 = vadd.f32 %v4686, %v4767
    %4769 = vmatmul.bf16.gmra.mxu0 %v4665
    %v4770 = vpop.f32.mrf.mxu0
    %v4771 = vadd.f32 %v4686, %v4770
    %v4772 = vpop.f32.mrf.mxu0
    %v4773 = vadd.f32 %v4686, %v4772
    %4774 = vmatmul.bf16.gmra.mxu0 %v4666
    %v4775 = vpop.f32.mrf.mxu0
    %v4776 = vadd.f32 %v4686, %v4775
    %v4777 = vpop.f32.mrf.mxu0
    %v4778 = vadd.f32 %v4686, %v4777
    %4779 = vmatmul.bf16.gmra.mxu0 %v4667
    %v4780 = vpop.f32.mrf.mxu0
    %v4781 = vadd.f32 %v4686, %v4780
    %v4782 = vpop.f32.mrf.mxu0
    %v4783 = vadd.f32 %v4686, %v4782
    %4784 = vdwg.mxu0
    %4785 = vst [vmem:[%s9] sm:$0xff] %v4746
    %4786 = vst [vmem:[%s9 + $0x8] sm:$0xff] %v4748
    %4787 = vst [vmem:[%s9 + $0x10] sm:$0xff] %v4751
    %4788 = vst [vmem:[%s9 + $0x18] sm:$0xff] %v4753
    %4789 = vst [vmem:[%s9 + $0x20] sm:$0xff] %v4756
    %4790 = vst [vmem:[%s9 + $0x28] sm:$0xff] %v4758
    %4791 = vst [vmem:[%s9 + $0x30] sm:$0xff] %v4761
    %4792 = vst [vmem:[%s9 + $0x38] sm:$0xff] %v4763
    %4793 = vst [vmem:[%s9 + $0x40] sm:$0xff] %v4766
    %4794 = vst [vmem:[%s9 + $0x48] sm:$0xff] %v4768
    %4795 = vst [vmem:[%s9 + $0x50] sm:$0xff] %v4771
    %4796 = vst [vmem:[%s9 + $0x58] sm:$0xff] %v4773
    %4797 = vst [vmem:[%s9 + $0x60] sm:$0xff] %v4776
    %4798 = vst [vmem:[%s9 + $0x68] sm:$0xff] %v4778
    %4799 = vst [vmem:[%s9 + $0x70] sm:$0xff] %v4781
    %4800 = vst [vmem:[%s9 + $0x78] sm:$0xff] %v4783
    // Predicated region
    $region46: #{deep_nn_forward.1} parent=1 // pred_check
      _
    $region47: #{deep_nn_forward.1} parent=1 // pred_check_branch
      %4802 = sbr.rel (0) target = $region49
    $region48: #{deep_nn_forward.1} parent=1 // pred_region
      _
    $region49: #{deep_nn_forward.1} parent=1 // pred_fallthru
      _
    // Predicated region
    $region50: #{deep_nn_forward.1} parent=1 // pred_check
      _
    $region51: #{deep_nn_forward.1} parent=1 // pred_check_branch
      %4804 = sbr.rel (0) target = $region53
    $region52: #{deep_nn_forward.1} parent=1 // pred_region
      _
    $region53: #{deep_nn_forward.1} parent=1 // pred_fallthru
      _
    %4805 = vsyncpa [#allocation4], 1
    %4806 = vsyncpa [#allocation6], 1

</llo_original>
